<compile_context>
chip_gen: v7x
topology: tpu7x:2x2x1
jax: 0.10.0
libtpu: 0.0.40
codegen_flags: <defaults>
</compile_context>

<pallas_src>
import jax
import jax.numpy as jnp
from jax.experimental import pallas as pl
from jax.experimental.pallas import tpu as pltpu

# ----------------------------- configuration --------------------------------
B = 2                      # batch
SEQ = 8                    # cfg.seq_len
HID = 32                   # cfg.hidden_size (= intermediate_size)
NHEAD = 2                  # cfg.nheads
DHEAD = HID // NHEAD       # attention head size
NLAYERS = 2                # cfg.nlayers
EMB = 4                    # cfg.emb_size
N_CATE_COLS = 4            # len(cfg.cate_cols)
N_CONT_COLS = 3            # len(cfg.cont_cols)
TOTAL_CATE = 20            # cfg.total_cate_size
TARGET = 3                 # cfg.target_size
CATE_IN = EMB * N_CATE_COLS        # 16, cate_proj input dim
CONT_PAD = 8               # lane-friendly zero-pad of the tiny cont feature dim
TARGET_PAD = 8             # lane-friendly zero-pad of the tiny target dim
LN_EPS_BERT = 1e-12        # BertConfig layer_norm_eps
LN_EPS_TORCH = 1e-5        # nn.LayerNorm default
SCALE = 1.0 / (DHEAD ** 0.5)


# ----------------------------- in-kernel helpers -----------------------------
def _layer_norm(x, g, b, eps):
    # PyTorch LayerNorm: biased variance over last dim, affine.
    mu = jnp.mean(x, axis=-1, keepdims=True)
    xc = x - mu
    var = jnp.mean(xc * xc, axis=-1, keepdims=True)
    return xc * jax.lax.rsqrt(var + eps) * g + b


def _erf(x):
    # Abramowitz & Stegun 7.1.26, |err| < 1.5e-7 — stand-in for exact erf so the
    # exact (erf-based) BERT gelu lowers with only exp/mul/add on the VPU/EUP.
    a1, a2, a3, a4, a5 = 0.254829592, -0.284496736, 1.421413741, -1.453152027, 1.061405429
    p = 0.3275911
    sgn = jnp.where(x >= 0.0, 1.0, -1.0)
    ax = jnp.abs(x)
    t = 1.0 / (1.0 + p * ax)
    poly = ((((a5 * t + a4) * t + a3) * t + a2) * t + a1) * t
    return sgn * (1.0 - poly * jnp.exp(-ax * ax))


def _gelu(x):
    # BERT hidden_act="gelu" (exact, erf-based)
    return 0.5 * x * (1.0 + _erf(x * 0.7071067811865476))


# ----------------------------- fused Pallas kernel ---------------------------
def fused_forward_kernel(
        cate_ref, cont_ref, madd_ref,
        cpw_ref, cpb_ref, cpg_ref, cpB_ref,          # cate_proj Linear + LN
        cow_ref, cob_ref, cog_ref, coB_ref,          # cont_emb  Linear + LN
        wq_ref, bq_ref, wk_ref, bk_ref, wv_ref, bv_ref,
        wo_ref, bo_ref, ln1g_ref, ln1b_ref,
        wi_ref, bi_ref, wo2_ref, bo2_ref, ln2g_ref, ln2b_ref,
        rw1_ref, rb1_ref, rg1_ref, rB1_ref,
        rw2_ref, rb2_ref, rg2_ref, rB2_ref,
        rw3_ref, rb3_ref,
        out_ref):
    # ---- embeddings: cate_proj + cont_emb, full batch flattened to (B*SEQ, .) ----
    cate_e = jnp.dot(cate_ref[...], cpw_ref[...],
                     preferred_element_type=jnp.float32) + cpb_ref[...]
    cate_e = _layer_norm(cate_e, cpg_ref[...], cpB_ref[...], LN_EPS_TORCH)

    cont_e = jnp.dot(cont_ref[...], cow_ref[...],
                     preferred_element_type=jnp.float32) + cob_ref[...]
    cont_e = _layer_norm(cont_e, cog_ref[...], coB_ref[...], LN_EPS_TORCH)

    h = jnp.concatenate([cate_e, cont_e], axis=1)          # (B*SEQ, HID)

    madd = madd_ref[...]                                   # (NHEAD*B, SEQ, SEQ), additive

    def to_heads(x):                                       # (B*SEQ, HID) -> (NHEAD*B, SEQ, DHEAD)
        return jnp.concatenate(
            [x[:, n * DHEAD:(n + 1) * DHEAD].reshape(B, SEQ, DHEAD) for n in range(NHEAD)],
            axis=0)

    def from_heads(x):                                     # (NHEAD*B, SEQ, DHEAD) -> (B*SEQ, HID)
        return jnp.concatenate(
            [x[n * B:(n + 1) * B].reshape(B * SEQ, DHEAD) for n in range(NHEAD)],
            axis=1)

    # ---- BERT encoder layers (unrolled; weights indexed statically) ----
    for l in range(NLAYERS):
        q = jnp.dot(h, wq_ref[l], preferred_element_type=jnp.float32) + bq_ref[l]
        k = jnp.dot(h, wk_ref[l], preferred_element_type=jnp.float32) + bk_ref[l]
        v = jnp.dot(h, wv_ref[l], preferred_element_type=jnp.float32) + bv_ref[l]

        q3, k3, v3 = to_heads(q), to_heads(k), to_heads(v)

        # scores over (head*batch) as one batched matmul
        s = jax.lax.dot_general(q3, k3, (((2,), (2,)), ((0,), (0,))),
                                preferred_element_type=jnp.float32)   # (NHEAD*B, SEQ, SEQ)
        s = s * SCALE + madd
        s = s - jnp.max(s, axis=-1, keepdims=True)
        p = jnp.exp(s)
        p = p / jnp.sum(p, axis=-1, keepdims=True)                    # softmax (dropout = id)

        ctx = jax.lax.dot_general(p, v3, (((2,), (1,)), ((0,), (0,))),
                                  preferred_element_type=jnp.float32)  # (NHEAD*B, SEQ, DHEAD)
        ctx = from_heads(ctx)                                          # (B*SEQ, HID)

        attn = jnp.dot(ctx, wo_ref[l], preferred_element_type=jnp.float32) + bo_ref[l]
        h = _layer_norm(attn + h, ln1g_ref[l], ln1b_ref[l], LN_EPS_BERT)

        inter = _gelu(jnp.dot(h, wi_ref[l], preferred_element_type=jnp.float32) + bi_ref[l])
        ff = jnp.dot(inter, wo2_ref[l], preferred_element_type=jnp.float32) + bo2_ref[l]
        h = _layer_norm(ff + h, ln2g_ref[l], ln2b_ref[l], LN_EPS_BERT)

    # ---- last token of each batch element ----
    last = jnp.concatenate(
        [h[(b + 1) * SEQ - 1:(b + 1) * SEQ, :] for b in range(B)], axis=0)   # (B, HID)

    # ---- reg head: Lin->LN->ReLU->Lin->LN->ReLU->Lin(target) ----
    y = jnp.dot(last, rw1_ref[...], preferred_element_type=jnp.float32) + rb1_ref[...]
    y = _layer_norm(y, rg1_ref[...], rB1_ref[...], LN_EPS_TORCH)
    y = jnp.maximum(y, 0.0)
    y = jnp.dot(y, rw2_ref[...], preferred_element_type=jnp.float32) + rb2_ref[...]
    y = _layer_norm(y, rg2_ref[...], rB2_ref[...], LN_EPS_TORCH)
    y = jnp.maximum(y, 0.0)
    out_ref[...] = jnp.dot(y, rw3_ref[...], preferred_element_type=jnp.float32) + rb3_ref[...]


# ----------------------------- pallas_call wrapper ----------------------------
def _vmem():
    return pl.BlockSpec(memory_space=pltpu.MemorySpace.VMEM)


def fused_forward_call(cate_flat, cont_flat, madd, p):
    ins = [cate_flat, cont_flat, madd,
           p["cp_w"], p["cp_b"], p["cp_g"], p["cp_beta"],
           p["co_w"], p["co_b"], p["co_g"], p["co_beta"],
           p["wq"], p["bq"], p["wk"], p["bk"], p["wv"], p["bv"],
           p["wo"], p["bo"], p["ln1_g"], p["ln1_b"],
           p["wi"], p["bi"], p["wo2"], p["bo2"], p["ln2_g"], p["ln2_b"],
           p["reg_w1"], p["reg_b1"], p["reg_g1"], p["reg_beta1"],
           p["reg_w2"], p["reg_b2"], p["reg_g2"], p["reg_beta2"],
           p["reg_w3"], p["reg_b3"]]
    return pl.pallas_call(
        fused_forward_kernel,
        out_shape=jax.ShapeDtypeStruct((B, TARGET_PAD), jnp.float32),
        in_specs=[_vmem() for _ in ins],
        out_specs=_vmem(),
    )(*ins)


# ----------------------------- parameters ------------------------------------
def init_params(key):
    keys = iter(jax.random.split(key, 64))

    def rnd(shape, scale=0.02):
        return scale * jax.random.normal(next(keys), shape, dtype=jnp.float32)

    params = {}
    cate_emb = rnd((TOTAL_CATE, EMB))
    params["cate_emb"] = cate_emb.at[0].set(0.0)            # padding_idx=0 -> zero row

    # cate_proj = Linear(EMB*N_CATE, HID//2) + LayerNorm
    params["cp_w"] = rnd((CATE_IN, HID // 2))
    params["cp_b"] = rnd((1, HID // 2))
    params["cp_g"] = jnp.ones((1, HID // 2), jnp.float32)
    params["cp_beta"] = jnp.zeros((1, HID // 2), jnp.float32)

    # cont_emb = Linear(N_CONT, HID//2) + LayerNorm (input zero-padded to CONT_PAD)
    co_w = rnd((N_CONT_COLS, HID // 2))
    params["co_w"] = jnp.concatenate(
        [co_w, jnp.zeros((CONT_PAD - N_CONT_COLS, HID // 2), jnp.float32)], axis=0)
    params["co_b"] = rnd((1, HID // 2))
    params["co_g"] = jnp.ones((1, HID // 2), jnp.float32)
    params["co_beta"] = jnp.zeros((1, HID // 2), jnp.float32)

    # encoder layers, stacked along a leading NLAYERS axis
    params["wq"] = rnd((NLAYERS, HID, HID)); params["bq"] = rnd((NLAYERS, 1, HID))
    params["wk"] = rnd((NLAYERS, HID, HID)); params["bk"] = rnd((NLAYERS, 1, HID))
    params["wv"] = rnd((NLAYERS, HID, HID)); params["bv"] = rnd((NLAYERS, 1, HID))
    params["wo"] = rnd((NLAYERS, HID, HID)); params["bo"] = rnd((NLAYERS, 1, HID))
    params["ln1_g"] = jnp.ones((NLAYERS, 1, HID), jnp.float32)
    params["ln1_b"] = jnp.zeros((NLAYERS, 1, HID), jnp.float32)
    params["wi"] = rnd((NLAYERS, HID, HID)); params["bi"] = rnd((NLAYERS, 1, HID))
    params["wo2"] = rnd((NLAYERS, HID, HID)); params["bo2"] = rnd((NLAYERS, 1, HID))
    params["ln2_g"] = jnp.ones((NLAYERS, 1, HID), jnp.float32)
    params["ln2_b"] = jnp.zeros((NLAYERS, 1, HID), jnp.float32)

    # reg head (final output dim zero-padded to TARGET_PAD, sliced back in glue)
    params["reg_w1"] = rnd((HID, HID)); params["reg_b1"] = rnd((1, HID))
    params["reg_g1"] = jnp.ones((1, HID), jnp.float32)
    params["reg_beta1"] = jnp.zeros((1, HID), jnp.float32)
    params["reg_w2"] = rnd((HID, HID)); params["reg_b2"] = rnd((1, HID))
    params["reg_g2"] = jnp.ones((1, HID), jnp.float32)
    params["reg_beta2"] = jnp.zeros((1, HID), jnp.float32)
    w3 = rnd((HID, TARGET))
    params["reg_w3"] = jnp.concatenate(
        [w3, jnp.zeros((HID, TARGET_PAD - TARGET), jnp.float32)], axis=1)
    b3 = rnd((1, TARGET))
    params["reg_b3"] = jnp.concatenate(
        [b3, jnp.zeros((1, TARGET_PAD - TARGET), jnp.float32)], axis=1)
    return params


# ----------------------------- full forward ----------------------------------
def transformer_forward(params, cate_x, cont_x, mask):
    # embedding gather (glue: one tiny XLA gather, not the hot path)
    # TODO(synk): embedding lookup left outside the Pallas kernel (plain gather).
    cate_e = jnp.take(params["cate_emb"], cate_x, axis=0)           # (B,S,Ncate,EMB)
    cate_flat = cate_e.reshape(B * SEQ, CATE_IN)

    cont_flat = cont_x.reshape(B * SEQ, N_CONT_COLS)
    cont_flat = jnp.pad(cont_flat, ((0, 0), (0, CONT_PAD - N_CONT_COLS)))

    # additive attention mask, pre-broadcast once to (NHEAD*B, SEQ, SEQ), head-major
    madd = (1.0 - mask.astype(jnp.float32)) * (-10000.0)            # (B, SEQ)
    madd = jnp.broadcast_to(madd[None, :, None, :], (NHEAD, B, SEQ, SEQ))
    madd = madd.reshape(NHEAD * B, SEQ, SEQ)

    pred = fused_forward_call(cate_flat, cont_flat, madd, params)   # (B, TARGET_PAD)
    return pred[:, :TARGET]


# ----------------------------- main -------------------------------------------
if __name__ == "__main__":
    root = jax.random.PRNGKey(0)
    kp, kc, kn = jax.random.split(root, 3)
    params = init_params(kp)

    cate_x = jax.random.randint(kc, (B, SEQ, N_CATE_COLS), 0, TOTAL_CATE, dtype=jnp.int32)
    cont_x = jax.random.normal(kn, (B, SEQ, N_CONT_COLS), dtype=jnp.float32)
    mask = jnp.ones((B, SEQ), dtype=jnp.float32).at[1, :3].set(0.0)  # 1 = attend, 0 = pad

    pred = jax.jit(transformer_forward)(params, cate_x, cont_x, mask)
    pred = jax.block_until_ready(pred)
    assert pred.shape == (B, TARGET) and pred.dtype == jnp.float32

    print("KERNEL_OK")
</pallas_src>

<mosaic_0001>
module attributes {stable_mosaic.version = 11 : i64} {
  func.func @fused_forward_kernel(%arg0: memref<16x16xf32, #tpu.memory_space<vmem>>, %arg1: memref<16x8xf32, #tpu.memory_space<vmem>>, %arg2: memref<4x8x8xf32, #tpu.memory_space<vmem>>, %arg3: memref<16x16xf32, #tpu.memory_space<vmem>>, %arg4: memref<1x16xf32, #tpu.memory_space<vmem>>, %arg5: memref<1x16xf32, #tpu.memory_space<vmem>>, %arg6: memref<1x16xf32, #tpu.memory_space<vmem>>, %arg7: memref<8x16xf32, #tpu.memory_space<vmem>>, %arg8: memref<1x16xf32, #tpu.memory_space<vmem>>, %arg9: memref<1x16xf32, #tpu.memory_space<vmem>>, %arg10: memref<1x16xf32, #tpu.memory_space<vmem>>, %arg11: memref<2x32x32xf32, #tpu.memory_space<vmem>>, %arg12: memref<2x1x32xf32, #tpu.memory_space<vmem>>, %arg13: memref<2x32x32xf32, #tpu.memory_space<vmem>>, %arg14: memref<2x1x32xf32, #tpu.memory_space<vmem>>, %arg15: memref<2x32x32xf32, #tpu.memory_space<vmem>>, %arg16: memref<2x1x32xf32, #tpu.memory_space<vmem>>, %arg17: memref<2x32x32xf32, #tpu.memory_space<vmem>>, %arg18: memref<2x1x32xf32, #tpu.memory_space<vmem>>, %arg19: memref<2x1x32xf32, #tpu.memory_space<vmem>>, %arg20: memref<2x1x32xf32, #tpu.memory_space<vmem>>, %arg21: memref<2x32x32xf32, #tpu.memory_space<vmem>>, %arg22: memref<2x1x32xf32, #tpu.memory_space<vmem>>, %arg23: memref<2x32x32xf32, #tpu.memory_space<vmem>>, %arg24: memref<2x1x32xf32, #tpu.memory_space<vmem>>, %arg25: memref<2x1x32xf32, #tpu.memory_space<vmem>>, %arg26: memref<2x1x32xf32, #tpu.memory_space<vmem>>, %arg27: memref<32x32xf32, #tpu.memory_space<vmem>>, %arg28: memref<1x32xf32, #tpu.memory_space<vmem>>, %arg29: memref<1x32xf32, #tpu.memory_space<vmem>>, %arg30: memref<1x32xf32, #tpu.memory_space<vmem>>, %arg31: memref<32x32xf32, #tpu.memory_space<vmem>>, %arg32: memref<1x32xf32, #tpu.memory_space<vmem>>, %arg33: memref<1x32xf32, #tpu.memory_space<vmem>>, %arg34: memref<1x32xf32, #tpu.memory_space<vmem>>, %arg35: memref<32x8xf32, #tpu.memory_space<vmem>>, %arg36: memref<1x8xf32, #tpu.memory_space<vmem>>, %arg37: memref<2x8xf32, #tpu.memory_space<vmem>>) attributes {dimension_semantics = [], scalar_prefetch = 0 : i64, scratch_operands = 0 : i64, tpu.core_type = #tpu.core_type<tc>} {
    %c0 = arith.constant 0 : index
    %c0_0 = arith.constant 0 : index
    %0 = vector.load %arg0[%c0, %c0_0] : memref<16x16xf32, #tpu.memory_space<vmem>>, vector<16x16xf32>
    %c0_1 = arith.constant 0 : index
    %c0_2 = arith.constant 0 : index
    %1 = vector.load %arg3[%c0_1, %c0_2] : memref<16x16xf32, #tpu.memory_space<vmem>>, vector<16x16xf32>
    %cst = arith.constant dense<0.000000e+00> : vector<16x16xf32>
    %2 = tpu.matmul %0, %1, %cst {dimension_numbers = #tpu.dot_dimension_numbers<[1], [0], [0], [1], [0, 0, 1, 1], [], []>} : vector<16x16xf32>, vector<16x16xf32>, vector<16x16xf32> -> vector<16x16xf32>
    %c0_3 = arith.constant 0 : index
    %c0_4 = arith.constant 0 : index
    %3 = vector.load %arg4[%c0_3, %c0_4] : memref<1x16xf32, #tpu.memory_space<vmem>>, vector<1x16xf32>
    %4 = vector.broadcast %3 : vector<1x16xf32> to vector<16x16xf32>
    %5 = arith.addf %2, %4 : vector<16x16xf32>
    %c0_5 = arith.constant 0 : index
    %c0_6 = arith.constant 0 : index
    %6 = vector.load %arg5[%c0_5, %c0_6] : memref<1x16xf32, #tpu.memory_space<vmem>>, vector<1x16xf32>
    %c0_7 = arith.constant 0 : index
    %c0_8 = arith.constant 0 : index
    %7 = vector.load %arg6[%c0_7, %c0_8] : memref<1x16xf32, #tpu.memory_space<vmem>>, vector<1x16xf32>
    %cst_9 = arith.constant dense<0.000000e+00> : vector<16xf32>
    %8 = vector.multi_reduction <add>, %5, %cst_9 [1] : vector<16x16xf32> to vector<16xf32>
    %9 = vector.shape_cast %8 : vector<16xf32> to vector<16x1xf32>
    %cst_10 = arith.constant 1.600000e+01 : f32
    %10 = vector.broadcast %cst_10 : f32 to vector<16x1xf32>
    %11 = arith.divf %9, %10 : vector<16x1xf32>
    %12 = vector.broadcast %11 : vector<16x1xf32> to vector<16x16xf32>
    %13 = arith.subf %5, %12 : vector<16x16xf32>
    %14 = arith.mulf %13, %13 : vector<16x16xf32>
    %cst_11 = arith.constant dense<0.000000e+00> : vector<16xf32>
    %15 = vector.multi_reduction <add>, %14, %cst_11 [1] : vector<16x16xf32> to vector<16xf32>
    %16 = vector.shape_cast %15 : vector<16xf32> to vector<16x1xf32>
    %cst_12 = arith.constant 1.600000e+01 : f32
    %17 = vector.broadcast %cst_12 : f32 to vector<16x1xf32>
    %18 = arith.divf %16, %17 : vector<16x1xf32>
    %cst_13 = arith.constant 9.99999974E-6 : f32
    %19 = vector.broadcast %cst_13 : f32 to vector<16x1xf32>
    %20 = arith.addf %18, %19 : vector<16x1xf32>
    %21 = math.rsqrt %20 : vector<16x1xf32>
    %22 = vector.broadcast %21 : vector<16x1xf32> to vector<16x16xf32>
    %23 = arith.mulf %13, %22 : vector<16x16xf32>
    %24 = vector.broadcast %6 : vector<1x16xf32> to vector<16x16xf32>
    %25 = arith.mulf %23, %24 : vector<16x16xf32>
    %26 = vector.broadcast %7 : vector<1x16xf32> to vector<16x16xf32>
    %27 = arith.addf %25, %26 : vector<16x16xf32>
    %c0_14 = arith.constant 0 : index
    %c0_15 = arith.constant 0 : index
    %28 = vector.load %arg1[%c0_14, %c0_15] : memref<16x8xf32, #tpu.memory_space<vmem>>, vector<16x8xf32>
    %c0_16 = arith.constant 0 : index
    %c0_17 = arith.constant 0 : index
    %29 = vector.load %arg7[%c0_16, %c0_17] : memref<8x16xf32, #tpu.memory_space<vmem>>, vector<8x16xf32>
    %cst_18 = arith.constant dense<0.000000e+00> : vector<16x16xf32>
    %30 = tpu.matmul %28, %29, %cst_18 {dimension_numbers = #tpu.dot_dimension_numbers<[1], [0], [0], [1], [0, 0, 1, 1], [], []>} : vector<16x8xf32>, vector<8x16xf32>, vector<16x16xf32> -> vector<16x16xf32>
    %c0_19 = arith.constant 0 : index
    %c0_20 = arith.constant 0 : index
    %31 = vector.load %arg8[%c0_19, %c0_20] : memref<1x16xf32, #tpu.memory_space<vmem>>, vector<1x16xf32>
    %32 = vector.broadcast %31 : vector<1x16xf32> to vector<16x16xf32>
    %33 = arith.addf %30, %32 : vector<16x16xf32>
    %c0_21 = arith.constant 0 : index
    %c0_22 = arith.constant 0 : index
    %34 = vector.load %arg9[%c0_21, %c0_22] : memref<1x16xf32, #tpu.memory_space<vmem>>, vector<1x16xf32>
    %c0_23 = arith.constant 0 : index
    %c0_24 = arith.constant 0 : index
    %35 = vector.load %arg10[%c0_23, %c0_24] : memref<1x16xf32, #tpu.memory_space<vmem>>, vector<1x16xf32>
    %cst_25 = arith.constant dense<0.000000e+00> : vector<16xf32>
    %36 = vector.multi_reduction <add>, %33, %cst_25 [1] : vector<16x16xf32> to vector<16xf32>
    %37 = vector.shape_cast %36 : vector<16xf32> to vector<16x1xf32>
    %cst_26 = arith.constant 1.600000e+01 : f32
    %38 = vector.broadcast %cst_26 : f32 to vector<16x1xf32>
    %39 = arith.divf %37, %38 : vector<16x1xf32>
    %40 = vector.broadcast %39 : vector<16x1xf32> to vector<16x16xf32>
    %41 = arith.subf %33, %40 : vector<16x16xf32>
    %42 = arith.mulf %41, %41 : vector<16x16xf32>
    %cst_27 = arith.constant dense<0.000000e+00> : vector<16xf32>
    %43 = vector.multi_reduction <add>, %42, %cst_27 [1] : vector<16x16xf32> to vector<16xf32>
    %44 = vector.shape_cast %43 : vector<16xf32> to vector<16x1xf32>
    %cst_28 = arith.constant 1.600000e+01 : f32
    %45 = vector.broadcast %cst_28 : f32 to vector<16x1xf32>
    %46 = arith.divf %44, %45 : vector<16x1xf32>
    %cst_29 = arith.constant 9.99999974E-6 : f32
    %47 = vector.broadcast %cst_29 : f32 to vector<16x1xf32>
    %48 = arith.addf %46, %47 : vector<16x1xf32>
    %49 = math.rsqrt %48 : vector<16x1xf32>
    %50 = vector.broadcast %49 : vector<16x1xf32> to vector<16x16xf32>
    %51 = arith.mulf %41, %50 : vector<16x16xf32>
    %52 = vector.broadcast %34 : vector<1x16xf32> to vector<16x16xf32>
    %53 = arith.mulf %51, %52 : vector<16x16xf32>
    %54 = vector.broadcast %35 : vector<1x16xf32> to vector<16x16xf32>
    %55 = arith.addf %53, %54 : vector<16x16xf32>
    %56 = tpu.concatenate %27, %55 in 1 : vector<16x16xf32>, vector<16x16xf32> -> vector<16x32xf32>
    %c0_30 = arith.constant 0 : index
    %c0_31 = arith.constant 0 : index
    %c0_32 = arith.constant 0 : index
    %57 = vector.load %arg2[%c0_30, %c0_31, %c0_32] : memref<4x8x8xf32, #tpu.memory_space<vmem>>, vector<4x8x8xf32>
    %c0_33 = arith.constant 0 : index
    %c0_34 = arith.constant 0 : index
    %c0_35 = arith.constant 0 : index
    %58 = vector.load %arg11[%c0_33, %c0_34, %c0_35] : memref<2x32x32xf32, #tpu.memory_space<vmem>>, vector<1x32x32xf32>
    %59 = vector.shape_cast %58 : vector<1x32x32xf32> to vector<32x32xf32>
    %cst_36 = arith.constant dense<0.000000e+00> : vector<16x32xf32>
    %60 = tpu.matmul %56, %59, %cst_36 {dimension_numbers = #tpu.dot_dimension_numbers<[1], [0], [0], [1], [0, 0, 1, 1], [], []>} : vector<16x32xf32>, vector<32x32xf32>, vector<16x32xf32> -> vector<16x32xf32>
    %c0_37 = arith.constant 0 : index
    %c0_38 = arith.constant 0 : index
    %c0_39 = arith.constant 0 : index
    %61 = vector.load %arg12[%c0_37, %c0_38, %c0_39] : memref<2x1x32xf32, #tpu.memory_space<vmem>>, vector<1x1x32xf32>
    %62 = vector.shape_cast %61 : vector<1x1x32xf32> to vector<1x32xf32>
    %63 = vector.broadcast %62 : vector<1x32xf32> to vector<16x32xf32>
    %64 = arith.addf %60, %63 : vector<16x32xf32>
    %c0_40 = arith.constant 0 : index
    %c0_41 = arith.constant 0 : index
    %c0_42 = arith.constant 0 : index
    %65 = vector.load %arg13[%c0_40, %c0_41, %c0_42] : memref<2x32x32xf32, #tpu.memory_space<vmem>>, vector<1x32x32xf32>
    %66 = vector.shape_cast %65 : vector<1x32x32xf32> to vector<32x32xf32>
    %cst_43 = arith.constant dense<0.000000e+00> : vector<16x32xf32>
    %67 = tpu.matmul %56, %66, %cst_43 {dimension_numbers = #tpu.dot_dimension_numbers<[1], [0], [0], [1], [0, 0, 1, 1], [], []>} : vector<16x32xf32>, vector<32x32xf32>, vector<16x32xf32> -> vector<16x32xf32>
    %c0_44 = arith.constant 0 : index
    %c0_45 = arith.constant 0 : index
    %c0_46 = arith.constant 0 : index
    %68 = vector.load %arg14[%c0_44, %c0_45, %c0_46] : memref<2x1x32xf32, #tpu.memory_space<vmem>>, vector<1x1x32xf32>
    %69 = vector.shape_cast %68 : vector<1x1x32xf32> to vector<1x32xf32>
    %70 = vector.broadcast %69 : vector<1x32xf32> to vector<16x32xf32>
    %71 = arith.addf %67, %70 : vector<16x32xf32>
    %c0_47 = arith.constant 0 : index
    %c0_48 = arith.constant 0 : index
    %c0_49 = arith.constant 0 : index
    %72 = vector.load %arg15[%c0_47, %c0_48, %c0_49] : memref<2x32x32xf32, #tpu.memory_space<vmem>>, vector<1x32x32xf32>
    %73 = vector.shape_cast %72 : vector<1x32x32xf32> to vector<32x32xf32>
    %cst_50 = arith.constant dense<0.000000e+00> : vector<16x32xf32>
    %74 = tpu.matmul %56, %73, %cst_50 {dimension_numbers = #tpu.dot_dimension_numbers<[1], [0], [0], [1], [0, 0, 1, 1], [], []>} : vector<16x32xf32>, vector<32x32xf32>, vector<16x32xf32> -> vector<16x32xf32>
    %c0_51 = arith.constant 0 : index
    %c0_52 = arith.constant 0 : index
    %c0_53 = arith.constant 0 : index
    %75 = vector.load %arg16[%c0_51, %c0_52, %c0_53] : memref<2x1x32xf32, #tpu.memory_space<vmem>>, vector<1x1x32xf32>
    %76 = vector.shape_cast %75 : vector<1x1x32xf32> to vector<1x32xf32>
    %77 = vector.broadcast %76 : vector<1x32xf32> to vector<16x32xf32>
    %78 = arith.addf %74, %77 : vector<16x32xf32>
    %79 = vector.extract_strided_slice %64 {offsets = [0, 0], sizes = [16, 16], strides = [1, 1]} : vector<16x32xf32> to vector<16x16xf32>
    %80 = vector.shape_cast %79 : vector<16x16xf32> to vector<2x8x16xf32>
    %81 = vector.extract_strided_slice %64 {offsets = [0, 16], sizes = [16, 16], strides = [1, 1]} : vector<16x32xf32> to vector<16x16xf32>
    %82 = vector.shape_cast %81 : vector<16x16xf32> to vector<2x8x16xf32>
    %83 = tpu.concatenate %80, %82 in 0 : vector<2x8x16xf32>, vector<2x8x16xf32> -> vector<4x8x16xf32>
    %84 = vector.extract_strided_slice %71 {offsets = [0, 0], sizes = [16, 16], strides = [1, 1]} : vector<16x32xf32> to vector<16x16xf32>
    %85 = vector.shape_cast %84 : vector<16x16xf32> to vector<2x8x16xf32>
    %86 = vector.extract_strided_slice %71 {offsets = [0, 16], sizes = [16, 16], strides = [1, 1]} : vector<16x32xf32> to vector<16x16xf32>
    %87 = vector.shape_cast %86 : vector<16x16xf32> to vector<2x8x16xf32>
    %88 = tpu.concatenate %85, %87 in 0 : vector<2x8x16xf32>, vector<2x8x16xf32> -> vector<4x8x16xf32>
    %89 = vector.extract_strided_slice %78 {offsets = [0, 0], sizes = [16, 16], strides = [1, 1]} : vector<16x32xf32> to vector<16x16xf32>
    %90 = vector.shape_cast %89 : vector<16x16xf32> to vector<2x8x16xf32>
    %91 = vector.extract_strided_slice %78 {offsets = [0, 16], sizes = [16, 16], strides = [1, 1]} : vector<16x32xf32> to vector<16x16xf32>
    %92 = vector.shape_cast %91 : vector<16x16xf32> to vector<2x8x16xf32>
    %93 = tpu.concatenate %90, %92 in 0 : vector<2x8x16xf32>, vector<2x8x16xf32> -> vector<4x8x16xf32>
    %cst_54 = arith.constant dense<0.000000e+00> : vector<4x8x8xf32>
    %94 = tpu.matmul %83, %88, %cst_54 {dimension_numbers = #tpu.dot_dimension_numbers<[2], [2], [1], [1], [0, 0, 0, 1, 1, 1], [0], [0]>} : vector<4x8x16xf32>, vector<4x8x16xf32>, vector<4x8x8xf32> -> vector<4x8x8xf32>
    %cst_55 = arith.constant 2.500000e-01 : f32
    %95 = vector.broadcast %cst_55 : f32 to vector<4x8x8xf32>
    %96 = arith.mulf %94, %95 : vector<4x8x8xf32>
    %97 = arith.addf %96, %57 : vector<4x8x8xf32>
    %cst_56 = arith.constant dense<0xFF800000> : vector<4x8xf32>
    %98 = vector.multi_reduction <maximumf>, %97, %cst_56 [2] : vector<4x8x8xf32> to vector<4x8xf32>
    %99 = vector.shape_cast %98 : vector<4x8xf32> to vector<4x8x1xf32>
    %100 = vector.broadcast %99 : vector<4x8x1xf32> to vector<4x8x8xf32>
    %101 = arith.subf %97, %100 : vector<4x8x8xf32>
    %102 = math.exp %101 : vector<4x8x8xf32>
    %cst_57 = arith.constant dense<0.000000e+00> : vector<4x8xf32>
    %103 = vector.multi_reduction <add>, %102, %cst_57 [2] : vector<4x8x8xf32> to vector<4x8xf32>
    %104 = vector.shape_cast %103 : vector<4x8xf32> to vector<4x8x1xf32>
    %105 = vector.broadcast %104 : vector<4x8x1xf32> to vector<4x8x8xf32>
    %106 = arith.divf %102, %105 : vector<4x8x8xf32>
    %cst_58 = arith.constant dense<0.000000e+00> : vector<4x8x16xf32>
    %107 = tpu.matmul %106, %93, %cst_58 {dimension_numbers = #tpu.dot_dimension_numbers<[2], [1], [1], [2], [0, 0, 0, 1, 1, 2], [0], [0]>} : vector<4x8x8xf32>, vector<4x8x16xf32>, vector<4x8x16xf32> -> vector<4x8x16xf32>
    %108 = vector.extract_strided_slice %107 {offsets = [0, 0, 0], sizes = [2, 8, 16], strides = [1, 1, 1]} : vector<4x8x16xf32> to vector<2x8x16xf32>
    %109 = vector.shape_cast %108 : vector<2x8x16xf32> to vector<16x16xf32>
    %110 = vector.extract_strided_slice %107 {offsets = [2, 0, 0], sizes = [2, 8, 16], strides = [1, 1, 1]} : vector<4x8x16xf32> to vector<2x8x16xf32>
    %111 = vector.shape_cast %110 : vector<2x8x16xf32> to vector<16x16xf32>
    %112 = tpu.concatenate %109, %111 in 1 : vector<16x16xf32>, vector<16x16xf32> -> vector<16x32xf32>
    %c0_59 = arith.constant 0 : index
    %c0_60 = arith.constant 0 : index
    %c0_61 = arith.constant 0 : index
    %113 = vector.load %arg17[%c0_59, %c0_60, %c0_61] : memref<2x32x32xf32, #tpu.memory_space<vmem>>, vector<1x32x32xf32>
    %114 = vector.shape_cast %113 : vector<1x32x32xf32> to vector<32x32xf32>
    %cst_62 = arith.constant dense<0.000000e+00> : vector<16x32xf32>
    %115 = tpu.matmul %112, %114, %cst_62 {dimension_numbers = #tpu.dot_dimension_numbers<[1], [0], [0], [1], [0, 0, 1, 1], [], []>} : vector<16x32xf32>, vector<32x32xf32>, vector<16x32xf32> -> vector<16x32xf32>
    %c0_63 = arith.constant 0 : index
    %c0_64 = arith.constant 0 : index
    %c0_65 = arith.constant 0 : index
    %116 = vector.load %arg18[%c0_63, %c0_64, %c0_65] : memref<2x1x32xf32, #tpu.memory_space<vmem>>, vector<1x1x32xf32>
    %117 = vector.shape_cast %116 : vector<1x1x32xf32> to vector<1x32xf32>
    %118 = vector.broadcast %117 : vector<1x32xf32> to vector<16x32xf32>
    %119 = arith.addf %115, %118 : vector<16x32xf32>
    %120 = arith.addf %119, %56 : vector<16x32xf32>
    %c0_66 = arith.constant 0 : index
    %c0_67 = arith.constant 0 : index
    %c0_68 = arith.constant 0 : index
    %121 = vector.load %arg19[%c0_66, %c0_67, %c0_68] : memref<2x1x32xf32, #tpu.memory_space<vmem>>, vector<1x1x32xf32>
    %122 = vector.shape_cast %121 : vector<1x1x32xf32> to vector<1x32xf32>
    %c0_69 = arith.constant 0 : index
    %c0_70 = arith.constant 0 : index
    %c0_71 = arith.constant 0 : index
    %123 = vector.load %arg20[%c0_69, %c0_70, %c0_71] : memref<2x1x32xf32, #tpu.memory_space<vmem>>, vector<1x1x32xf32>
    %124 = vector.shape_cast %123 : vector<1x1x32xf32> to vector<1x32xf32>
    %cst_72 = arith.constant dense<0.000000e+00> : vector<16xf32>
    %125 = vector.multi_reduction <add>, %120, %cst_72 [1] : vector<16x32xf32> to vector<16xf32>
    %126 = vector.shape_cast %125 : vector<16xf32> to vector<16x1xf32>
    %cst_73 = arith.constant 3.200000e+01 : f32
    %127 = vector.broadcast %cst_73 : f32 to vector<16x1xf32>
    %128 = arith.divf %126, %127 : vector<16x1xf32>
    %129 = vector.broadcast %128 : vector<16x1xf32> to vector<16x32xf32>
    %130 = arith.subf %120, %129 : vector<16x32xf32>
    %131 = arith.mulf %130, %130 : vector<16x32xf32>
    %cst_74 = arith.constant dense<0.000000e+00> : vector<16xf32>
    %132 = vector.multi_reduction <add>, %131, %cst_74 [1] : vector<16x32xf32> to vector<16xf32>
    %133 = vector.shape_cast %132 : vector<16xf32> to vector<16x1xf32>
    %cst_75 = arith.constant 3.200000e+01 : f32
    %134 = vector.broadcast %cst_75 : f32 to vector<16x1xf32>
    %135 = arith.divf %133, %134 : vector<16x1xf32>
    %cst_76 = arith.constant 9.99999996E-13 : f32
    %136 = vector.broadcast %cst_76 : f32 to vector<16x1xf32>
    %137 = arith.addf %135, %136 : vector<16x1xf32>
    %138 = math.rsqrt %137 : vector<16x1xf32>
    %139 = vector.broadcast %138 : vector<16x1xf32> to vector<16x32xf32>
    %140 = arith.mulf %130, %139 : vector<16x32xf32>
    %141 = vector.broadcast %122 : vector<1x32xf32> to vector<16x32xf32>
    %142 = arith.mulf %140, %141 : vector<16x32xf32>
    %143 = vector.broadcast %124 : vector<1x32xf32> to vector<16x32xf32>
    %144 = arith.addf %142, %143 : vector<16x32xf32>
    %c0_77 = arith.constant 0 : index
    %c0_78 = arith.constant 0 : index
    %c0_79 = arith.constant 0 : index
    %145 = vector.load %arg21[%c0_77, %c0_78, %c0_79] : memref<2x32x32xf32, #tpu.memory_space<vmem>>, vector<1x32x32xf32>
    %146 = vector.shape_cast %145 : vector<1x32x32xf32> to vector<32x32xf32>
    %cst_80 = arith.constant dense<0.000000e+00> : vector<16x32xf32>
    %147 = tpu.matmul %144, %146, %cst_80 {dimension_numbers = #tpu.dot_dimension_numbers<[1], [0], [0], [1], [0, 0, 1, 1], [], []>} : vector<16x32xf32>, vector<32x32xf32>, vector<16x32xf32> -> vector<16x32xf32>
    %c0_81 = arith.constant 0 : index
    %c0_82 = arith.constant 0 : index
    %c0_83 = arith.constant 0 : index
    %148 = vector.load %arg22[%c0_81, %c0_82, %c0_83] : memref<2x1x32xf32, #tpu.memory_space<vmem>>, vector<1x1x32xf32>
    %149 = vector.shape_cast %148 : vector<1x1x32xf32> to vector<1x32xf32>
    %150 = vector.broadcast %149 : vector<1x32xf32> to vector<16x32xf32>
    %151 = arith.addf %147, %150 : vector<16x32xf32>
    %cst_84 = arith.constant 5.000000e-01 : f32
    %152 = vector.broadcast %cst_84 : f32 to vector<16x32xf32>
    %153 = arith.mulf %152, %151 : vector<16x32xf32>
    %cst_85 = arith.constant 0.707106769 : f32
    %154 = vector.broadcast %cst_85 : f32 to vector<16x32xf32>
    %155 = arith.mulf %151, %154 : vector<16x32xf32>
    %cst_86 = arith.constant 0.000000e+00 : f32
    %156 = vector.broadcast %cst_86 : f32 to vector<16x32xf32>
    %157 = arith.cmpf oge, %155, %156 : vector<16x32xf32>
    %cst_87 = arith.constant 1.000000e+00 : f32
    %cst_88 = arith.constant -1.000000e+00 : f32
    %158 = vector.broadcast %cst_87 : f32 to vector<16x32xf32>
    %159 = vector.broadcast %cst_88 : f32 to vector<16x32xf32>
    %160 = arith.select %157, %158, %159 : vector<16x32xi1>, vector<16x32xf32>
    %161 = math.absf %155 : vector<16x32xf32>
    %cst_89 = arith.constant 0.327591091 : f32
    %162 = vector.broadcast %cst_89 : f32 to vector<16x32xf32>
    %163 = arith.mulf %162, %161 : vector<16x32xf32>
    %cst_90 = arith.constant 1.000000e+00 : f32
    %164 = vector.broadcast %cst_90 : f32 to vector<16x32xf32>
    %165 = arith.addf %164, %163 : vector<16x32xf32>
    %cst_91 = arith.constant 1.000000e+00 : f32
    %166 = vector.broadcast %cst_91 : f32 to vector<16x32xf32>
    %167 = arith.divf %166, %165 : vector<16x32xf32>
    %cst_92 = arith.constant 1.06140542 : f32
    %168 = vector.broadcast %cst_92 : f32 to vector<16x32xf32>
    %169 = arith.mulf %168, %167 : vector<16x32xf32>
    %cst_93 = arith.constant -1.45315206 : f32
    %170 = vector.broadcast %cst_93 : f32 to vector<16x32xf32>
    %171 = arith.addf %169, %170 : vector<16x32xf32>
    %172 = arith.mulf %171, %167 : vector<16x32xf32>
    %cst_94 = arith.constant 1.42141378 : f32
    %173 = vector.broadcast %cst_94 : f32 to vector<16x32xf32>
    %174 = arith.addf %172, %173 : vector<16x32xf32>
    %175 = arith.mulf %174, %167 : vector<16x32xf32>
    %cst_95 = arith.constant -0.284496725 : f32
    %176 = vector.broadcast %cst_95 : f32 to vector<16x32xf32>
    %177 = arith.addf %175, %176 : vector<16x32xf32>
    %178 = arith.mulf %177, %167 : vector<16x32xf32>
    %cst_96 = arith.constant 0.254829586 : f32
    %179 = vector.broadcast %cst_96 : f32 to vector<16x32xf32>
    %180 = arith.addf %178, %179 : vector<16x32xf32>
    %181 = arith.mulf %180, %167 : vector<16x32xf32>
    %cst_97 = arith.constant 0.000000e+00 : f32
    %182 = vector.broadcast %cst_97 : f32 to vector<16x32xf32>
    %183 = arith.subf %182, %161 : vector<16x32xf32>
    %184 = arith.mulf %183, %161 : vector<16x32xf32>
    %185 = math.exp %184 : vector<16x32xf32>
    %186 = arith.mulf %181, %185 : vector<16x32xf32>
    %cst_98 = arith.constant 1.000000e+00 : f32
    %187 = vector.broadcast %cst_98 : f32 to vector<16x32xf32>
    %188 = arith.subf %187, %186 : vector<16x32xf32>
    %189 = arith.mulf %160, %188 : vector<16x32xf32>
    %cst_99 = arith.constant 1.000000e+00 : f32
    %190 = vector.broadcast %cst_99 : f32 to vector<16x32xf32>
    %191 = arith.addf %190, %189 : vector<16x32xf32>
    %192 = arith.mulf %153, %191 : vector<16x32xf32>
    %c0_100 = arith.constant 0 : index
    %c0_101 = arith.constant 0 : index
    %c0_102 = arith.constant 0 : index
    %193 = vector.load %arg23[%c0_100, %c0_101, %c0_102] : memref<2x32x32xf32, #tpu.memory_space<vmem>>, vector<1x32x32xf32>
    %194 = vector.shape_cast %193 : vector<1x32x32xf32> to vector<32x32xf32>
    %cst_103 = arith.constant dense<0.000000e+00> : vector<16x32xf32>
    %195 = tpu.matmul %192, %194, %cst_103 {dimension_numbers = #tpu.dot_dimension_numbers<[1], [0], [0], [1], [0, 0, 1, 1], [], []>} : vector<16x32xf32>, vector<32x32xf32>, vector<16x32xf32> -> vector<16x32xf32>
    %c0_104 = arith.constant 0 : index
    %c0_105 = arith.constant 0 : index
    %c0_106 = arith.constant 0 : index
    %196 = vector.load %arg24[%c0_104, %c0_105, %c0_106] : memref<2x1x32xf32, #tpu.memory_space<vmem>>, vector<1x1x32xf32>
    %197 = vector.shape_cast %196 : vector<1x1x32xf32> to vector<1x32xf32>
    %198 = vector.broadcast %197 : vector<1x32xf32> to vector<16x32xf32>
    %199 = arith.addf %195, %198 : vector<16x32xf32>
    %200 = arith.addf %199, %144 : vector<16x32xf32>
    %c0_107 = arith.constant 0 : index
    %c0_108 = arith.constant 0 : index
    %c0_109 = arith.constant 0 : index
    %201 = vector.load %arg25[%c0_107, %c0_108, %c0_109] : memref<2x1x32xf32, #tpu.memory_space<vmem>>, vector<1x1x32xf32>
    %202 = vector.shape_cast %201 : vector<1x1x32xf32> to vector<1x32xf32>
    %c0_110 = arith.constant 0 : index
    %c0_111 = arith.constant 0 : index
    %c0_112 = arith.constant 0 : index
    %203 = vector.load %arg26[%c0_110, %c0_111, %c0_112] : memref<2x1x32xf32, #tpu.memory_space<vmem>>, vector<1x1x32xf32>
    %204 = vector.shape_cast %203 : vector<1x1x32xf32> to vector<1x32xf32>
    %cst_113 = arith.constant dense<0.000000e+00> : vector<16xf32>
    %205 = vector.multi_reduction <add>, %200, %cst_113 [1] : vector<16x32xf32> to vector<16xf32>
    %206 = vector.shape_cast %205 : vector<16xf32> to vector<16x1xf32>
    %cst_114 = arith.constant 3.200000e+01 : f32
    %207 = vector.broadcast %cst_114 : f32 to vector<16x1xf32>
    %208 = arith.divf %206, %207 : vector<16x1xf32>
    %209 = vector.broadcast %208 : vector<16x1xf32> to vector<16x32xf32>
    %210 = arith.subf %200, %209 : vector<16x32xf32>
    %211 = arith.mulf %210, %210 : vector<16x32xf32>
    %cst_115 = arith.constant dense<0.000000e+00> : vector<16xf32>
    %212 = vector.multi_reduction <add>, %211, %cst_115 [1] : vector<16x32xf32> to vector<16xf32>
    %213 = vector.shape_cast %212 : vector<16xf32> to vector<16x1xf32>
    %cst_116 = arith.constant 3.200000e+01 : f32
    %214 = vector.broadcast %cst_116 : f32 to vector<16x1xf32>
    %215 = arith.divf %213, %214 : vector<16x1xf32>
    %cst_117 = arith.constant 9.99999996E-13 : f32
    %216 = vector.broadcast %cst_117 : f32 to vector<16x1xf32>
    %217 = arith.addf %215, %216 : vector<16x1xf32>
    %218 = math.rsqrt %217 : vector<16x1xf32>
    %219 = vector.broadcast %218 : vector<16x1xf32> to vector<16x32xf32>
    %220 = arith.mulf %210, %219 : vector<16x32xf32>
    %221 = vector.broadcast %202 : vector<1x32xf32> to vector<16x32xf32>
    %222 = arith.mulf %220, %221 : vector<16x32xf32>
    %223 = vector.broadcast %204 : vector<1x32xf32> to vector<16x32xf32>
    %224 = arith.addf %222, %223 : vector<16x32xf32>
    %c1 = arith.constant 1 : index
    %c0_118 = arith.constant 0 : index
    %c0_119 = arith.constant 0 : index
    %225 = vector.load %arg11[%c1, %c0_118, %c0_119] : memref<2x32x32xf32, #tpu.memory_space<vmem>>, vector<1x32x32xf32>
    %226 = vector.shape_cast %225 : vector<1x32x32xf32> to vector<32x32xf32>
    %cst_120 = arith.constant dense<0.000000e+00> : vector<16x32xf32>
    %227 = tpu.matmul %224, %226, %cst_120 {dimension_numbers = #tpu.dot_dimension_numbers<[1], [0], [0], [1], [0, 0, 1, 1], [], []>} : vector<16x32xf32>, vector<32x32xf32>, vector<16x32xf32> -> vector<16x32xf32>
    %c1_121 = arith.constant 1 : index
    %c0_122 = arith.constant 0 : index
    %c0_123 = arith.constant 0 : index
    %228 = vector.load %arg12[%c1_121, %c0_122, %c0_123] : memref<2x1x32xf32, #tpu.memory_space<vmem>>, vector<1x1x32xf32>
    %229 = vector.shape_cast %228 : vector<1x1x32xf32> to vector<1x32xf32>
    %230 = vector.broadcast %229 : vector<1x32xf32> to vector<16x32xf32>
    %231 = arith.addf %227, %230 : vector<16x32xf32>
    %c1_124 = arith.constant 1 : index
    %c0_125 = arith.constant 0 : index
    %c0_126 = arith.constant 0 : index
    %232 = vector.load %arg13[%c1_124, %c0_125, %c0_126] : memref<2x32x32xf32, #tpu.memory_space<vmem>>, vector<1x32x32xf32>
    %233 = vector.shape_cast %232 : vector<1x32x32xf32> to vector<32x32xf32>
    %cst_127 = arith.constant dense<0.000000e+00> : vector<16x32xf32>
    %234 = tpu.matmul %224, %233, %cst_127 {dimension_numbers = #tpu.dot_dimension_numbers<[1], [0], [0], [1], [0, 0, 1, 1], [], []>} : vector<16x32xf32>, vector<32x32xf32>, vector<16x32xf32> -> vector<16x32xf32>
    %c1_128 = arith.constant 1 : index
    %c0_129 = arith.constant 0 : index
    %c0_130 = arith.constant 0 : index
    %235 = vector.load %arg14[%c1_128, %c0_129, %c0_130] : memref<2x1x32xf32, #tpu.memory_space<vmem>>, vector<1x1x32xf32>
    %236 = vector.shape_cast %235 : vector<1x1x32xf32> to vector<1x32xf32>
    %237 = vector.broadcast %236 : vector<1x32xf32> to vector<16x32xf32>
    %238 = arith.addf %234, %237 : vector<16x32xf32>
    %c1_131 = arith.constant 1 : index
    %c0_132 = arith.constant 0 : index
    %c0_133 = arith.constant 0 : index
    %239 = vector.load %arg15[%c1_131, %c0_132, %c0_133] : memref<2x32x32xf32, #tpu.memory_space<vmem>>, vector<1x32x32xf32>
    %240 = vector.shape_cast %239 : vector<1x32x32xf32> to vector<32x32xf32>
    %cst_134 = arith.constant dense<0.000000e+00> : vector<16x32xf32>
    %241 = tpu.matmul %224, %240, %cst_134 {dimension_numbers = #tpu.dot_dimension_numbers<[1], [0], [0], [1], [0, 0, 1, 1], [], []>} : vector<16x32xf32>, vector<32x32xf32>, vector<16x32xf32> -> vector<16x32xf32>
    %c1_135 = arith.constant 1 : index
    %c0_136 = arith.constant 0 : index
    %c0_137 = arith.constant 0 : index
    %242 = vector.load %arg16[%c1_135, %c0_136, %c0_137] : memref<2x1x32xf32, #tpu.memory_space<vmem>>, vector<1x1x32xf32>
    %243 = vector.shape_cast %242 : vector<1x1x32xf32> to vector<1x32xf32>
    %244 = vector.broadcast %243 : vector<1x32xf32> to vector<16x32xf32>
    %245 = arith.addf %241, %244 : vector<16x32xf32>
    %246 = vector.extract_strided_slice %231 {offsets = [0, 0], sizes = [16, 16], strides = [1, 1]} : vector<16x32xf32> to vector<16x16xf32>
    %247 = vector.shape_cast %246 : vector<16x16xf32> to vector<2x8x16xf32>
    %248 = vector.extract_strided_slice %231 {offsets = [0, 16], sizes = [16, 16], strides = [1, 1]} : vector<16x32xf32> to vector<16x16xf32>
    %249 = vector.shape_cast %248 : vector<16x16xf32> to vector<2x8x16xf32>
    %250 = tpu.concatenate %247, %249 in 0 : vector<2x8x16xf32>, vector<2x8x16xf32> -> vector<4x8x16xf32>
    %251 = vector.extract_strided_slice %238 {offsets = [0, 0], sizes = [16, 16], strides = [1, 1]} : vector<16x32xf32> to vector<16x16xf32>
    %252 = vector.shape_cast %251 : vector<16x16xf32> to vector<2x8x16xf32>
    %253 = vector.extract_strided_slice %238 {offsets = [0, 16], sizes = [16, 16], strides = [1, 1]} : vector<16x32xf32> to vector<16x16xf32>
    %254 = vector.shape_cast %253 : vector<16x16xf32> to vector<2x8x16xf32>
    %255 = tpu.concatenate %252, %254 in 0 : vector<2x8x16xf32>, vector<2x8x16xf32> -> vector<4x8x16xf32>
    %256 = vector.extract_strided_slice %245 {offsets = [0, 0], sizes = [16, 16], strides = [1, 1]} : vector<16x32xf32> to vector<16x16xf32>
    %257 = vector.shape_cast %256 : vector<16x16xf32> to vector<2x8x16xf32>
    %258 = vector.extract_strided_slice %245 {offsets = [0, 16], sizes = [16, 16], strides = [1, 1]} : vector<16x32xf32> to vector<16x16xf32>
    %259 = vector.shape_cast %258 : vector<16x16xf32> to vector<2x8x16xf32>
    %260 = tpu.concatenate %257, %259 in 0 : vector<2x8x16xf32>, vector<2x8x16xf32> -> vector<4x8x16xf32>
    %cst_138 = arith.constant dense<0.000000e+00> : vector<4x8x8xf32>
    %261 = tpu.matmul %250, %255, %cst_138 {dimension_numbers = #tpu.dot_dimension_numbers<[2], [2], [1], [1], [0, 0, 0, 1, 1, 1], [0], [0]>} : vector<4x8x16xf32>, vector<4x8x16xf32>, vector<4x8x8xf32> -> vector<4x8x8xf32>
    %cst_139 = arith.constant 2.500000e-01 : f32
    %262 = vector.broadcast %cst_139 : f32 to vector<4x8x8xf32>
    %263 = arith.mulf %261, %262 : vector<4x8x8xf32>
    %264 = arith.addf %263, %57 : vector<4x8x8xf32>
    %cst_140 = arith.constant dense<0xFF800000> : vector<4x8xf32>
    %265 = vector.multi_reduction <maximumf>, %264, %cst_140 [2] : vector<4x8x8xf32> to vector<4x8xf32>
    %266 = vector.shape_cast %265 : vector<4x8xf32> to vector<4x8x1xf32>
    %267 = vector.broadcast %266 : vector<4x8x1xf32> to vector<4x8x8xf32>
    %268 = arith.subf %264, %267 : vector<4x8x8xf32>
    %269 = math.exp %268 : vector<4x8x8xf32>
    %cst_141 = arith.constant dense<0.000000e+00> : vector<4x8xf32>
    %270 = vector.multi_reduction <add>, %269, %cst_141 [2] : vector<4x8x8xf32> to vector<4x8xf32>
    %271 = vector.shape_cast %270 : vector<4x8xf32> to vector<4x8x1xf32>
    %272 = vector.broadcast %271 : vector<4x8x1xf32> to vector<4x8x8xf32>
    %273 = arith.divf %269, %272 : vector<4x8x8xf32>
    %cst_142 = arith.constant dense<0.000000e+00> : vector<4x8x16xf32>
    %274 = tpu.matmul %273, %260, %cst_142 {dimension_numbers = #tpu.dot_dimension_numbers<[2], [1], [1], [2], [0, 0, 0, 1, 1, 2], [0], [0]>} : vector<4x8x8xf32>, vector<4x8x16xf32>, vector<4x8x16xf32> -> vector<4x8x16xf32>
    %275 = vector.extract_strided_slice %274 {offsets = [0, 0, 0], sizes = [2, 8, 16], strides = [1, 1, 1]} : vector<4x8x16xf32> to vector<2x8x16xf32>
    %276 = vector.shape_cast %275 : vector<2x8x16xf32> to vector<16x16xf32>
    %277 = vector.extract_strided_slice %274 {offsets = [2, 0, 0], sizes = [2, 8, 16], strides = [1, 1, 1]} : vector<4x8x16xf32> to vector<2x8x16xf32>
    %278 = vector.shape_cast %277 : vector<2x8x16xf32> to vector<16x16xf32>
    %279 = tpu.concatenate %276, %278 in 1 : vector<16x16xf32>, vector<16x16xf32> -> vector<16x32xf32>
    %c1_143 = arith.constant 1 : index
    %c0_144 = arith.constant 0 : index
    %c0_145 = arith.constant 0 : index
    %280 = vector.load %arg17[%c1_143, %c0_144, %c0_145] : memref<2x32x32xf32, #tpu.memory_space<vmem>>, vector<1x32x32xf32>
    %281 = vector.shape_cast %280 : vector<1x32x32xf32> to vector<32x32xf32>
    %cst_146 = arith.constant dense<0.000000e+00> : vector<16x32xf32>
    %282 = tpu.matmul %279, %281, %cst_146 {dimension_numbers = #tpu.dot_dimension_numbers<[1], [0], [0], [1], [0, 0, 1, 1], [], []>} : vector<16x32xf32>, vector<32x32xf32>, vector<16x32xf32> -> vector<16x32xf32>
    %c1_147 = arith.constant 1 : index
    %c0_148 = arith.constant 0 : index
    %c0_149 = arith.constant 0 : index
    %283 = vector.load %arg18[%c1_147, %c0_148, %c0_149] : memref<2x1x32xf32, #tpu.memory_space<vmem>>, vector<1x1x32xf32>
    %284 = vector.shape_cast %283 : vector<1x1x32xf32> to vector<1x32xf32>
    %285 = vector.broadcast %284 : vector<1x32xf32> to vector<16x32xf32>
    %286 = arith.addf %282, %285 : vector<16x32xf32>
    %287 = arith.addf %286, %224 : vector<16x32xf32>
    %c1_150 = arith.constant 1 : index
    %c0_151 = arith.constant 0 : index
    %c0_152 = arith.constant 0 : index
    %288 = vector.load %arg19[%c1_150, %c0_151, %c0_152] : memref<2x1x32xf32, #tpu.memory_space<vmem>>, vector<1x1x32xf32>
    %289 = vector.shape_cast %288 : vector<1x1x32xf32> to vector<1x32xf32>
    %c1_153 = arith.constant 1 : index
    %c0_154 = arith.constant 0 : index
    %c0_155 = arith.constant 0 : index
    %290 = vector.load %arg20[%c1_153, %c0_154, %c0_155] : memref<2x1x32xf32, #tpu.memory_space<vmem>>, vector<1x1x32xf32>
    %291 = vector.shape_cast %290 : vector<1x1x32xf32> to vector<1x32xf32>
    %cst_156 = arith.constant dense<0.000000e+00> : vector<16xf32>
    %292 = vector.multi_reduction <add>, %287, %cst_156 [1] : vector<16x32xf32> to vector<16xf32>
    %293 = vector.shape_cast %292 : vector<16xf32> to vector<16x1xf32>
    %cst_157 = arith.constant 3.200000e+01 : f32
    %294 = vector.broadcast %cst_157 : f32 to vector<16x1xf32>
    %295 = arith.divf %293, %294 : vector<16x1xf32>
    %296 = vector.broadcast %295 : vector<16x1xf32> to vector<16x32xf32>
    %297 = arith.subf %287, %296 : vector<16x32xf32>
    %298 = arith.mulf %297, %297 : vector<16x32xf32>
    %cst_158 = arith.constant dense<0.000000e+00> : vector<16xf32>
    %299 = vector.multi_reduction <add>, %298, %cst_158 [1] : vector<16x32xf32> to vector<16xf32>
    %300 = vector.shape_cast %299 : vector<16xf32> to vector<16x1xf32>
    %cst_159 = arith.constant 3.200000e+01 : f32
    %301 = vector.broadcast %cst_159 : f32 to vector<16x1xf32>
    %302 = arith.divf %300, %301 : vector<16x1xf32>
    %cst_160 = arith.constant 9.99999996E-13 : f32
    %303 = vector.broadcast %cst_160 : f32 to vector<16x1xf32>
    %304 = arith.addf %302, %303 : vector<16x1xf32>
    %305 = math.rsqrt %304 : vector<16x1xf32>
    %306 = vector.broadcast %305 : vector<16x1xf32> to vector<16x32xf32>
    %307 = arith.mulf %297, %306 : vector<16x32xf32>
    %308 = vector.broadcast %289 : vector<1x32xf32> to vector<16x32xf32>
    %309 = arith.mulf %307, %308 : vector<16x32xf32>
    %310 = vector.broadcast %291 : vector<1x32xf32> to vector<16x32xf32>
    %311 = arith.addf %309, %310 : vector<16x32xf32>
    %c1_161 = arith.constant 1 : index
    %c0_162 = arith.constant 0 : index
    %c0_163 = arith.constant 0 : index
    %312 = vector.load %arg21[%c1_161, %c0_162, %c0_163] : memref<2x32x32xf32, #tpu.memory_space<vmem>>, vector<1x32x32xf32>
    %313 = vector.shape_cast %312 : vector<1x32x32xf32> to vector<32x32xf32>
    %cst_164 = arith.constant dense<0.000000e+00> : vector<16x32xf32>
    %314 = tpu.matmul %311, %313, %cst_164 {dimension_numbers = #tpu.dot_dimension_numbers<[1], [0], [0], [1], [0, 0, 1, 1], [], []>} : vector<16x32xf32>, vector<32x32xf32>, vector<16x32xf32> -> vector<16x32xf32>
    %c1_165 = arith.constant 1 : index
    %c0_166 = arith.constant 0 : index
    %c0_167 = arith.constant 0 : index
    %315 = vector.load %arg22[%c1_165, %c0_166, %c0_167] : memref<2x1x32xf32, #tpu.memory_space<vmem>>, vector<1x1x32xf32>
    %316 = vector.shape_cast %315 : vector<1x1x32xf32> to vector<1x32xf32>
    %317 = vector.broadcast %316 : vector<1x32xf32> to vector<16x32xf32>
    %318 = arith.addf %314, %317 : vector<16x32xf32>
    %cst_168 = arith.constant 5.000000e-01 : f32
    %319 = vector.broadcast %cst_168 : f32 to vector<16x32xf32>
    %320 = arith.mulf %319, %318 : vector<16x32xf32>
    %cst_169 = arith.constant 0.707106769 : f32
    %321 = vector.broadcast %cst_169 : f32 to vector<16x32xf32>
    %322 = arith.mulf %318, %321 : vector<16x32xf32>
    %cst_170 = arith.constant 0.000000e+00 : f32
    %323 = vector.broadcast %cst_170 : f32 to vector<16x32xf32>
    %324 = arith.cmpf oge, %322, %323 : vector<16x32xf32>
    %cst_171 = arith.constant 1.000000e+00 : f32
    %cst_172 = arith.constant -1.000000e+00 : f32
    %325 = vector.broadcast %cst_171 : f32 to vector<16x32xf32>
    %326 = vector.broadcast %cst_172 : f32 to vector<16x32xf32>
    %327 = arith.select %324, %325, %326 : vector<16x32xi1>, vector<16x32xf32>
    %328 = math.absf %322 : vector<16x32xf32>
    %cst_173 = arith.constant 0.327591091 : f32
    %329 = vector.broadcast %cst_173 : f32 to vector<16x32xf32>
    %330 = arith.mulf %329, %328 : vector<16x32xf32>
    %cst_174 = arith.constant 1.000000e+00 : f32
    %331 = vector.broadcast %cst_174 : f32 to vector<16x32xf32>
    %332 = arith.addf %331, %330 : vector<16x32xf32>
    %cst_175 = arith.constant 1.000000e+00 : f32
    %333 = vector.broadcast %cst_175 : f32 to vector<16x32xf32>
    %334 = arith.divf %333, %332 : vector<16x32xf32>
    %cst_176 = arith.constant 1.06140542 : f32
    %335 = vector.broadcast %cst_176 : f32 to vector<16x32xf32>
    %336 = arith.mulf %335, %334 : vector<16x32xf32>
    %cst_177 = arith.constant -1.45315206 : f32
    %337 = vector.broadcast %cst_177 : f32 to vector<16x32xf32>
    %338 = arith.addf %336, %337 : vector<16x32xf32>
    %339 = arith.mulf %338, %334 : vector<16x32xf32>
    %cst_178 = arith.constant 1.42141378 : f32
    %340 = vector.broadcast %cst_178 : f32 to vector<16x32xf32>
    %341 = arith.addf %339, %340 : vector<16x32xf32>
    %342 = arith.mulf %341, %334 : vector<16x32xf32>
    %cst_179 = arith.constant -0.284496725 : f32
    %343 = vector.broadcast %cst_179 : f32 to vector<16x32xf32>
    %344 = arith.addf %342, %343 : vector<16x32xf32>
    %345 = arith.mulf %344, %334 : vector<16x32xf32>
    %cst_180 = arith.constant 0.254829586 : f32
    %346 = vector.broadcast %cst_180 : f32 to vector<16x32xf32>
    %347 = arith.addf %345, %346 : vector<16x32xf32>
    %348 = arith.mulf %347, %334 : vector<16x32xf32>
    %cst_181 = arith.constant 0.000000e+00 : f32
    %349 = vector.broadcast %cst_181 : f32 to vector<16x32xf32>
    %350 = arith.subf %349, %328 : vector<16x32xf32>
    %351 = arith.mulf %350, %328 : vector<16x32xf32>
    %352 = math.exp %351 : vector<16x32xf32>
    %353 = arith.mulf %348, %352 : vector<16x32xf32>
    %cst_182 = arith.constant 1.000000e+00 : f32
    %354 = vector.broadcast %cst_182 : f32 to vector<16x32xf32>
    %355 = arith.subf %354, %353 : vector<16x32xf32>
    %356 = arith.mulf %327, %355 : vector<16x32xf32>
    %cst_183 = arith.constant 1.000000e+00 : f32
    %357 = vector.broadcast %cst_183 : f32 to vector<16x32xf32>
    %358 = arith.addf %357, %356 : vector<16x32xf32>
    %359 = arith.mulf %320, %358 : vector<16x32xf32>
    %c1_184 = arith.constant 1 : index
    %c0_185 = arith.constant 0 : index
    %c0_186 = arith.constant 0 : index
    %360 = vector.load %arg23[%c1_184, %c0_185, %c0_186] : memref<2x32x32xf32, #tpu.memory_space<vmem>>, vector<1x32x32xf32>
    %361 = vector.shape_cast %360 : vector<1x32x32xf32> to vector<32x32xf32>
    %cst_187 = arith.constant dense<0.000000e+00> : vector<16x32xf32>
    %362 = tpu.matmul %359, %361, %cst_187 {dimension_numbers = #tpu.dot_dimension_numbers<[1], [0], [0], [1], [0, 0, 1, 1], [], []>} : vector<16x32xf32>, vector<32x32xf32>, vector<16x32xf32> -> vector<16x32xf32>
    %c1_188 = arith.constant 1 : index
    %c0_189 = arith.constant 0 : index
    %c0_190 = arith.constant 0 : index
    %363 = vector.load %arg24[%c1_188, %c0_189, %c0_190] : memref<2x1x32xf32, #tpu.memory_space<vmem>>, vector<1x1x32xf32>
    %364 = vector.shape_cast %363 : vector<1x1x32xf32> to vector<1x32xf32>
    %365 = vector.broadcast %364 : vector<1x32xf32> to vector<16x32xf32>
    %366 = arith.addf %362, %365 : vector<16x32xf32>
    %367 = arith.addf %366, %311 : vector<16x32xf32>
    %c1_191 = arith.constant 1 : index
    %c0_192 = arith.constant 0 : index
    %c0_193 = arith.constant 0 : index
    %368 = vector.load %arg25[%c1_191, %c0_192, %c0_193] : memref<2x1x32xf32, #tpu.memory_space<vmem>>, vector<1x1x32xf32>
    %369 = vector.shape_cast %368 : vector<1x1x32xf32> to vector<1x32xf32>
    %c1_194 = arith.constant 1 : index
    %c0_195 = arith.constant 0 : index
    %c0_196 = arith.constant 0 : index
    %370 = vector.load %arg26[%c1_194, %c0_195, %c0_196] : memref<2x1x32xf32, #tpu.memory_space<vmem>>, vector<1x1x32xf32>
    %371 = vector.shape_cast %370 : vector<1x1x32xf32> to vector<1x32xf32>
    %cst_197 = arith.constant dense<0.000000e+00> : vector<16xf32>
    %372 = vector.multi_reduction <add>, %367, %cst_197 [1] : vector<16x32xf32> to vector<16xf32>
    %373 = vector.shape_cast %372 : vector<16xf32> to vector<16x1xf32>
    %cst_198 = arith.constant 3.200000e+01 : f32
    %374 = vector.broadcast %cst_198 : f32 to vector<16x1xf32>
    %375 = arith.divf %373, %374 : vector<16x1xf32>
    %376 = vector.broadcast %375 : vector<16x1xf32> to vector<16x32xf32>
    %377 = arith.subf %367, %376 : vector<16x32xf32>
    %378 = arith.mulf %377, %377 : vector<16x32xf32>
    %cst_199 = arith.constant dense<0.000000e+00> : vector<16xf32>
    %379 = vector.multi_reduction <add>, %378, %cst_199 [1] : vector<16x32xf32> to vector<16xf32>
    %380 = vector.shape_cast %379 : vector<16xf32> to vector<16x1xf32>
    %cst_200 = arith.constant 3.200000e+01 : f32
    %381 = vector.broadcast %cst_200 : f32 to vector<16x1xf32>
    %382 = arith.divf %380, %381 : vector<16x1xf32>
    %cst_201 = arith.constant 9.99999996E-13 : f32
    %383 = vector.broadcast %cst_201 : f32 to vector<16x1xf32>
    %384 = arith.addf %382, %383 : vector<16x1xf32>
    %385 = math.rsqrt %384 : vector<16x1xf32>
    %386 = vector.broadcast %385 : vector<16x1xf32> to vector<16x32xf32>
    %387 = arith.mulf %377, %386 : vector<16x32xf32>
    %388 = vector.broadcast %369 : vector<1x32xf32> to vector<16x32xf32>
    %389 = arith.mulf %387, %388 : vector<16x32xf32>
    %390 = vector.broadcast %371 : vector<1x32xf32> to vector<16x32xf32>
    %391 = arith.addf %389, %390 : vector<16x32xf32>
    %392 = vector.extract_strided_slice %391 {offsets = [7, 0], sizes = [1, 32], strides = [1, 1]} : vector<16x32xf32> to vector<1x32xf32>
    %393 = vector.extract_strided_slice %391 {offsets = [15, 0], sizes = [1, 32], strides = [1, 1]} : vector<16x32xf32> to vector<1x32xf32>
    %394 = tpu.concatenate %392, %393 in 0 : vector<1x32xf32>, vector<1x32xf32> -> vector<2x32xf32>
    %c0_202 = arith.constant 0 : index
    %c0_203 = arith.constant 0 : index
    %395 = vector.load %arg27[%c0_202, %c0_203] : memref<32x32xf32, #tpu.memory_space<vmem>>, vector<32x32xf32>
    %cst_204 = arith.constant dense<0.000000e+00> : vector<2x32xf32>
    %396 = tpu.matmul %394, %395, %cst_204 {dimension_numbers = #tpu.dot_dimension_numbers<[1], [0], [0], [1], [0, 0, 1, 1], [], []>} : vector<2x32xf32>, vector<32x32xf32>, vector<2x32xf32> -> vector<2x32xf32>
    %c0_205 = arith.constant 0 : index
    %c0_206 = arith.constant 0 : index
    %397 = vector.load %arg28[%c0_205, %c0_206] : memref<1x32xf32, #tpu.memory_space<vmem>>, vector<1x32xf32>
    %398 = vector.broadcast %397 : vector<1x32xf32> to vector<2x32xf32>
    %399 = arith.addf %396, %398 : vector<2x32xf32>
    %c0_207 = arith.constant 0 : index
    %c0_208 = arith.constant 0 : index
    %400 = vector.load %arg29[%c0_207, %c0_208] : memref<1x32xf32, #tpu.memory_space<vmem>>, vector<1x32xf32>
    %c0_209 = arith.constant 0 : index
    %c0_210 = arith.constant 0 : index
    %401 = vector.load %arg30[%c0_209, %c0_210] : memref<1x32xf32, #tpu.memory_space<vmem>>, vector<1x32xf32>
    %cst_211 = arith.constant dense<0.000000e+00> : vector<2xf32>
    %402 = vector.multi_reduction <add>, %399, %cst_211 [1] : vector<2x32xf32> to vector<2xf32>
    %403 = vector.shape_cast %402 : vector<2xf32> to vector<2x1xf32>
    %cst_212 = arith.constant 3.200000e+01 : f32
    %404 = vector.broadcast %cst_212 : f32 to vector<2x1xf32>
    %405 = arith.divf %403, %404 : vector<2x1xf32>
    %406 = vector.broadcast %405 : vector<2x1xf32> to vector<2x32xf32>
    %407 = arith.subf %399, %406 : vector<2x32xf32>
    %408 = arith.mulf %407, %407 : vector<2x32xf32>
    %cst_213 = arith.constant dense<0.000000e+00> : vector<2xf32>
    %409 = vector.multi_reduction <add>, %408, %cst_213 [1] : vector<2x32xf32> to vector<2xf32>
    %410 = vector.shape_cast %409 : vector<2xf32> to vector<2x1xf32>
    %cst_214 = arith.constant 3.200000e+01 : f32
    %411 = vector.broadcast %cst_214 : f32 to vector<2x1xf32>
    %412 = arith.divf %410, %411 : vector<2x1xf32>
    %cst_215 = arith.constant 9.99999974E-6 : f32
    %413 = vector.broadcast %cst_215 : f32 to vector<2x1xf32>
    %414 = arith.addf %412, %413 : vector<2x1xf32>
    %415 = math.rsqrt %414 : vector<2x1xf32>
    %416 = vector.broadcast %415 : vector<2x1xf32> to vector<2x32xf32>
    %417 = arith.mulf %407, %416 : vector<2x32xf32>
    %418 = vector.broadcast %400 : vector<1x32xf32> to vector<2x32xf32>
    %419 = arith.mulf %417, %418 : vector<2x32xf32>
    %420 = vector.broadcast %401 : vector<1x32xf32> to vector<2x32xf32>
    %421 = arith.addf %419, %420 : vector<2x32xf32>
    %cst_216 = arith.constant 0.000000e+00 : f32
    %422 = vector.broadcast %cst_216 : f32 to vector<2x32xf32>
    %423 = arith.maximumf %421, %422 : vector<2x32xf32>
    %c0_217 = arith.constant 0 : index
    %c0_218 = arith.constant 0 : index
    %424 = vector.load %arg31[%c0_217, %c0_218] : memref<32x32xf32, #tpu.memory_space<vmem>>, vector<32x32xf32>
    %cst_219 = arith.constant dense<0.000000e+00> : vector<2x32xf32>
    %425 = tpu.matmul %423, %424, %cst_219 {dimension_numbers = #tpu.dot_dimension_numbers<[1], [0], [0], [1], [0, 0, 1, 1], [], []>} : vector<2x32xf32>, vector<32x32xf32>, vector<2x32xf32> -> vector<2x32xf32>
    %c0_220 = arith.constant 0 : index
    %c0_221 = arith.constant 0 : index
    %426 = vector.load %arg32[%c0_220, %c0_221] : memref<1x32xf32, #tpu.memory_space<vmem>>, vector<1x32xf32>
    %427 = vector.broadcast %426 : vector<1x32xf32> to vector<2x32xf32>
    %428 = arith.addf %425, %427 : vector<2x32xf32>
    %c0_222 = arith.constant 0 : index
    %c0_223 = arith.constant 0 : index
    %429 = vector.load %arg33[%c0_222, %c0_223] : memref<1x32xf32, #tpu.memory_space<vmem>>, vector<1x32xf32>
    %c0_224 = arith.constant 0 : index
    %c0_225 = arith.constant 0 : index
    %430 = vector.load %arg34[%c0_224, %c0_225] : memref<1x32xf32, #tpu.memory_space<vmem>>, vector<1x32xf32>
    %cst_226 = arith.constant dense<0.000000e+00> : vector<2xf32>
    %431 = vector.multi_reduction <add>, %428, %cst_226 [1] : vector<2x32xf32> to vector<2xf32>
    %432 = vector.shape_cast %431 : vector<2xf32> to vector<2x1xf32>
    %cst_227 = arith.constant 3.200000e+01 : f32
    %433 = vector.broadcast %cst_227 : f32 to vector<2x1xf32>
    %434 = arith.divf %432, %433 : vector<2x1xf32>
    %435 = vector.broadcast %434 : vector<2x1xf32> to vector<2x32xf32>
    %436 = arith.subf %428, %435 : vector<2x32xf32>
    %437 = arith.mulf %436, %436 : vector<2x32xf32>
    %cst_228 = arith.constant dense<0.000000e+00> : vector<2xf32>
    %438 = vector.multi_reduction <add>, %437, %cst_228 [1] : vector<2x32xf32> to vector<2xf32>
    %439 = vector.shape_cast %438 : vector<2xf32> to vector<2x1xf32>
    %cst_229 = arith.constant 3.200000e+01 : f32
    %440 = vector.broadcast %cst_229 : f32 to vector<2x1xf32>
    %441 = arith.divf %439, %440 : vector<2x1xf32>
    %cst_230 = arith.constant 9.99999974E-6 : f32
    %442 = vector.broadcast %cst_230 : f32 to vector<2x1xf32>
    %443 = arith.addf %441, %442 : vector<2x1xf32>
    %444 = math.rsqrt %443 : vector<2x1xf32>
    %445 = vector.broadcast %444 : vector<2x1xf32> to vector<2x32xf32>
    %446 = arith.mulf %436, %445 : vector<2x32xf32>
    %447 = vector.broadcast %429 : vector<1x32xf32> to vector<2x32xf32>
    %448 = arith.mulf %446, %447 : vector<2x32xf32>
    %449 = vector.broadcast %430 : vector<1x32xf32> to vector<2x32xf32>
    %450 = arith.addf %448, %449 : vector<2x32xf32>
    %cst_231 = arith.constant 0.000000e+00 : f32
    %451 = vector.broadcast %cst_231 : f32 to vector<2x32xf32>
    %452 = arith.maximumf %450, %451 : vector<2x32xf32>
    %c0_232 = arith.constant 0 : index
    %c0_233 = arith.constant 0 : index
    %453 = vector.load %arg35[%c0_232, %c0_233] : memref<32x8xf32, #tpu.memory_space<vmem>>, vector<32x8xf32>
    %cst_234 = arith.constant dense<0.000000e+00> : vector<2x8xf32>
    %454 = tpu.matmul %452, %453, %cst_234 {dimension_numbers = #tpu.dot_dimension_numbers<[1], [0], [0], [1], [0, 0, 1, 1], [], []>} : vector<2x32xf32>, vector<32x8xf32>, vector<2x8xf32> -> vector<2x8xf32>
    %c0_235 = arith.constant 0 : index
    %c0_236 = arith.constant 0 : index
    %455 = vector.load %arg36[%c0_235, %c0_236] : memref<1x8xf32, #tpu.memory_space<vmem>>, vector<1x8xf32>
    %456 = vector.broadcast %455 : vector<1x8xf32> to vector<2x8xf32>
    %457 = arith.addf %454, %456 : vector<2x8xf32>
    %c0_237 = arith.constant 0 : index
    %c0_238 = arith.constant 0 : index
    %458 = vector.load %arg37[%c0_237, %c0_238] : memref<2x8xf32, #tpu.memory_space<vmem>>, vector<2x8xf32>
    tpu.vector_store %arg37[%c0_237, %c0_238], %457 {strides = array<i32>} : memref<2x8xf32, #tpu.memory_space<vmem>>, vector<2x8xf32>,
    return
  }
}

</mosaic_0001>

<llo_original>
// kernel: transformer_forward.1
$region0: #{transformer_forward.1}
  #allocation0 [shape = 'u32[]', space=smem, size = 0x4, offset = 0x4, fixed_abs, tag = 'smem constant byte address 0x4 - core index']
  #allocation1 [shape = 'u32[144,128]{1,0:T(1,128)}', space=vmem, size = 0x12000, scoped, tag = 'internal scratch']
  %s0 = inlined_call_operand.smem [shape: u32[38], index: -1, kind: input, shape index: {}]
  %s1 = sld [smem:[%s0]]
  %s2 = scalar_lea.smem %s0, 1
  %s3 = sld [smem:[%s2]]
  %s4 = scalar_lea.smem %s0, 2
  %s5 = sld [smem:[%s4]]
  %s6 = scalar_lea.smem %s0, 3
  %s7 = sld [smem:[%s6]]
  %s8 = scalar_lea.smem %s0, 4
  %s9 = sld [smem:[%s8]]
  %s10 = scalar_lea.smem %s0, 5
  %s11 = sld [smem:[%s10]]
  %s12 = scalar_lea.smem %s0, 6
  %s13 = sld [smem:[%s12]]
  %s14 = scalar_lea.smem %s0, 7
  %s15 = sld [smem:[%s14]]
  %s16 = scalar_lea.smem %s0, 8
  %s17 = sld [smem:[%s16]]
  %s18 = scalar_lea.smem %s0, 9
  %s19 = sld [smem:[%s18]]
  %s20 = scalar_lea.smem %s0, 10
  %s21 = sld [smem:[%s20]]
  %s22 = scalar_lea.smem %s0, 11
  %s23 = sld [smem:[%s22]]
  %s24 = scalar_lea.smem %s0, 12
  %s25 = sld [smem:[%s24]]
  %s26 = scalar_lea.smem %s0, 13
  %s27 = sld [smem:[%s26]]
  %s28 = scalar_lea.smem %s0, 14
  %s29 = sld [smem:[%s28]]
  %s30 = scalar_lea.smem %s0, 15
  %s31 = sld [smem:[%s30]]
  %s32 = scalar_lea.smem %s0, 16
  %s33 = sld [smem:[%s32]]
  %s34 = scalar_lea.smem %s0, 17
  %s35 = sld [smem:[%s34]]
  %s36 = scalar_lea.smem %s0, 18
  %s37 = sld [smem:[%s36]]
  %s38 = scalar_lea.smem %s0, 19
  %s39 = sld [smem:[%s38]]
  %s40 = scalar_lea.smem %s0, 20
  %s41 = sld [smem:[%s40]]
  %s42 = scalar_lea.smem %s0, 21
  %s43 = sld [smem:[%s42]]
  %s44 = scalar_lea.smem %s0, 22
  %s45 = sld [smem:[%s44]]
  %s46 = scalar_lea.smem %s0, 23
  %s47 = sld [smem:[%s46]]
  %s48 = scalar_lea.smem %s0, 24
  %s49 = sld [smem:[%s48]]
  %s50 = scalar_lea.smem %s0, 25
  %s51 = sld [smem:[%s50]]
  %s52 = scalar_lea.smem %s0, 26
  %s53 = sld [smem:[%s52]]
  %s54 = scalar_lea.smem %s0, 27
  %s55 = sld [smem:[%s54]]
  %s56 = scalar_lea.smem %s0, 28
  %s57 = sld [smem:[%s56]]
  %s58 = scalar_lea.smem %s0, 29
  %s59 = sld [smem:[%s58]]
  %s60 = scalar_lea.smem %s0, 30
  %s61 = sld [smem:[%s60]]
  %s62 = scalar_lea.smem %s0, 31
  %s63 = sld [smem:[%s62]]
  %s64 = scalar_lea.smem %s0, 32
  %s65 = sld [smem:[%s64]]
  %s66 = scalar_lea.smem %s0, 33
  %s67 = sld [smem:[%s66]]
  %s68 = scalar_lea.smem %s0, 34
  %s69 = sld [smem:[%s68]]
  %s70 = scalar_lea.smem %s0, 35
  %s71 = sld [smem:[%s70]]
  %s72 = scalar_lea.smem %s0, 36
  %s73 = sld [smem:[%s72]]
  %s74 = scalar_lea.smem %s0, 37
  %s75 = sld [smem:[%s74]]
  %s76 = sld [smem:[#allocation0]]
  $region158: #{transformer_forward.1} parent=0
    _
  %s78 = ssub.s32 1, %s76
  %s79 = scalar_select 0, %s78, %s76
  $region1: #{transformer_forward.1} parent=0
    #allocation2 [shape = 'u8[1024]{0}', space=vmem, size = 0x400, scoped, tag = 'output window, operand 0, single buffered']
    #allocation3 [shape = 's32[1]{0}', space=sflag, size = 0x4, scoped, tag = 'scoped memory for transformer_forward.1']
    %80 = vsyncpa [#allocation3], 0
    // Predicated region
    $region2: #{transformer_forward.1} parent=1 // pred_check
      _
    $region3: #{transformer_forward.1} parent=1 // pred_check_branch
      %82 = sbr.rel (0) target = $region5
    $region4: #{transformer_forward.1} parent=1 // pred_region
      _
    $region5: #{transformer_forward.1} parent=1 // pred_fallthru
      _
    // Predicated region
    $region6: #{transformer_forward.1} parent=1 // pred_check
      _
    $region7: #{transformer_forward.1} parent=1 // pred_check_branch
      %84 = sbr.rel (0) target = $region9
    $region8: #{transformer_forward.1} parent=1 // pred_region
      _
    $region9: #{transformer_forward.1} parent=1 // pred_fallthru
      _
    // Predicated region
    $region10: #{transformer_forward.1} parent=1 // pred_check
      _
    $region11: #{transformer_forward.1} parent=1 // pred_check_branch
      %86 = sbr.rel (0) target = $region13
    $region12: #{transformer_forward.1} parent=1 // pred_region
      _
    $region13: #{transformer_forward.1} parent=1 // pred_fallthru
      _
    // Predicated region
    $region14: #{transformer_forward.1} parent=1 // pred_check
      _
    $region15: #{transformer_forward.1} parent=1 // pred_check_branch
      %88 = sbr.rel (0) target = $region17
    $region16: #{transformer_forward.1} parent=1 // pred_region
      _
    $region17: #{transformer_forward.1} parent=1 // pred_fallthru
      _
    // Predicated region
    $region18: #{transformer_forward.1} parent=1 // pred_check
      _
    $region19: #{transformer_forward.1} parent=1 // pred_check_branch
      %90 = sbr.rel (0) target = $region21
    $region20: #{transformer_forward.1} parent=1 // pred_region
      _
    $region21: #{transformer_forward.1} parent=1 // pred_fallthru
      _
    // Predicated region
    $region22: #{transformer_forward.1} parent=1 // pred_check
      _
    $region23: #{transformer_forward.1} parent=1 // pred_check_branch
      %92 = sbr.rel (0) target = $region25
    $region24: #{transformer_forward.1} parent=1 // pred_region
      _
    $region25: #{transformer_forward.1} parent=1 // pred_fallthru
      _
    // Predicated region
    $region26: #{transformer_forward.1} parent=1 // pred_check
      _
    $region27: #{transformer_forward.1} parent=1 // pred_check_branch
      %94 = sbr.rel (0) target = $region29
    $region28: #{transformer_forward.1} parent=1 // pred_region
      _
    $region29: #{transformer_forward.1} parent=1 // pred_fallthru
      _
    // Predicated region
    $region30: #{transformer_forward.1} parent=1 // pred_check
      _
    $region31: #{transformer_forward.1} parent=1 // pred_check_branch
      %96 = sbr.rel (0) target = $region33
    $region32: #{transformer_forward.1} parent=1 // pred_region
      _
    $region33: #{transformer_forward.1} parent=1 // pred_fallthru
      _
    // Predicated region
    $region34: #{transformer_forward.1} parent=1 // pred_check
      _
    $region35: #{transformer_forward.1} parent=1 // pred_check_branch
      %98 = sbr.rel (0) target = $region37
    $region36: #{transformer_forward.1} parent=1 // pred_region
      _
    $region37: #{transformer_forward.1} parent=1 // pred_fallthru
      _
    // Predicated region
    $region38: #{transformer_forward.1} parent=1 // pred_check
      _
    $region39: #{transformer_forward.1} parent=1 // pred_check_branch
      %100 = sbr.rel (0) target = $region41
    $region40: #{transformer_forward.1} parent=1 // pred_region
      _
    $region41: #{transformer_forward.1} parent=1 // pred_fallthru
      _
    // Predicated region
    $region42: #{transformer_forward.1} parent=1 // pred_check
      _
    $region43: #{transformer_forward.1} parent=1 // pred_check_branch
      %102 = sbr.rel (0) target = $region45
    $region44: #{transformer_forward.1} parent=1 // pred_region
      _
    $region45: #{transformer_forward.1} parent=1 // pred_fallthru
      _
    // Predicated region
    $region46: #{transformer_forward.1} parent=1 // pred_check
      _
    $region47: #{transformer_forward.1} parent=1 // pred_check_branch
      %104 = sbr.rel (0) target = $region49
    $region48: #{transformer_forward.1} parent=1 // pred_region
      _
    $region49: #{transformer_forward.1} parent=1 // pred_fallthru
      _
    // Predicated region
    $region50: #{transformer_forward.1} parent=1 // pred_check
      _
    $region51: #{transformer_forward.1} parent=1 // pred_check_branch
      %106 = sbr.rel (0) target = $region53
    $region52: #{transformer_forward.1} parent=1 // pred_region
      _
    $region53: #{transformer_forward.1} parent=1 // pred_fallthru
      _
    // Predicated region
    $region54: #{transformer_forward.1} parent=1 // pred_check
      _
    $region55: #{transformer_forward.1} parent=1 // pred_check_branch
      %108 = sbr.rel (0) target = $region57
    $region56: #{transformer_forward.1} parent=1 // pred_region
      _
    $region57: #{transformer_forward.1} parent=1 // pred_fallthru
      _
    // Predicated region
    $region58: #{transformer_forward.1} parent=1 // pred_check
      _
    $region59: #{transformer_forward.1} parent=1 // pred_check_branch
      %110 = sbr.rel (0) target = $region61
    $region60: #{transformer_forward.1} parent=1 // pred_region
      _
    $region61: #{transformer_forward.1} parent=1 // pred_fallthru
      _
    // Predicated region
    $region62: #{transformer_forward.1} parent=1 // pred_check
      _
    $region63: #{transformer_forward.1} parent=1 // pred_check_branch
      %112 = sbr.rel (0) target = $region65
    $region64: #{transformer_forward.1} parent=1 // pred_region
      _
    $region65: #{transformer_forward.1} parent=1 // pred_fallthru
      _
    // Predicated region
    $region66: #{transformer_forward.1} parent=1 // pred_check
      _
    $region67: #{transformer_forward.1} parent=1 // pred_check_branch
      %114 = sbr.rel (0) target = $region69
    $region68: #{transformer_forward.1} parent=1 // pred_region
      _
    $region69: #{transformer_forward.1} parent=1 // pred_fallthru
      _
    // Predicated region
    $region70: #{transformer_forward.1} parent=1 // pred_check
      _
    $region71: #{transformer_forward.1} parent=1 // pred_check_branch
      %116 = sbr.rel (0) target = $region73
    $region72: #{transformer_forward.1} parent=1 // pred_region
      _
    $region73: #{transformer_forward.1} parent=1 // pred_fallthru
      _
    // Predicated region
    $region74: #{transformer_forward.1} parent=1 // pred_check
      _
    $region75: #{transformer_forward.1} parent=1 // pred_check_branch
      %118 = sbr.rel (0) target = $region77
    $region76: #{transformer_forward.1} parent=1 // pred_region
      _
    $region77: #{transformer_forward.1} parent=1 // pred_fallthru
      _
    // Predicated region
    $region78: #{transformer_forward.1} parent=1 // pred_check
      _
    $region79: #{transformer_forward.1} parent=1 // pred_check_branch
      %120 = sbr.rel (0) target = $region81
    $region80: #{transformer_forward.1} parent=1 // pred_region
      _
    $region81: #{transformer_forward.1} parent=1 // pred_fallthru
      _
    // Predicated region
    $region82: #{transformer_forward.1} parent=1 // pred_check
      _
    $region83: #{transformer_forward.1} parent=1 // pred_check_branch
      %122 = sbr.rel (0) target = $region85
    $region84: #{transformer_forward.1} parent=1 // pred_region
      _
    $region85: #{transformer_forward.1} parent=1 // pred_fallthru
      _
    // Predicated region
    $region86: #{transformer_forward.1} parent=1 // pred_check
      _
    $region87: #{transformer_forward.1} parent=1 // pred_check_branch
      %124 = sbr.rel (0) target = $region89
    $region88: #{transformer_forward.1} parent=1 // pred_region
      _
    $region89: #{transformer_forward.1} parent=1 // pred_fallthru
      _
    // Predicated region
    $region90: #{transformer_forward.1} parent=1 // pred_check
      _
    $region91: #{transformer_forward.1} parent=1 // pred_check_branch
      %126 = sbr.rel (0) target = $region93
    $region92: #{transformer_forward.1} parent=1 // pred_region
      _
    $region93: #{transformer_forward.1} parent=1 // pred_fallthru
      _
    // Predicated region
    $region94: #{transformer_forward.1} parent=1 // pred_check
      _
    $region95: #{transformer_forward.1} parent=1 // pred_check_branch
      %128 = sbr.rel (0) target = $region97
    $region96: #{transformer_forward.1} parent=1 // pred_region
      _
    $region97: #{transformer_forward.1} parent=1 // pred_fallthru
      _
    // Predicated region
    $region98: #{transformer_forward.1} parent=1 // pred_check
      _
    $region99: #{transformer_forward.1} parent=1 // pred_check_branch
      %130 = sbr.rel (0) target = $region101
    $region100: #{transformer_forward.1} parent=1 // pred_region
      _
    $region101: #{transformer_forward.1} parent=1 // pred_fallthru
      _
    // Predicated region
    $region102: #{transformer_forward.1} parent=1 // pred_check
      _
    $region103: #{transformer_forward.1} parent=1 // pred_check_branch
      %132 = sbr.rel (0) target = $region105
    $region104: #{transformer_forward.1} parent=1 // pred_region
      _
    $region105: #{transformer_forward.1} parent=1 // pred_fallthru
      _
    // Predicated region
    $region106: #{transformer_forward.1} parent=1 // pred_check
      _
    $region107: #{transformer_forward.1} parent=1 // pred_check_branch
      %134 = sbr.rel (0) target = $region109
    $region108: #{transformer_forward.1} parent=1 // pred_region
      _
    $region109: #{transformer_forward.1} parent=1 // pred_fallthru
      _
    // Predicated region
    $region110: #{transformer_forward.1} parent=1 // pred_check
      _
    $region111: #{transformer_forward.1} parent=1 // pred_check_branch
      %136 = sbr.rel (0) target = $region113
    $region112: #{transformer_forward.1} parent=1 // pred_region
      _
    $region113: #{transformer_forward.1} parent=1 // pred_fallthru
      _
    // Predicated region
    $region114: #{transformer_forward.1} parent=1 // pred_check
      _
    $region115: #{transformer_forward.1} parent=1 // pred_check_branch
      %138 = sbr.rel (0) target = $region117
    $region116: #{transformer_forward.1} parent=1 // pred_region
      _
    $region117: #{transformer_forward.1} parent=1 // pred_fallthru
      _
    // Predicated region
    $region118: #{transformer_forward.1} parent=1 // pred_check
      _
    $region119: #{transformer_forward.1} parent=1 // pred_check_branch
      %140 = sbr.rel (0) target = $region121
    $region120: #{transformer_forward.1} parent=1 // pred_region
      _
    $region121: #{transformer_forward.1} parent=1 // pred_fallthru
      _
    // Predicated region
    $region122: #{transformer_forward.1} parent=1 // pred_check
      _
    $region123: #{transformer_forward.1} parent=1 // pred_check_branch
      %142 = sbr.rel (0) target = $region125
    $region124: #{transformer_forward.1} parent=1 // pred_region
      _
    $region125: #{transformer_forward.1} parent=1 // pred_fallthru
      _
    // Predicated region
    $region126: #{transformer_forward.1} parent=1 // pred_check
      _
    $region127: #{transformer_forward.1} parent=1 // pred_check_branch
      %144 = sbr.rel (0) target = $region129
    $region128: #{transformer_forward.1} parent=1 // pred_region
      _
    $region129: #{transformer_forward.1} parent=1 // pred_fallthru
      _
    // Predicated region
    $region130: #{transformer_forward.1} parent=1 // pred_check
      _
    $region131: #{transformer_forward.1} parent=1 // pred_check_branch
      %146 = sbr.rel (0) target = $region133
    $region132: #{transformer_forward.1} parent=1 // pred_region
      _
    $region133: #{transformer_forward.1} parent=1 // pred_fallthru
      _
    // Predicated region
    $region134: #{transformer_forward.1} parent=1 // pred_check
      _
    $region135: #{transformer_forward.1} parent=1 // pred_check_branch
      %148 = sbr.rel (0) target = $region137
    $region136: #{transformer_forward.1} parent=1 // pred_region
      _
    $region137: #{transformer_forward.1} parent=1 // pred_fallthru
      _
    // Predicated region
    $region138: #{transformer_forward.1} parent=1 // pred_check
      _
    $region139: #{transformer_forward.1} parent=1 // pred_check_branch
      %150 = sbr.rel (0) target = $region141
    $region140: #{transformer_forward.1} parent=1 // pred_region
      _
    $region141: #{transformer_forward.1} parent=1 // pred_fallthru
      _
    // Predicated region
    $region142: #{transformer_forward.1} parent=1 // pred_check
      _
    $region143: #{transformer_forward.1} parent=1 // pred_check_branch
      %152 = sbr.rel (0) target = $region145
    $region144: #{transformer_forward.1} parent=1 // pred_region
      _
    $region145: #{transformer_forward.1} parent=1 // pred_fallthru
      _
    // Predicated region
    $region146: #{transformer_forward.1} parent=1 // pred_check
      _
    $region147: #{transformer_forward.1} parent=1 // pred_check_branch
      %154 = sbr.rel (0) target = $region149
    $region148: #{transformer_forward.1} parent=1 // pred_region
      _
    $region149: #{transformer_forward.1} parent=1 // pred_fallthru
      _
    %v155 = vld [vmem:[%s1] sm:$0xff]
    %v156 = vld [vmem:[%s1 + $0x8] sm:$0xff]
    %v157 = vld [vmem:[%s7] sm:$0xff]
    %v158 = vld [vmem:[%s7 + $0x8] sm:$0xff]
    %v159 = vld [vmem:[%s9] sm:$0x1]
    %v161 = vlaneseq
    %v162 = vshrl.u32 %v161, 7
    %v163 = vsub.s32 0, %v162
    %v164 = vrot.slane %v159, %v163
    %vm166 = vcmask 130048
    %v168 = vsel %vm166, %v155, 0
    %v171 = vsel %vm166, %v156, 0
    %173 = vmatprep.subr.mxu0 0.0
    %174 = vmatpush1.msra.mxu0 %v157
    %175 = vmatprep.subr.mxu0 0.0
    %176 = vmatpush1.msra.mxu0 %v158
    %177 = vmatprep.subr.mxu0 0.0
    %178 = vmatpush1.msra.mxu0 0.0
    %179 = vmatprep.subr.mxu0 0.0
    %180 = vmatpush1.msra.mxu0 0.0
    %181 = vmatprep.subr.mxu0 0.0
    %182 = vmatpush1.msra.mxu0 0.0
    %183 = vmatprep.subr.mxu0 0.0
    %184 = vmatpush1.msra.mxu0 0.0
    %185 = vmatprep.subr.mxu0 0.0
    %186 = vmatpush1.msra.mxu0 0.0
    %187 = vmatprep.subr.mxu0 0.0
    %188 = vmatpush1.msra.mxu0 0.0
    %189 = vmatprep.subr.mxu0 0.0
    %190 = vmatpush1.msra.mxu0 0.0
    %191 = vmatprep.subr.mxu0 0.0
    %192 = vmatpush1.msra.mxu0 0.0
    %193 = vmatprep.subr.mxu0 0.0
    %194 = vmatpush1.msra.mxu0 0.0
    %195 = vmatprep.subr.mxu0 0.0
    %196 = vmatpush1.msra.mxu0 0.0
    %197 = vmatprep.subr.mxu0 0.0
    %198 = vmatpush1.msra.mxu0 0.0
    %199 = vmatprep.subr.mxu0 0.0
    %200 = vmatpush1.msra.mxu0 0.0
    %201 = vmatprep.subr.mxu0 0.0
    %202 = vmatpush1.msra.mxu0 0.0
    %203 = vmatprep.subr.mxu0 0.0
    %204 = vmatpush1.msra.mxu0 0.0
    %205 = vmatprep.subr.mxu0 0.0
    %206 = vmatpush1.msra.mxu0 0.0
    %207 = vmatprep.subr.mxu0 0.0
    %208 = vmatpush1.msra.mxu0 0.0
    %209 = vmatprep.subr.mxu0 0.0
    %210 = vmatpush1.msra.mxu0 0.0
    %211 = vmatprep.subr.mxu0 0.0
    %212 = vmatpush1.msra.mxu0 0.0
    %213 = vmatprep.subr.mxu0 0.0
    %214 = vmatpush1.msra.mxu0 0.0
    %215 = vmatprep.subr.mxu0 0.0
    %216 = vmatpush1.msra.mxu0 0.0
    %217 = vmatprep.subr.mxu0 0.0
    %218 = vmatpush1.msra.mxu0 0.0
    %219 = vmatprep.subr.mxu0 0.0
    %220 = vmatpush1.msra.mxu0 0.0
    %221 = vmatprep.subr.mxu0 0.0
    %222 = vmatpush1.msra.mxu0 0.0
    %223 = vmatprep.subr.mxu0 0.0
    %224 = vmatpush1.msra.mxu0 0.0
    %225 = vmatprep.subr.mxu0 0.0
    %226 = vmatpush1.msra.mxu0 0.0
    %227 = vmatprep.subr.mxu0 0.0
    %228 = vmatpush1.msra.mxu0 0.0
    %229 = vmatprep.subr.mxu0 0.0
    %230 = vmatpush1.msra.mxu0 0.0
    %231 = vmatprep.subr.mxu0 0.0
    %232 = vmatpush1.msra.mxu0 0.0
    %233 = vmatprep.subr.mxu0 0.0
    %234 = vmatpush1.msra.mxu0 0.0
    %235 = vmatprep.subr.mxu0 0.0
    %236 = vmatpush1.msra.mxu0 0.0
    %237 = vmatprep.mubr.f32.mxu0 0.0
    %238 = vmatmul.mubr.f32.gmra.mrb[0].mxu0 %v168
    %v239 = vpop.f32.mrb[0].mxu0
    %v240 = vadd.f32 %v164, %v239
    %v241 = vpop.f32.mrb[0].mxu0
    %242 = vmatprep.mubr.f32.mxu0 0.0
    %243 = vmatmul.mubr.f32.gmra.mrb[0].mxu0 %v171
    %v244 = vpop.f32.mrb[0].mxu0
    %v245 = vadd.f32 %v164, %v244
    %v246 = vpop.f32.mrb[0].mxu0
    %247 = vdwg.mxu0
    %v248 = vld [vmem:[%s11] sm:$0x1]
    %v249 = vld [vmem:[%s13] sm:$0x1]
    %v250 = vsel %vm166, %v240, 0.0
    %251 = vadd.xlane.f32.xlu0 %v250
    %v252 = vpop.xlane.xlu0 %251
    %v253 = vsel %vm166, %v245, 0.0
    %254 = vadd.xlane.f32.xlu0 %v253
    %v255 = vpop.xlane.xlu0 %254
    %v256 = vrcp.pop 16.0
    %v257 = vmul.f32 %v252, %v256
    %v258 = vmul.f32 %v255, %v256
    %v259 = vsub.f32 %v240, %v257
    %v260 = vsub.f32 %v245, %v258
    %v261 = vmul.f32 %v259, %v259
    %v262 = vmul.f32 %v260, %v260
    %v263 = vsel %vm166, %v261, 0.0
    %264 = vadd.xlane.f32.xlu0 %v263
    %v265 = vpop.xlane.xlu0 %264
    %v266 = vsel %vm166, %v262, 0.0
    %267 = vadd.xlane.f32.xlu0 %v266
    %v268 = vpop.xlane.xlu0 %267
    %v269 = vmul.f32 %v265, %v256
    %v270 = vmul.f32 %v268, %v256
    %v271 = vadd.f32 %v269, 1e-05
    %v272 = vadd.f32 %v270, 1e-05
    %v273 = vrsqrt.pop %v271
    %v274 = vrsqrt.pop %v272
    %v275 = vmul.f32 %v259, %v273
    %v276 = vmul.f32 %v260, %v274
    %v278 = vlaneseq
    %v279 = vshrl.u32 %v278, 7
    %v280 = vsub.s32 0, %v279
    %v281 = vrot.slane %v248, %v280
    %v283 = vmul.f32 %v275, %v281
    %v284 = vmul.f32 %v276, %v281
    %v286 = vlaneseq
    %v287 = vshrl.u32 %v286, 7
    %v288 = vsub.s32 0, %v287
    %v289 = vrot.slane %v249, %v288
    %v291 = vadd.f32 %v283, %v289
    %v292 = vadd.f32 %v284, %v289
    %v293 = vld [vmem:[%s3] sm:$0xff]
    %v294 = vld [vmem:[%s3 + $0x8] sm:$0xff]
    %v295 = vld [vmem:[%s15] sm:$0xff]
    %v296 = vld [vmem:[%s17] sm:$0x1]
    %v298 = vlaneseq
    %v299 = vshrl.u32 %v298, 7
    %v300 = vsub.s32 0, %v299
    %v301 = vrot.slane %v296, %v300
    %vm303 = vcmask 64512
    %v305 = vsel %vm303, %v293, 0
    %v308 = vsel %vm303, %v294, 0
    %310 = vmatprep.subr.mxu0 0.0
    %311 = vmatpush1.msra.mxu0 %v295
    %312 = vmatprep.subr.mxu0 0.0
    %313 = vmatpush1.msra.mxu0 0.0
    %314 = vmatprep.subr.mxu0 0.0
    %315 = vmatpush1.msra.mxu0 0.0
    %316 = vmatprep.subr.mxu0 0.0
    %317 = vmatpush1.msra.mxu0 0.0
    %318 = vmatprep.subr.mxu0 0.0
    %319 = vmatpush1.msra.mxu0 0.0
    %320 = vmatprep.subr.mxu0 0.0
    %321 = vmatpush1.msra.mxu0 0.0
    %322 = vmatprep.subr.mxu0 0.0
    %323 = vmatpush1.msra.mxu0 0.0
    %324 = vmatprep.subr.mxu0 0.0
    %325 = vmatpush1.msra.mxu0 0.0
    %326 = vmatprep.subr.mxu0 0.0
    %327 = vmatpush1.msra.mxu0 0.0
    %328 = vmatprep.subr.mxu0 0.0
    %329 = vmatpush1.msra.mxu0 0.0
    %330 = vmatprep.subr.mxu0 0.0
    %331 = vmatpush1.msra.mxu0 0.0
    %332 = vmatprep.subr.mxu0 0.0
    %333 = vmatpush1.msra.mxu0 0.0
    %334 = vmatprep.subr.mxu0 0.0
    %335 = vmatpush1.msra.mxu0 0.0
    %336 = vmatprep.subr.mxu0 0.0
    %337 = vmatpush1.msra.mxu0 0.0
    %338 = vmatprep.subr.mxu0 0.0
    %339 = vmatpush1.msra.mxu0 0.0
    %340 = vmatprep.subr.mxu0 0.0
    %341 = vmatpush1.msra.mxu0 0.0
    %342 = vmatprep.subr.mxu0 0.0
    %343 = vmatpush1.msra.mxu0 0.0
    %344 = vmatprep.subr.mxu0 0.0
    %345 = vmatpush1.msra.mxu0 0.0
    %346 = vmatprep.subr.mxu0 0.0
    %347 = vmatpush1.msra.mxu0 0.0
    %348 = vmatprep.subr.mxu0 0.0
    %349 = vmatpush1.msra.mxu0 0.0
    %350 = vmatprep.subr.mxu0 0.0
    %351 = vmatpush1.msra.mxu0 0.0
    %352 = vmatprep.subr.mxu0 0.0
    %353 = vmatpush1.msra.mxu0 0.0
    %354 = vmatprep.subr.mxu0 0.0
    %355 = vmatpush1.msra.mxu0 0.0
    %356 = vmatprep.subr.mxu0 0.0
    %357 = vmatpush1.msra.mxu0 0.0
    %358 = vmatprep.subr.mxu0 0.0
    %359 = vmatpush1.msra.mxu0 0.0
    %360 = vmatprep.subr.mxu0 0.0
    %361 = vmatpush1.msra.mxu0 0.0
    %362 = vmatprep.subr.mxu0 0.0
    %363 = vmatpush1.msra.mxu0 0.0
    %364 = vmatprep.subr.mxu0 0.0
    %365 = vmatpush1.msra.mxu0 0.0
    %366 = vmatprep.subr.mxu0 0.0
    %367 = vmatpush1.msra.mxu0 0.0
    %368 = vmatprep.subr.mxu0 0.0
    %369 = vmatpush1.msra.mxu0 0.0
    %370 = vmatprep.subr.mxu0 0.0
    %371 = vmatpush1.msra.mxu0 0.0
    %372 = vmatprep.subr.mxu0 0.0
    %373 = vmatpush1.msra.mxu0 0.0
    %374 = vmatprep.mubr.f32.mxu0 0.0
    %375 = vmatmul.mubr.f32.gmra.mrb[0].mxu0 %v305
    %v376 = vpop.f32.mrb[0].mxu0
    %v377 = vadd.f32 %v301, %v376
    %v378 = vpop.f32.mrb[0].mxu0
    %379 = vmatprep.mubr.f32.mxu0 0.0
    %380 = vmatmul.mubr.f32.gmra.mrb[0].mxu0 %v308
    %v381 = vpop.f32.mrb[0].mxu0
    %v382 = vadd.f32 %v301, %v381
    %v383 = vpop.f32.mrb[0].mxu0
    %384 = vdwg.mxu0
    %v385 = vld [vmem:[%s19] sm:$0x1]
    %v386 = vld [vmem:[%s21] sm:$0x1]
    %v387 = vsel %vm166, %v377, 0.0
    %388 = vadd.xlane.f32.xlu0 %v387
    %v389 = vpop.xlane.xlu0 %388
    %v390 = vsel %vm166, %v382, 0.0
    %391 = vadd.xlane.f32.xlu0 %v390
    %v392 = vpop.xlane.xlu0 %391
    %v393 = vmul.f32 %v389, %v256
    %v394 = vmul.f32 %v392, %v256
    %v395 = vsub.f32 %v377, %v393
    %v396 = vsub.f32 %v382, %v394
    %v397 = vmul.f32 %v395, %v395
    %v398 = vmul.f32 %v396, %v396
    %v399 = vsel %vm166, %v397, 0.0
    %400 = vadd.xlane.f32.xlu0 %v399
    %v401 = vpop.xlane.xlu0 %400
    %v402 = vsel %vm166, %v398, 0.0
    %403 = vadd.xlane.f32.xlu0 %v402
    %v404 = vpop.xlane.xlu0 %403
    %v405 = vmul.f32 %v401, %v256
    %v406 = vmul.f32 %v404, %v256
    %v407 = vadd.f32 %v405, 1e-05
    %v408 = vadd.f32 %v406, 1e-05
    %v409 = vrsqrt.pop %v407
    %v410 = vrsqrt.pop %v408
    %v411 = vmul.f32 %v395, %v409
    %v412 = vmul.f32 %v396, %v410
    %v414 = vlaneseq
    %v415 = vshrl.u32 %v414, 7
    %v416 = vsub.s32 0, %v415
    %v417 = vrot.slane %v385, %v416
    %v419 = vmul.f32 %v411, %v417
    %v420 = vmul.f32 %v412, %v417
    %v422 = vlaneseq
    %v423 = vshrl.u32 %v422, 7
    %v424 = vsub.s32 0, %v423
    %v425 = vrot.slane %v386, %v424
    %v427 = vadd.f32 %v419, %v425
    %v428 = vadd.f32 %v420, %v425
    %431 = vrot.lane.b32.xlu0 %v427, 16
    %v432 = vpop.permute.xlu0 %431
    %433 = vrot.lane.b32.xlu0 %v428, 16
    %v434 = vpop.permute.xlu0 %433
    %v437 = vsel %vm166, %v291, %v432
    %v438 = vsel %vm166, %v292, %v434
    %v439 = vld [vmem:[%s5] sm:$0xff]
    %v440 = vld [vmem:[%s5 + $0x8] sm:$0xff]
    %v441 = vld [vmem:[%s5 + $0x10] sm:$0xff]
    %v442 = vld [vmem:[%s5 + $0x18] sm:$0xff]
    %v443 = vld [vmem:[%s23] sm:$0xff]
    %v444 = vld [vmem:[%s23 + $0x8] sm:$0xff]
    %v445 = vld [vmem:[%s23 + $0x10] sm:$0xff]
    %v446 = vld [vmem:[%s23 + $0x18] sm:$0xff]
    %v447 = vld [vmem:[%s25] sm:$0x1]
    %v449 = vlaneseq
    %v450 = vshrl.u32 %v449, 7
    %v451 = vsub.s32 0, %v450
    %v452 = vrot.slane %v447, %v451
    %vm454 = vcmask 261120
    %v456 = vsel %vm454, %v437, 0
    %v459 = vsel %vm454, %v438, 0
    %461 = vmatprep.subr.mxu0 0.0
    %462 = vmatpush1.msra.mxu0 %v443
    %463 = vmatprep.subr.mxu0 0.0
    %464 = vmatpush1.msra.mxu0 %v444
    %465 = vmatprep.subr.mxu0 0.0
    %466 = vmatpush1.msra.mxu0 %v445
    %467 = vmatprep.subr.mxu0 0.0
    %468 = vmatpush1.msra.mxu0 %v446
    %469 = vmatprep.subr.mxu0 0.0
    %470 = vmatpush1.msra.mxu0 0.0
    %471 = vmatprep.subr.mxu0 0.0
    %472 = vmatpush1.msra.mxu0 0.0
    %473 = vmatprep.subr.mxu0 0.0
    %474 = vmatpush1.msra.mxu0 0.0
    %475 = vmatprep.subr.mxu0 0.0
    %476 = vmatpush1.msra.mxu0 0.0
    %477 = vmatprep.subr.mxu0 0.0
    %478 = vmatpush1.msra.mxu0 0.0
    %479 = vmatprep.subr.mxu0 0.0
    %480 = vmatpush1.msra.mxu0 0.0
    %481 = vmatprep.subr.mxu0 0.0
    %482 = vmatpush1.msra.mxu0 0.0
    %483 = vmatprep.subr.mxu0 0.0
    %484 = vmatpush1.msra.mxu0 0.0
    %485 = vmatprep.subr.mxu0 0.0
    %486 = vmatpush1.msra.mxu0 0.0
    %487 = vmatprep.subr.mxu0 0.0
    %488 = vmatpush1.msra.mxu0 0.0
    %489 = vmatprep.subr.mxu0 0.0
    %490 = vmatpush1.msra.mxu0 0.0
    %491 = vmatprep.subr.mxu0 0.0
    %492 = vmatpush1.msra.mxu0 0.0
    %493 = vmatprep.subr.mxu0 0.0
    %494 = vmatpush1.msra.mxu0 0.0
    %495 = vmatprep.subr.mxu0 0.0
    %496 = vmatpush1.msra.mxu0 0.0
    %497 = vmatprep.subr.mxu0 0.0
    %498 = vmatpush1.msra.mxu0 0.0
    %499 = vmatprep.subr.mxu0 0.0
    %500 = vmatpush1.msra.mxu0 0.0
    %501 = vmatprep.subr.mxu0 0.0
    %502 = vmatpush1.msra.mxu0 0.0
    %503 = vmatprep.subr.mxu0 0.0
    %504 = vmatpush1.msra.mxu0 0.0
    %505 = vmatprep.subr.mxu0 0.0
    %506 = vmatpush1.msra.mxu0 0.0
    %507 = vmatprep.subr.mxu0 0.0
    %508 = vmatpush1.msra.mxu0 0.0
    %509 = vmatprep.subr.mxu0 0.0
    %510 = vmatpush1.msra.mxu0 0.0
    %511 = vmatprep.subr.mxu0 0.0
    %512 = vmatpush1.msra.mxu0 0.0
    %513 = vmatprep.subr.mxu0 0.0
    %514 = vmatpush1.msra.mxu0 0.0
    %515 = vmatprep.subr.mxu0 0.0
    %516 = vmatpush1.msra.mxu0 0.0
    %517 = vmatprep.subr.mxu0 0.0
    %518 = vmatpush1.msra.mxu0 0.0
    %519 = vmatprep.subr.mxu0 0.0
    %520 = vmatpush1.msra.mxu0 0.0
    %521 = vmatprep.subr.mxu0 0.0
    %522 = vmatpush1.msra.mxu0 0.0
    %523 = vmatprep.subr.mxu0 0.0
    %524 = vmatpush1.msra.mxu0 0.0
    %525 = vmatprep.mubr.f32.mxu0 0.0
    %526 = vmatmul.mubr.f32.gmra.mrb[0].mxu0 %v456
    %v527 = vpop.f32.mrb[0].mxu0
    %v528 = vadd.f32 %v452, %v527
    %v529 = vpop.f32.mrb[0].mxu0
    %530 = vmatprep.mubr.f32.mxu0 0.0
    %531 = vmatmul.mubr.f32.gmra.mrb[0].mxu0 %v459
    %v532 = vpop.f32.mrb[0].mxu0
    %v533 = vadd.f32 %v452, %v532
    %v534 = vpop.f32.mrb[0].mxu0
    %535 = vdwg.mxu0
    %v536 = vld [vmem:[%s27] sm:$0xff]
    %v537 = vld [vmem:[%s27 + $0x8] sm:$0xff]
    %v538 = vld [vmem:[%s27 + $0x10] sm:$0xff]
    %v539 = vld [vmem:[%s27 + $0x18] sm:$0xff]
    %v540 = vld [vmem:[%s29] sm:$0x1]
    %v542 = vlaneseq
    %v543 = vshrl.u32 %v542, 7
    %v544 = vsub.s32 0, %v543
    %v545 = vrot.slane %v540, %v544
    %547 = vmatprep.subr.mxu0 0.0
    %548 = vmatpush1.msra.mxu0 %v536
    %549 = vmatprep.subr.mxu0 0.0
    %550 = vmatpush1.msra.mxu0 %v537
    %551 = vmatprep.subr.mxu0 0.0
    %552 = vmatpush1.msra.mxu0 %v538
    %553 = vmatprep.subr.mxu0 0.0
    %554 = vmatpush1.msra.mxu0 %v539
    %555 = vmatprep.subr.mxu0 0.0
    %556 = vmatpush1.msra.mxu0 0.0
    %557 = vmatprep.subr.mxu0 0.0
    %558 = vmatpush1.msra.mxu0 0.0
    %559 = vmatprep.subr.mxu0 0.0
    %560 = vmatpush1.msra.mxu0 0.0
    %561 = vmatprep.subr.mxu0 0.0
    %562 = vmatpush1.msra.mxu0 0.0
    %563 = vmatprep.subr.mxu0 0.0
    %564 = vmatpush1.msra.mxu0 0.0
    %565 = vmatprep.subr.mxu0 0.0
    %566 = vmatpush1.msra.mxu0 0.0
    %567 = vmatprep.subr.mxu0 0.0
    %568 = vmatpush1.msra.mxu0 0.0
    %569 = vmatprep.subr.mxu0 0.0
    %570 = vmatpush1.msra.mxu0 0.0
    %571 = vmatprep.subr.mxu0 0.0
    %572 = vmatpush1.msra.mxu0 0.0
    %573 = vmatprep.subr.mxu0 0.0
    %574 = vmatpush1.msra.mxu0 0.0
    %575 = vmatprep.subr.mxu0 0.0
    %576 = vmatpush1.msra.mxu0 0.0
    %577 = vmatprep.subr.mxu0 0.0
    %578 = vmatpush1.msra.mxu0 0.0
    %579 = vmatprep.subr.mxu0 0.0
    %580 = vmatpush1.msra.mxu0 0.0
    %581 = vmatprep.subr.mxu0 0.0
    %582 = vmatpush1.msra.mxu0 0.0
    %583 = vmatprep.subr.mxu0 0.0
    %584 = vmatpush1.msra.mxu0 0.0
    %585 = vmatprep.subr.mxu0 0.0
    %586 = vmatpush1.msra.mxu0 0.0
    %587 = vmatprep.subr.mxu0 0.0
    %588 = vmatpush1.msra.mxu0 0.0
    %589 = vmatprep.subr.mxu0 0.0
    %590 = vmatpush1.msra.mxu0 0.0
    %591 = vmatprep.subr.mxu0 0.0
    %592 = vmatpush1.msra.mxu0 0.0
    %593 = vmatprep.subr.mxu0 0.0
    %594 = vmatpush1.msra.mxu0 0.0
    %595 = vmatprep.subr.mxu0 0.0
    %596 = vmatpush1.msra.mxu0 0.0
    %597 = vmatprep.subr.mxu0 0.0
    %598 = vmatpush1.msra.mxu0 0.0
    %599 = vmatprep.subr.mxu0 0.0
    %600 = vmatpush1.msra.mxu0 0.0
    %601 = vmatprep.subr.mxu0 0.0
    %602 = vmatpush1.msra.mxu0 0.0
    %603 = vmatprep.subr.mxu0 0.0
    %604 = vmatpush1.msra.mxu0 0.0
    %605 = vmatprep.subr.mxu0 0.0
    %606 = vmatpush1.msra.mxu0 0.0
    %607 = vmatprep.subr.mxu0 0.0
    %608 = vmatpush1.msra.mxu0 0.0
    %609 = vmatprep.subr.mxu0 0.0
    %610 = vmatpush1.msra.mxu0 0.0
    %611 = vmatprep.mubr.f32.mxu0 0.0
    %612 = vmatmul.mubr.f32.gmra.mrb[0].mxu0 %v456
    %v613 = vpop.f32.mrb[0].mxu0
    %v614 = vadd.f32 %v545, %v613
    %v615 = vpop.f32.mrb[0].mxu0
    %616 = vmatprep.mubr.f32.mxu0 0.0
    %617 = vmatmul.mubr.f32.gmra.mrb[0].mxu0 %v459
    %v618 = vpop.f32.mrb[0].mxu0
    %v619 = vadd.f32 %v545, %v618
    %v620 = vpop.f32.mrb[0].mxu0
    %621 = vdwg.mxu0
    %v622 = vld [vmem:[%s31] sm:$0xff]
    %v623 = vld [vmem:[%s31 + $0x8] sm:$0xff]
    %v624 = vld [vmem:[%s31 + $0x10] sm:$0xff]
    %v625 = vld [vmem:[%s31 + $0x18] sm:$0xff]
    %v626 = vld [vmem:[%s33] sm:$0x1]
    %v628 = vlaneseq
    %v629 = vshrl.u32 %v628, 7
    %v630 = vsub.s32 0, %v629
    %v631 = vrot.slane %v626, %v630
    %633 = vmatprep.subr.mxu0 0.0
    %634 = vmatpush1.msra.mxu0 %v622
    %635 = vmatprep.subr.mxu0 0.0
    %636 = vmatpush1.msra.mxu0 %v623
    %637 = vmatprep.subr.mxu0 0.0
    %638 = vmatpush1.msra.mxu0 %v624
    %639 = vmatprep.subr.mxu0 0.0
    %640 = vmatpush1.msra.mxu0 %v625
    %641 = vmatprep.subr.mxu0 0.0
    %642 = vmatpush1.msra.mxu0 0.0
    %643 = vmatprep.subr.mxu0 0.0
    %644 = vmatpush1.msra.mxu0 0.0
    %645 = vmatprep.subr.mxu0 0.0
    %646 = vmatpush1.msra.mxu0 0.0
    %647 = vmatprep.subr.mxu0 0.0
    %648 = vmatpush1.msra.mxu0 0.0
    %649 = vmatprep.subr.mxu0 0.0
    %650 = vmatpush1.msra.mxu0 0.0
    %651 = vmatprep.subr.mxu0 0.0
    %652 = vmatpush1.msra.mxu0 0.0
    %653 = vmatprep.subr.mxu0 0.0
    %654 = vmatpush1.msra.mxu0 0.0
    %655 = vmatprep.subr.mxu0 0.0
    %656 = vmatpush1.msra.mxu0 0.0
    %657 = vmatprep.subr.mxu0 0.0
    %658 = vmatpush1.msra.mxu0 0.0
    %659 = vmatprep.subr.mxu0 0.0
    %660 = vmatpush1.msra.mxu0 0.0
    %661 = vmatprep.subr.mxu0 0.0
    %662 = vmatpush1.msra.mxu0 0.0
    %663 = vmatprep.subr.mxu0 0.0
    %664 = vmatpush1.msra.mxu0 0.0
    %665 = vmatprep.subr.mxu0 0.0
    %666 = vmatpush1.msra.mxu0 0.0
    %667 = vmatprep.subr.mxu0 0.0
    %668 = vmatpush1.msra.mxu0 0.0
    %669 = vmatprep.subr.mxu0 0.0
    %670 = vmatpush1.msra.mxu0 0.0
    %671 = vmatprep.subr.mxu0 0.0
    %672 = vmatpush1.msra.mxu0 0.0
    %673 = vmatprep.subr.mxu0 0.0
    %674 = vmatpush1.msra.mxu0 0.0
    %675 = vmatprep.subr.mxu0 0.0
    %676 = vmatpush1.msra.mxu0 0.0
    %677 = vmatprep.subr.mxu0 0.0
    %678 = vmatpush1.msra.mxu0 0.0
    %679 = vmatprep.subr.mxu0 0.0
    %680 = vmatpush1.msra.mxu0 0.0
    %681 = vmatprep.subr.mxu0 0.0
    %682 = vmatpush1.msra.mxu0 0.0
    %683 = vmatprep.subr.mxu0 0.0
    %684 = vmatpush1.msra.mxu0 0.0
    %685 = vmatprep.subr.mxu0 0.0
    %686 = vmatpush1.msra.mxu0 0.0
    %687 = vmatprep.subr.mxu0 0.0
    %688 = vmatpush1.msra.mxu0 0.0
    %689 = vmatprep.subr.mxu0 0.0
    %690 = vmatpush1.msra.mxu0 0.0
    %691 = vmatprep.subr.mxu0 0.0
    %692 = vmatpush1.msra.mxu0 0.0
    %693 = vmatprep.subr.mxu0 0.0
    %694 = vmatpush1.msra.mxu0 0.0
    %695 = vmatprep.subr.mxu0 0.0
    %696 = vmatpush1.msra.mxu0 0.0
    %697 = vmatprep.mubr.f32.mxu0 0.0
    %698 = vmatmul.mubr.f32.gmra.mrb[0].mxu0 %v456
    %v699 = vpop.f32.mrb[0].mxu0
    %v700 = vadd.f32 %v631, %v699
    %v701 = vpop.f32.mrb[0].mxu0
    %702 = vmatprep.mubr.f32.mxu0 0.0
    %703 = vmatmul.mubr.f32.gmra.mrb[0].mxu0 %v459
    %v704 = vpop.f32.mrb[0].mxu0
    %v705 = vadd.f32 %v631, %v704
    %v706 = vpop.f32.mrb[0].mxu0
    %707 = vdwg.mxu0
    %710 = vrot.lane.b32.xlu0 %v528, 112
    %v711 = vpop.permute.xlu0 %710
    %712 = vrot.lane.b32.xlu0 %v533, 112
    %v713 = vpop.permute.xlu0 %712
    %716 = vrot.lane.b32.xlu0 %v614, 112
    %v717 = vpop.permute.xlu0 %716
    %718 = vrot.lane.b32.xlu0 %v619, 112
    %v719 = vpop.permute.xlu0 %718
    %722 = vrot.lane.b32.xlu0 %v700, 112
    %v723 = vpop.permute.xlu0 %722
    %724 = vrot.lane.b32.xlu0 %v705, 112
    %v725 = vpop.permute.xlu0 %724
    %v728 = vsel %vm166, %v528, 0
    %v730 = vsel %vm166, %v614, 0
    %732 = vmatprep.subr.mxu0 0.0
    %733 = vmatpush1.xpose.msra.mxu0 %v730
    %734 = vmatprep.subr.mxu0 0.0
    %735 = vmatpush1.xpose.msra.mxu0 0.0
    %736 = vmatprep.subr.mxu0 0.0
    %737 = vmatpush1.xpose.msra.mxu0 0.0
    %738 = vmatprep.subr.mxu0 0.0
    %739 = vmatpush1.xpose.msra.mxu0 0.0
    %740 = vmatprep.subr.mxu0 0.0
    %741 = vmatpush1.xpose.msra.mxu0 0.0
    %742 = vmatprep.subr.mxu0 0.0
    %743 = vmatpush1.xpose.msra.mxu0 0.0
    %744 = vmatprep.subr.mxu0 0.0
    %745 = vmatpush1.xpose.msra.mxu0 0.0
    %746 = vmatprep.subr.mxu0 0.0
    %747 = vmatpush1.xpose.msra.mxu0 0.0
    %748 = vmatprep.subr.mxu0 0.0
    %749 = vmatpush1.xpose.msra.mxu0 0.0
    %750 = vmatprep.subr.mxu0 0.0
    %751 = vmatpush1.xpose.msra.mxu0 0.0
    %752 = vmatprep.subr.mxu0 0.0
    %753 = vmatpush1.xpose.msra.mxu0 0.0
    %754 = vmatprep.subr.mxu0 0.0
    %755 = vmatpush1.xpose.msra.mxu0 0.0
    %756 = vmatprep.subr.mxu0 0.0
    %757 = vmatpush1.xpose.msra.mxu0 0.0
    %758 = vmatprep.subr.mxu0 0.0
    %759 = vmatpush1.xpose.msra.mxu0 0.0
    %760 = vmatprep.subr.mxu0 0.0
    %761 = vmatpush1.xpose.msra.mxu0 0.0
    %762 = vmatprep.subr.mxu0 0.0
    %763 = vmatpush1.xpose.msra.mxu0 0.0
    %764 = vmatprep.subr.mxu0 0.0
    %765 = vmatpush1.xpose.msra.mxu0 0.0
    %766 = vmatprep.subr.mxu0 0.0
    %767 = vmatpush1.xpose.msra.mxu0 0.0
    %768 = vmatprep.subr.mxu0 0.0
    %769 = vmatpush1.xpose.msra.mxu0 0.0
    %770 = vmatprep.subr.mxu0 0.0
    %771 = vmatpush1.xpose.msra.mxu0 0.0
    %772 = vmatprep.subr.mxu0 0.0
    %773 = vmatpush1.xpose.msra.mxu0 0.0
    %774 = vmatprep.subr.mxu0 0.0
    %775 = vmatpush1.xpose.msra.mxu0 0.0
    %776 = vmatprep.subr.mxu0 0.0
    %777 = vmatpush1.xpose.msra.mxu0 0.0
    %778 = vmatprep.subr.mxu0 0.0
    %779 = vmatpush1.xpose.msra.mxu0 0.0
    %780 = vmatprep.subr.mxu0 0.0
    %781 = vmatpush1.xpose.msra.mxu0 0.0
    %782 = vmatprep.subr.mxu0 0.0
    %783 = vmatpush1.xpose.msra.mxu0 0.0
    %784 = vmatprep.subr.mxu0 0.0
    %785 = vmatpush1.xpose.msra.mxu0 0.0
    %786 = vmatprep.subr.mxu0 0.0
    %787 = vmatpush1.xpose.msra.mxu0 0.0
    %788 = vmatprep.subr.mxu0 0.0
    %789 = vmatpush1.xpose.msra.mxu0 0.0
    %790 = vmatprep.subr.mxu0 0.0
    %791 = vmatpush1.xpose.msra.mxu0 0.0
    %792 = vmatprep.subr.mxu0 0.0
    %793 = vmatpush1.xpose.msra.mxu0 0.0
    %794 = vmatprep.subr.mxu0 0.0
    %795 = vmatpush1.xpose.msra.mxu0 0.0
    %796 = vmatprep.mubr.f32.mxu0 0.0
    %797 = vmatmul.mubr.f32.gmra.mrb[0].mxu0 %v728
    %v798 = vpop.f32.mrb[0].mxu0
    %v799 = vadd.f32 0.0, %v798
    %v800 = vpop.f32.mrb[0].mxu0
    %801 = vdwg.mxu0
    %v802 = vsel %vm166, %v533, 0
    %v804 = vsel %vm166, %v619, 0
    %806 = vmatprep.subr.mxu0 0.0
    %807 = vmatpush1.xpose.msra.mxu0 %v804
    %808 = vmatprep.subr.mxu0 0.0
    %809 = vmatpush1.xpose.msra.mxu0 0.0
    %810 = vmatprep.subr.mxu0 0.0
    %811 = vmatpush1.xpose.msra.mxu0 0.0
    %812 = vmatprep.subr.mxu0 0.0
    %813 = vmatpush1.xpose.msra.mxu0 0.0
    %814 = vmatprep.subr.mxu0 0.0
    %815 = vmatpush1.xpose.msra.mxu0 0.0
    %816 = vmatprep.subr.mxu0 0.0
    %817 = vmatpush1.xpose.msra.mxu0 0.0
    %818 = vmatprep.subr.mxu0 0.0
    %819 = vmatpush1.xpose.msra.mxu0 0.0
    %820 = vmatprep.subr.mxu0 0.0
    %821 = vmatpush1.xpose.msra.mxu0 0.0
    %822 = vmatprep.subr.mxu0 0.0
    %823 = vmatpush1.xpose.msra.mxu0 0.0
    %824 = vmatprep.subr.mxu0 0.0
    %825 = vmatpush1.xpose.msra.mxu0 0.0
    %826 = vmatprep.subr.mxu0 0.0
    %827 = vmatpush1.xpose.msra.mxu0 0.0
    %828 = vmatprep.subr.mxu0 0.0
    %829 = vmatpush1.xpose.msra.mxu0 0.0
    %830 = vmatprep.subr.mxu0 0.0
    %831 = vmatpush1.xpose.msra.mxu0 0.0
    %832 = vmatprep.subr.mxu0 0.0
    %833 = vmatpush1.xpose.msra.mxu0 0.0
    %834 = vmatprep.subr.mxu0 0.0
    %835 = vmatpush1.xpose.msra.mxu0 0.0
    %836 = vmatprep.subr.mxu0 0.0
    %837 = vmatpush1.xpose.msra.mxu0 0.0
    %838 = vmatprep.subr.mxu0 0.0
    %839 = vmatpush1.xpose.msra.mxu0 0.0
    %840 = vmatprep.subr.mxu0 0.0
    %841 = vmatpush1.xpose.msra.mxu0 0.0
    %842 = vmatprep.subr.mxu0 0.0
    %843 = vmatpush1.xpose.msra.mxu0 0.0
    %844 = vmatprep.subr.mxu0 0.0
    %845 = vmatpush1.xpose.msra.mxu0 0.0
    %846 = vmatprep.subr.mxu0 0.0
    %847 = vmatpush1.xpose.msra.mxu0 0.0
    %848 = vmatprep.subr.mxu0 0.0
    %849 = vmatpush1.xpose.msra.mxu0 0.0
    %850 = vmatprep.subr.mxu0 0.0
    %851 = vmatpush1.xpose.msra.mxu0 0.0
    %852 = vmatprep.subr.mxu0 0.0
    %853 = vmatpush1.xpose.msra.mxu0 0.0
    %854 = vmatprep.subr.mxu0 0.0
    %855 = vmatpush1.xpose.msra.mxu0 0.0
    %856 = vmatprep.subr.mxu0 0.0
    %857 = vmatpush1.xpose.msra.mxu0 0.0
    %858 = vmatprep.subr.mxu0 0.0
    %859 = vmatpush1.xpose.msra.mxu0 0.0
    %860 = vmatprep.subr.mxu0 0.0
    %861 = vmatpush1.xpose.msra.mxu0 0.0
    %862 = vmatprep.subr.mxu0 0.0
    %863 = vmatpush1.xpose.msra.mxu0 0.0
    %864 = vmatprep.subr.mxu0 0.0
    %865 = vmatpush1.xpose.msra.mxu0 0.0
    %866 = vmatprep.subr.mxu0 0.0
    %867 = vmatpush1.xpose.msra.mxu0 0.0
    %868 = vmatprep.subr.mxu0 0.0
    %869 = vmatpush1.xpose.msra.mxu0 0.0
    %870 = vmatprep.mubr.f32.mxu0 0.0
    %871 = vmatmul.mubr.f32.gmra.mrb[0].mxu0 %v802
    %v872 = vpop.f32.mrb[0].mxu0
    %v873 = vadd.f32 0.0, %v872
    %v874 = vpop.f32.mrb[0].mxu0
    %875 = vdwg.mxu0
    %v876 = vsel %vm166, %v711, 0
    %v878 = vsel %vm166, %v717, 0
    %880 = vmatprep.subr.mxu0 0.0
    %881 = vmatpush1.xpose.msra.mxu0 %v878
    %882 = vmatprep.subr.mxu0 0.0
    %883 = vmatpush1.xpose.msra.mxu0 0.0
    %884 = vmatprep.subr.mxu0 0.0
    %885 = vmatpush1.xpose.msra.mxu0 0.0
    %886 = vmatprep.subr.mxu0 0.0
    %887 = vmatpush1.xpose.msra.mxu0 0.0
    %888 = vmatprep.subr.mxu0 0.0
    %889 = vmatpush1.xpose.msra.mxu0 0.0
    %890 = vmatprep.subr.mxu0 0.0
    %891 = vmatpush1.xpose.msra.mxu0 0.0
    %892 = vmatprep.subr.mxu0 0.0
    %893 = vmatpush1.xpose.msra.mxu0 0.0
    %894 = vmatprep.subr.mxu0 0.0
    %895 = vmatpush1.xpose.msra.mxu0 0.0
    %896 = vmatprep.subr.mxu0 0.0
    %897 = vmatpush1.xpose.msra.mxu0 0.0
    %898 = vmatprep.subr.mxu0 0.0
    %899 = vmatpush1.xpose.msra.mxu0 0.0
    %900 = vmatprep.subr.mxu0 0.0
    %901 = vmatpush1.xpose.msra.mxu0 0.0
    %902 = vmatprep.subr.mxu0 0.0
    %903 = vmatpush1.xpose.msra.mxu0 0.0
    %904 = vmatprep.subr.mxu0 0.0
    %905 = vmatpush1.xpose.msra.mxu0 0.0
    %906 = vmatprep.subr.mxu0 0.0
    %907 = vmatpush1.xpose.msra.mxu0 0.0
    %908 = vmatprep.subr.mxu0 0.0
    %909 = vmatpush1.xpose.msra.mxu0 0.0
    %910 = vmatprep.subr.mxu0 0.0
    %911 = vmatpush1.xpose.msra.mxu0 0.0
    %912 = vmatprep.subr.mxu0 0.0
    %913 = vmatpush1.xpose.msra.mxu0 0.0
    %914 = vmatprep.subr.mxu0 0.0
    %915 = vmatpush1.xpose.msra.mxu0 0.0
    %916 = vmatprep.subr.mxu0 0.0
    %917 = vmatpush1.xpose.msra.mxu0 0.0
    %918 = vmatprep.subr.mxu0 0.0
    %919 = vmatpush1.xpose.msra.mxu0 0.0
    %920 = vmatprep.subr.mxu0 0.0
    %921 = vmatpush1.xpose.msra.mxu0 0.0
    %922 = vmatprep.subr.mxu0 0.0
    %923 = vmatpush1.xpose.msra.mxu0 0.0
    %924 = vmatprep.subr.mxu0 0.0
    %925 = vmatpush1.xpose.msra.mxu0 0.0
    %926 = vmatprep.subr.mxu0 0.0
    %927 = vmatpush1.xpose.msra.mxu0 0.0
    %928 = vmatprep.subr.mxu0 0.0
    %929 = vmatpush1.xpose.msra.mxu0 0.0
    %930 = vmatprep.subr.mxu0 0.0
    %931 = vmatpush1.xpose.msra.mxu0 0.0
    %932 = vmatprep.subr.mxu0 0.0
    %933 = vmatpush1.xpose.msra.mxu0 0.0
    %934 = vmatprep.subr.mxu0 0.0
    %935 = vmatpush1.xpose.msra.mxu0 0.0
    %936 = vmatprep.subr.mxu0 0.0
    %937 = vmatpush1.xpose.msra.mxu0 0.0
    %938 = vmatprep.subr.mxu0 0.0
    %939 = vmatpush1.xpose.msra.mxu0 0.0
    %940 = vmatprep.subr.mxu0 0.0
    %941 = vmatpush1.xpose.msra.mxu0 0.0
    %942 = vmatprep.subr.mxu0 0.0
    %943 = vmatpush1.xpose.msra.mxu0 0.0
    %944 = vmatprep.mubr.f32.mxu0 0.0
    %945 = vmatmul.mubr.f32.gmra.mrb[0].mxu0 %v876
    %v946 = vpop.f32.mrb[0].mxu0
    %v947 = vadd.f32 0.0, %v946
    %v948 = vpop.f32.mrb[0].mxu0
    %949 = vdwg.mxu0
    %v950 = vsel %vm166, %v713, 0
    %v952 = vsel %vm166, %v719, 0
    %954 = vmatprep.subr.mxu0 0.0
    %955 = vmatpush1.xpose.msra.mxu0 %v952
    %956 = vmatprep.subr.mxu0 0.0
    %957 = vmatpush1.xpose.msra.mxu0 0.0
    %958 = vmatprep.subr.mxu0 0.0
    %959 = vmatpush1.xpose.msra.mxu0 0.0
    %960 = vmatprep.subr.mxu0 0.0
    %961 = vmatpush1.xpose.msra.mxu0 0.0
    %962 = vmatprep.subr.mxu0 0.0
    %963 = vmatpush1.xpose.msra.mxu0 0.0
    %964 = vmatprep.subr.mxu0 0.0
    %965 = vmatpush1.xpose.msra.mxu0 0.0
    %966 = vmatprep.subr.mxu0 0.0
    %967 = vmatpush1.xpose.msra.mxu0 0.0
    %968 = vmatprep.subr.mxu0 0.0
    %969 = vmatpush1.xpose.msra.mxu0 0.0
    %970 = vmatprep.subr.mxu0 0.0
    %971 = vmatpush1.xpose.msra.mxu0 0.0
    %972 = vmatprep.subr.mxu0 0.0
    %973 = vmatpush1.xpose.msra.mxu0 0.0
    %974 = vmatprep.subr.mxu0 0.0
    %975 = vmatpush1.xpose.msra.mxu0 0.0
    %976 = vmatprep.subr.mxu0 0.0
    %977 = vmatpush1.xpose.msra.mxu0 0.0
    %978 = vmatprep.subr.mxu0 0.0
    %979 = vmatpush1.xpose.msra.mxu0 0.0
    %980 = vmatprep.subr.mxu0 0.0
    %981 = vmatpush1.xpose.msra.mxu0 0.0
    %982 = vmatprep.subr.mxu0 0.0
    %983 = vmatpush1.xpose.msra.mxu0 0.0
    %984 = vmatprep.subr.mxu0 0.0
    %985 = vmatpush1.xpose.msra.mxu0 0.0
    %986 = vmatprep.subr.mxu0 0.0
    %987 = vmatpush1.xpose.msra.mxu0 0.0
    %988 = vmatprep.subr.mxu0 0.0
    %989 = vmatpush1.xpose.msra.mxu0 0.0
    %990 = vmatprep.subr.mxu0 0.0
    %991 = vmatpush1.xpose.msra.mxu0 0.0
    %992 = vmatprep.subr.mxu0 0.0
    %993 = vmatpush1.xpose.msra.mxu0 0.0
    %994 = vmatprep.subr.mxu0 0.0
    %995 = vmatpush1.xpose.msra.mxu0 0.0
    %996 = vmatprep.subr.mxu0 0.0
    %997 = vmatpush1.xpose.msra.mxu0 0.0
    %998 = vmatprep.subr.mxu0 0.0
    %999 = vmatpush1.xpose.msra.mxu0 0.0
    %1000 = vmatprep.subr.mxu0 0.0
    %1001 = vmatpush1.xpose.msra.mxu0 0.0
    %1002 = vmatprep.subr.mxu0 0.0
    %1003 = vmatpush1.xpose.msra.mxu0 0.0
    %1004 = vmatprep.subr.mxu0 0.0
    %1005 = vmatpush1.xpose.msra.mxu0 0.0
    %1006 = vmatprep.subr.mxu0 0.0
    %1007 = vmatpush1.xpose.msra.mxu0 0.0
    %1008 = vmatprep.subr.mxu0 0.0
    %1009 = vmatpush1.xpose.msra.mxu0 0.0
    %1010 = vmatprep.subr.mxu0 0.0
    %1011 = vmatpush1.xpose.msra.mxu0 0.0
    %1012 = vmatprep.subr.mxu0 0.0
    %1013 = vmatpush1.xpose.msra.mxu0 0.0
    %1014 = vmatprep.subr.mxu0 0.0
    %1015 = vmatpush1.xpose.msra.mxu0 0.0
    %1016 = vmatprep.subr.mxu0 0.0
    %1017 = vmatpush1.xpose.msra.mxu0 0.0
    %1018 = vmatprep.mubr.f32.mxu0 0.0
    %1019 = vmatmul.mubr.f32.gmra.mrb[0].mxu0 %v950
    %v1020 = vpop.f32.mrb[0].mxu0
    %v1021 = vadd.f32 0.0, %v1020
    %v1022 = vpop.f32.mrb[0].mxu0
    %1023 = vdwg.mxu0
    %v1024 = vmul.f32 %v799, 0.25
    %v1025 = vmul.f32 %v873, 0.25
    %v1026 = vmul.f32 %v947, 0.25
    %v1027 = vmul.f32 %v1021, 0.25
    %v1028 = vadd.f32 %v1024, %v439
    %v1029 = vadd.f32 %v1025, %v440
    %v1030 = vadd.f32 %v1026, %v441
    %v1031 = vadd.f32 %v1027, %v442
    %v1032 = vsel %vm303, %v1028, -inf
    %1033 = vmax.xlane.f32.xlu0 %v1032
    %v1034 = vpop.xlane.xlu0 %1033
    %v1035 = vsel %vm303, %v1029, -inf
    %1036 = vmax.xlane.f32.xlu0 %v1035
    %v1037 = vpop.xlane.xlu0 %1036
    %v1038 = vsel %vm303, %v1030, -inf
    %1039 = vmax.xlane.f32.xlu0 %v1038
    %v1040 = vpop.xlane.xlu0 %1039
    %v1041 = vsel %vm303, %v1031, -inf
    %1042 = vmax.xlane.f32.xlu0 %v1041
    %v1043 = vpop.xlane.xlu0 %1042
    %v1044 = vsub.f32 %v1028, %v1034
    %v1045 = vsub.f32 %v1029, %v1037
    %v1046 = vsub.f32 %v1030, %v1040
    %v1047 = vsub.f32 %v1031, %v1043
    %v1048 = vmul.f32 %v1044, 1.442695
    %v1049 = vpow.pop %v1048
    %v1050 = vmul.f32 %v1045, 1.442695
    %v1051 = vpow.pop %v1050
    %v1052 = vmul.f32 %v1046, 1.442695
    %v1053 = vpow.pop %v1052
    %v1054 = vmul.f32 %v1047, 1.442695
    %v1055 = vpow.pop %v1054
    %v1056 = vsel %vm303, %v1049, 0.0
    %1057 = vadd.xlane.f32.xlu0 %v1056
    %v1058 = vpop.xlane.xlu0 %1057
    %v1059 = vsel %vm303, %v1051, 0.0
    %1060 = vadd.xlane.f32.xlu0 %v1059
    %v1061 = vpop.xlane.xlu0 %1060
    %v1062 = vsel %vm303, %v1053, 0.0
    %1063 = vadd.xlane.f32.xlu0 %v1062
    %v1064 = vpop.xlane.xlu0 %1063
    %v1065 = vsel %vm303, %v1055, 0.0
    %1066 = vadd.xlane.f32.xlu0 %v1065
    %v1067 = vpop.xlane.xlu0 %1066
    %v1068 = vrcp.pop %v1058
    %v1069 = vmul.f32 %v1049, %v1068
    %v1070 = vrcp.pop %v1061
    %v1071 = vmul.f32 %v1051, %v1070
    %v1072 = vrcp.pop %v1064
    %v1073 = vmul.f32 %v1053, %v1072
    %v1074 = vrcp.pop %v1067
    %v1075 = vmul.f32 %v1055, %v1074
    %v1077 = vsel %vm303, %v1069, 0
    %1079 = vmatprep.subr.mxu0 0.0
    %1080 = vmatpush1.msra.mxu0 %v700
    %1081 = vmatprep.subr.mxu0 0.0
    %1082 = vmatpush1.msra.mxu0 0.0
    %1083 = vmatprep.subr.mxu0 0.0
    %1084 = vmatpush1.msra.mxu0 0.0
    %1085 = vmatprep.subr.mxu0 0.0
    %1086 = vmatpush1.msra.mxu0 0.0
    %1087 = vmatprep.subr.mxu0 0.0
    %1088 = vmatpush1.msra.mxu0 0.0
    %1089 = vmatprep.subr.mxu0 0.0
    %1090 = vmatpush1.msra.mxu0 0.0
    %1091 = vmatprep.subr.mxu0 0.0
    %1092 = vmatpush1.msra.mxu0 0.0
    %1093 = vmatprep.subr.mxu0 0.0
    %1094 = vmatpush1.msra.mxu0 0.0
    %1095 = vmatprep.subr.mxu0 0.0
    %1096 = vmatpush1.msra.mxu0 0.0
    %1097 = vmatprep.subr.mxu0 0.0
    %1098 = vmatpush1.msra.mxu0 0.0
    %1099 = vmatprep.subr.mxu0 0.0
    %1100 = vmatpush1.msra.mxu0 0.0
    %1101 = vmatprep.subr.mxu0 0.0
    %1102 = vmatpush1.msra.mxu0 0.0
    %1103 = vmatprep.subr.mxu0 0.0
    %1104 = vmatpush1.msra.mxu0 0.0
    %1105 = vmatprep.subr.mxu0 0.0
    %1106 = vmatpush1.msra.mxu0 0.0
    %1107 = vmatprep.subr.mxu0 0.0
    %1108 = vmatpush1.msra.mxu0 0.0
    %1109 = vmatprep.subr.mxu0 0.0
    %1110 = vmatpush1.msra.mxu0 0.0
    %1111 = vmatprep.subr.mxu0 0.0
    %1112 = vmatpush1.msra.mxu0 0.0
    %1113 = vmatprep.subr.mxu0 0.0
    %1114 = vmatpush1.msra.mxu0 0.0
    %1115 = vmatprep.subr.mxu0 0.0
    %1116 = vmatpush1.msra.mxu0 0.0
    %1117 = vmatprep.subr.mxu0 0.0
    %1118 = vmatpush1.msra.mxu0 0.0
    %1119 = vmatprep.subr.mxu0 0.0
    %1120 = vmatpush1.msra.mxu0 0.0
    %1121 = vmatprep.subr.mxu0 0.0
    %1122 = vmatpush1.msra.mxu0 0.0
    %1123 = vmatprep.subr.mxu0 0.0
    %1124 = vmatpush1.msra.mxu0 0.0
    %1125 = vmatprep.subr.mxu0 0.0
    %1126 = vmatpush1.msra.mxu0 0.0
    %1127 = vmatprep.subr.mxu0 0.0
    %1128 = vmatpush1.msra.mxu0 0.0
    %1129 = vmatprep.subr.mxu0 0.0
    %1130 = vmatpush1.msra.mxu0 0.0
    %1131 = vmatprep.subr.mxu0 0.0
    %1132 = vmatpush1.msra.mxu0 0.0
    %1133 = vmatprep.subr.mxu0 0.0
    %1134 = vmatpush1.msra.mxu0 0.0
    %1135 = vmatprep.subr.mxu0 0.0
    %1136 = vmatpush1.msra.mxu0 0.0
    %1137 = vmatprep.subr.mxu0 0.0
    %1138 = vmatpush1.msra.mxu0 0.0
    %1139 = vmatprep.subr.mxu0 0.0
    %1140 = vmatpush1.msra.mxu0 0.0
    %1141 = vmatprep.subr.mxu0 0.0
    %1142 = vmatpush1.msra.mxu0 0.0
    %1143 = vmatprep.mubr.f32.mxu0 0.0
    %1144 = vmatmul.mubr.f32.gmra.mrb[0].mxu0 %v1077
    %v1145 = vpop.f32.mrb[0].mxu0
    %v1146 = vadd.f32 0.0, %v1145
    %v1147 = vpop.f32.mrb[0].mxu0
    %1148 = vdwg.mxu0
    %v1150 = vsel %vm303, %v1071, 0
    %1152 = vmatprep.subr.mxu0 0.0
    %1153 = vmatpush1.msra.mxu0 %v705
    %1154 = vmatprep.subr.mxu0 0.0
    %1155 = vmatpush1.msra.mxu0 0.0
    %1156 = vmatprep.subr.mxu0 0.0
    %1157 = vmatpush1.msra.mxu0 0.0
    %1158 = vmatprep.subr.mxu0 0.0
    %1159 = vmatpush1.msra.mxu0 0.0
    %1160 = vmatprep.subr.mxu0 0.0
    %1161 = vmatpush1.msra.mxu0 0.0
    %1162 = vmatprep.subr.mxu0 0.0
    %1163 = vmatpush1.msra.mxu0 0.0
    %1164 = vmatprep.subr.mxu0 0.0
    %1165 = vmatpush1.msra.mxu0 0.0
    %1166 = vmatprep.subr.mxu0 0.0
    %1167 = vmatpush1.msra.mxu0 0.0
    %1168 = vmatprep.subr.mxu0 0.0
    %1169 = vmatpush1.msra.mxu0 0.0
    %1170 = vmatprep.subr.mxu0 0.0
    %1171 = vmatpush1.msra.mxu0 0.0
    %1172 = vmatprep.subr.mxu0 0.0
    %1173 = vmatpush1.msra.mxu0 0.0
    %1174 = vmatprep.subr.mxu0 0.0
    %1175 = vmatpush1.msra.mxu0 0.0
    %1176 = vmatprep.subr.mxu0 0.0
    %1177 = vmatpush1.msra.mxu0 0.0
    %1178 = vmatprep.subr.mxu0 0.0
    %1179 = vmatpush1.msra.mxu0 0.0
    %1180 = vmatprep.subr.mxu0 0.0
    %1181 = vmatpush1.msra.mxu0 0.0
    %1182 = vmatprep.subr.mxu0 0.0
    %1183 = vmatpush1.msra.mxu0 0.0
    %1184 = vmatprep.subr.mxu0 0.0
    %1185 = vmatpush1.msra.mxu0 0.0
    %1186 = vmatprep.subr.mxu0 0.0
    %1187 = vmatpush1.msra.mxu0 0.0
    %1188 = vmatprep.subr.mxu0 0.0
    %1189 = vmatpush1.msra.mxu0 0.0
    %1190 = vmatprep.subr.mxu0 0.0
    %1191 = vmatpush1.msra.mxu0 0.0
    %1192 = vmatprep.subr.mxu0 0.0
    %1193 = vmatpush1.msra.mxu0 0.0
    %1194 = vmatprep.subr.mxu0 0.0
    %1195 = vmatpush1.msra.mxu0 0.0
    %1196 = vmatprep.subr.mxu0 0.0
    %1197 = vmatpush1.msra.mxu0 0.0
    %1198 = vmatprep.subr.mxu0 0.0
    %1199 = vmatpush1.msra.mxu0 0.0
    %1200 = vmatprep.subr.mxu0 0.0
    %1201 = vmatpush1.msra.mxu0 0.0
    %1202 = vmatprep.subr.mxu0 0.0
    %1203 = vmatpush1.msra.mxu0 0.0
    %1204 = vmatprep.subr.mxu0 0.0
    %1205 = vmatpush1.msra.mxu0 0.0
    %1206 = vmatprep.subr.mxu0 0.0
    %1207 = vmatpush1.msra.mxu0 0.0
    %1208 = vmatprep.subr.mxu0 0.0
    %1209 = vmatpush1.msra.mxu0 0.0
    %1210 = vmatprep.subr.mxu0 0.0
    %1211 = vmatpush1.msra.mxu0 0.0
    %1212 = vmatprep.subr.mxu0 0.0
    %1213 = vmatpush1.msra.mxu0 0.0
    %1214 = vmatprep.subr.mxu0 0.0
    %1215 = vmatpush1.msra.mxu0 0.0
    %1216 = vmatprep.mubr.f32.mxu0 0.0
    %1217 = vmatmul.mubr.f32.gmra.mrb[0].mxu0 %v1150
    %v1218 = vpop.f32.mrb[0].mxu0
    %v1219 = vadd.f32 0.0, %v1218
    %v1220 = vpop.f32.mrb[0].mxu0
    %1221 = vdwg.mxu0
    %v1223 = vsel %vm303, %v1073, 0
    %1225 = vmatprep.subr.mxu0 0.0
    %1226 = vmatpush1.msra.mxu0 %v723
    %1227 = vmatprep.subr.mxu0 0.0
    %1228 = vmatpush1.msra.mxu0 0.0
    %1229 = vmatprep.subr.mxu0 0.0
    %1230 = vmatpush1.msra.mxu0 0.0
    %1231 = vmatprep.subr.mxu0 0.0
    %1232 = vmatpush1.msra.mxu0 0.0
    %1233 = vmatprep.subr.mxu0 0.0
    %1234 = vmatpush1.msra.mxu0 0.0
    %1235 = vmatprep.subr.mxu0 0.0
    %1236 = vmatpush1.msra.mxu0 0.0
    %1237 = vmatprep.subr.mxu0 0.0
    %1238 = vmatpush1.msra.mxu0 0.0
    %1239 = vmatprep.subr.mxu0 0.0
    %1240 = vmatpush1.msra.mxu0 0.0
    %1241 = vmatprep.subr.mxu0 0.0
    %1242 = vmatpush1.msra.mxu0 0.0
    %1243 = vmatprep.subr.mxu0 0.0
    %1244 = vmatpush1.msra.mxu0 0.0
    %1245 = vmatprep.subr.mxu0 0.0
    %1246 = vmatpush1.msra.mxu0 0.0
    %1247 = vmatprep.subr.mxu0 0.0
    %1248 = vmatpush1.msra.mxu0 0.0
    %1249 = vmatprep.subr.mxu0 0.0
    %1250 = vmatpush1.msra.mxu0 0.0
    %1251 = vmatprep.subr.mxu0 0.0
    %1252 = vmatpush1.msra.mxu0 0.0
    %1253 = vmatprep.subr.mxu0 0.0
    %1254 = vmatpush1.msra.mxu0 0.0
    %1255 = vmatprep.subr.mxu0 0.0
    %1256 = vmatpush1.msra.mxu0 0.0
    %1257 = vmatprep.subr.mxu0 0.0
    %1258 = vmatpush1.msra.mxu0 0.0
    %1259 = vmatprep.subr.mxu0 0.0
    %1260 = vmatpush1.msra.mxu0 0.0
    %1261 = vmatprep.subr.mxu0 0.0
    %1262 = vmatpush1.msra.mxu0 0.0
    %1263 = vmatprep.subr.mxu0 0.0
    %1264 = vmatpush1.msra.mxu0 0.0
    %1265 = vmatprep.subr.mxu0 0.0
    %1266 = vmatpush1.msra.mxu0 0.0
    %1267 = vmatprep.subr.mxu0 0.0
    %1268 = vmatpush1.msra.mxu0 0.0
    %1269 = vmatprep.subr.mxu0 0.0
    %1270 = vmatpush1.msra.mxu0 0.0
    %1271 = vmatprep.subr.mxu0 0.0
    %1272 = vmatpush1.msra.mxu0 0.0
    %1273 = vmatprep.subr.mxu0 0.0
    %1274 = vmatpush1.msra.mxu0 0.0
    %1275 = vmatprep.subr.mxu0 0.0
    %1276 = vmatpush1.msra.mxu0 0.0
    %1277 = vmatprep.subr.mxu0 0.0
    %1278 = vmatpush1.msra.mxu0 0.0
    %1279 = vmatprep.subr.mxu0 0.0
    %1280 = vmatpush1.msra.mxu0 0.0
    %1281 = vmatprep.subr.mxu0 0.0
    %1282 = vmatpush1.msra.mxu0 0.0
    %1283 = vmatprep.subr.mxu0 0.0
    %1284 = vmatpush1.msra.mxu0 0.0
    %1285 = vmatprep.subr.mxu0 0.0
    %1286 = vmatpush1.msra.mxu0 0.0
    %1287 = vmatprep.subr.mxu0 0.0
    %1288 = vmatpush1.msra.mxu0 0.0
    %1289 = vmatprep.mubr.f32.mxu0 0.0
    %1290 = vmatmul.mubr.f32.gmra.mrb[0].mxu0 %v1223
    %v1291 = vpop.f32.mrb[0].mxu0
    %v1292 = vadd.f32 0.0, %v1291
    %v1293 = vpop.f32.mrb[0].mxu0
    %1294 = vdwg.mxu0
    %v1296 = vsel %vm303, %v1075, 0
    %1298 = vmatprep.subr.mxu0 0.0
    %1299 = vmatpush1.msra.mxu0 %v725
    %1300 = vmatprep.subr.mxu0 0.0
    %1301 = vmatpush1.msra.mxu0 0.0
    %1302 = vmatprep.subr.mxu0 0.0
    %1303 = vmatpush1.msra.mxu0 0.0
    %1304 = vmatprep.subr.mxu0 0.0
    %1305 = vmatpush1.msra.mxu0 0.0
    %1306 = vmatprep.subr.mxu0 0.0
    %1307 = vmatpush1.msra.mxu0 0.0
    %1308 = vmatprep.subr.mxu0 0.0
    %1309 = vmatpush1.msra.mxu0 0.0
    %1310 = vmatprep.subr.mxu0 0.0
    %1311 = vmatpush1.msra.mxu0 0.0
    %1312 = vmatprep.subr.mxu0 0.0
    %1313 = vmatpush1.msra.mxu0 0.0
    %1314 = vmatprep.subr.mxu0 0.0
    %1315 = vmatpush1.msra.mxu0 0.0
    %1316 = vmatprep.subr.mxu0 0.0
    %1317 = vmatpush1.msra.mxu0 0.0
    %1318 = vmatprep.subr.mxu0 0.0
    %1319 = vmatpush1.msra.mxu0 0.0
    %1320 = vmatprep.subr.mxu0 0.0
    %1321 = vmatpush1.msra.mxu0 0.0
    %1322 = vmatprep.subr.mxu0 0.0
    %1323 = vmatpush1.msra.mxu0 0.0
    %1324 = vmatprep.subr.mxu0 0.0
    %1325 = vmatpush1.msra.mxu0 0.0
    %1326 = vmatprep.subr.mxu0 0.0
    %1327 = vmatpush1.msra.mxu0 0.0
    %1328 = vmatprep.subr.mxu0 0.0
    %1329 = vmatpush1.msra.mxu0 0.0
    %1330 = vmatprep.subr.mxu0 0.0
    %1331 = vmatpush1.msra.mxu0 0.0
    %1332 = vmatprep.subr.mxu0 0.0
    %1333 = vmatpush1.msra.mxu0 0.0
    %1334 = vmatprep.subr.mxu0 0.0
    %1335 = vmatpush1.msra.mxu0 0.0
    %1336 = vmatprep.subr.mxu0 0.0
    %1337 = vmatpush1.msra.mxu0 0.0
    %1338 = vmatprep.subr.mxu0 0.0
    %1339 = vmatpush1.msra.mxu0 0.0
    %1340 = vmatprep.subr.mxu0 0.0
    %1341 = vmatpush1.msra.mxu0 0.0
    %1342 = vmatprep.subr.mxu0 0.0
    %1343 = vmatpush1.msra.mxu0 0.0
    %1344 = vmatprep.subr.mxu0 0.0
    %1345 = vmatpush1.msra.mxu0 0.0
    %1346 = vmatprep.subr.mxu0 0.0
    %1347 = vmatpush1.msra.mxu0 0.0
    %1348 = vmatprep.subr.mxu0 0.0
    %1349 = vmatpush1.msra.mxu0 0.0
    %1350 = vmatprep.subr.mxu0 0.0
    %1351 = vmatpush1.msra.mxu0 0.0
    %1352 = vmatprep.subr.mxu0 0.0
    %1353 = vmatpush1.msra.mxu0 0.0
    %1354 = vmatprep.subr.mxu0 0.0
    %1355 = vmatpush1.msra.mxu0 0.0
    %1356 = vmatprep.subr.mxu0 0.0
    %1357 = vmatpush1.msra.mxu0 0.0
    %1358 = vmatprep.subr.mxu0 0.0
    %1359 = vmatpush1.msra.mxu0 0.0
    %1360 = vmatprep.subr.mxu0 0.0
    %1361 = vmatpush1.msra.mxu0 0.0
    %1362 = vmatprep.mubr.f32.mxu0 0.0
    %1363 = vmatmul.mubr.f32.gmra.mrb[0].mxu0 %v1296
    %v1364 = vpop.f32.mrb[0].mxu0
    %v1365 = vadd.f32 0.0, %v1364
    %v1366 = vpop.f32.mrb[0].mxu0
    %1367 = vdwg.mxu0
    %1370 = vrot.lane.b32.xlu0 %v1292, 16
    %v1371 = vpop.permute.xlu0 %1370
    %1372 = vrot.lane.b32.xlu0 %v1365, 16
    %v1373 = vpop.permute.xlu0 %1372
    %v1376 = vsel %vm166, %v1146, %v1371
    %v1377 = vsel %vm166, %v1219, %v1373
    %v1378 = vld [vmem:[%s35] sm:$0xff]
    %v1379 = vld [vmem:[%s35 + $0x8] sm:$0xff]
    %v1380 = vld [vmem:[%s35 + $0x10] sm:$0xff]
    %v1381 = vld [vmem:[%s35 + $0x18] sm:$0xff]
    %v1382 = vld [vmem:[%s37] sm:$0x1]
    %v1384 = vlaneseq
    %v1385 = vshrl.u32 %v1384, 7
    %v1386 = vsub.s32 0, %v1385
    %v1387 = vrot.slane %v1382, %v1386
    %v1390 = vsel %vm454, %v1376, 0
    %v1393 = vsel %vm454, %v1377, 0
    %1395 = vmatprep.subr.mxu0 0.0
    %1396 = vmatpush1.msra.mxu0 %v1378
    %1397 = vmatprep.subr.mxu0 0.0
    %1398 = vmatpush1.msra.mxu0 %v1379
    %1399 = vmatprep.subr.mxu0 0.0
    %1400 = vmatpush1.msra.mxu0 %v1380
    %1401 = vmatprep.subr.mxu0 0.0
    %1402 = vmatpush1.msra.mxu0 %v1381
    %1403 = vmatprep.subr.mxu0 0.0
    %1404 = vmatpush1.msra.mxu0 0.0
    %1405 = vmatprep.subr.mxu0 0.0
    %1406 = vmatpush1.msra.mxu0 0.0
    %1407 = vmatprep.subr.mxu0 0.0
    %1408 = vmatpush1.msra.mxu0 0.0
    %1409 = vmatprep.subr.mxu0 0.0
    %1410 = vmatpush1.msra.mxu0 0.0
    %1411 = vmatprep.subr.mxu0 0.0
    %1412 = vmatpush1.msra.mxu0 0.0
    %1413 = vmatprep.subr.mxu0 0.0
    %1414 = vmatpush1.msra.mxu0 0.0
    %1415 = vmatprep.subr.mxu0 0.0
    %1416 = vmatpush1.msra.mxu0 0.0
    %1417 = vmatprep.subr.mxu0 0.0
    %1418 = vmatpush1.msra.mxu0 0.0
    %1419 = vmatprep.subr.mxu0 0.0
    %1420 = vmatpush1.msra.mxu0 0.0
    %1421 = vmatprep.subr.mxu0 0.0
    %1422 = vmatpush1.msra.mxu0 0.0
    %1423 = vmatprep.subr.mxu0 0.0
    %1424 = vmatpush1.msra.mxu0 0.0
    %1425 = vmatprep.subr.mxu0 0.0
    %1426 = vmatpush1.msra.mxu0 0.0
    %1427 = vmatprep.subr.mxu0 0.0
    %1428 = vmatpush1.msra.mxu0 0.0
    %1429 = vmatprep.subr.mxu0 0.0
    %1430 = vmatpush1.msra.mxu0 0.0
    %1431 = vmatprep.subr.mxu0 0.0
    %1432 = vmatpush1.msra.mxu0 0.0
    %1433 = vmatprep.subr.mxu0 0.0
    %1434 = vmatpush1.msra.mxu0 0.0
    %1435 = vmatprep.subr.mxu0 0.0
    %1436 = vmatpush1.msra.mxu0 0.0
    %1437 = vmatprep.subr.mxu0 0.0
    %1438 = vmatpush1.msra.mxu0 0.0
    %1439 = vmatprep.subr.mxu0 0.0
    %1440 = vmatpush1.msra.mxu0 0.0
    %1441 = vmatprep.subr.mxu0 0.0
    %1442 = vmatpush1.msra.mxu0 0.0
    %1443 = vmatprep.subr.mxu0 0.0
    %1444 = vmatpush1.msra.mxu0 0.0
    %1445 = vmatprep.subr.mxu0 0.0
    %1446 = vmatpush1.msra.mxu0 0.0
    %1447 = vmatprep.subr.mxu0 0.0
    %1448 = vmatpush1.msra.mxu0 0.0
    %1449 = vmatprep.subr.mxu0 0.0
    %1450 = vmatpush1.msra.mxu0 0.0
    %1451 = vmatprep.subr.mxu0 0.0
    %1452 = vmatpush1.msra.mxu0 0.0
    %1453 = vmatprep.subr.mxu0 0.0
    %1454 = vmatpush1.msra.mxu0 0.0
    %1455 = vmatprep.subr.mxu0 0.0
    %1456 = vmatpush1.msra.mxu0 0.0
    %1457 = vmatprep.subr.mxu0 0.0
    %1458 = vmatpush1.msra.mxu0 0.0
    %1459 = vmatprep.mubr.f32.mxu0 0.0
    %1460 = vmatmul.mubr.f32.gmra.mrb[0].mxu0 %v1390
    %v1461 = vpop.f32.mrb[0].mxu0
    %v1462 = vadd.f32 %v1387, %v1461
    %v1463 = vpop.f32.mrb[0].mxu0
    %1464 = vmatprep.mubr.f32.mxu0 0.0
    %1465 = vmatmul.mubr.f32.gmra.mrb[0].mxu0 %v1393
    %v1466 = vpop.f32.mrb[0].mxu0
    %v1467 = vadd.f32 %v1387, %v1466
    %v1468 = vpop.f32.mrb[0].mxu0
    %1469 = vdwg.mxu0
    %v1470 = vadd.f32 %v1462, %v437
    %v1471 = vadd.f32 %v1467, %v438
    %v1472 = vld [vmem:[%s39] sm:$0x1]
    %v1473 = vld [vmem:[%s41] sm:$0x1]
    %v1474 = vsel %vm454, %v1470, 0.0
    %1475 = vadd.xlane.f32.xlu0 %v1474
    %v1476 = vpop.xlane.xlu0 %1475
    %v1477 = vsel %vm454, %v1471, 0.0
    %1478 = vadd.xlane.f32.xlu0 %v1477
    %v1479 = vpop.xlane.xlu0 %1478
    %v1480 = vrcp.pop 32.0
    %v1481 = vmul.f32 %v1476, %v1480
    %v1482 = vmul.f32 %v1479, %v1480
    %v1483 = vsub.f32 %v1470, %v1481
    %v1484 = vsub.f32 %v1471, %v1482
    %v1485 = vmul.f32 %v1483, %v1483
    %v1486 = vmul.f32 %v1484, %v1484
    %v1487 = vsel %vm454, %v1485, 0.0
    %1488 = vadd.xlane.f32.xlu0 %v1487
    %v1489 = vpop.xlane.xlu0 %1488
    %v1490 = vsel %vm454, %v1486, 0.0
    %1491 = vadd.xlane.f32.xlu0 %v1490
    %v1492 = vpop.xlane.xlu0 %1491
    %v1493 = vmul.f32 %v1489, %v1480
    %v1494 = vmul.f32 %v1492, %v1480
    %v1495 = vadd.f32 %v1493, 1e-12
    %v1496 = vadd.f32 %v1494, 1e-12
    %v1497 = vrsqrt.pop %v1495
    %v1498 = vrsqrt.pop %v1496
    %v1499 = vmul.f32 %v1483, %v1497
    %v1500 = vmul.f32 %v1484, %v1498
    %v1502 = vlaneseq
    %v1503 = vshrl.u32 %v1502, 7
    %v1504 = vsub.s32 0, %v1503
    %v1505 = vrot.slane %v1472, %v1504
    %v1507 = vmul.f32 %v1499, %v1505
    %v1508 = vmul.f32 %v1500, %v1505
    %v1510 = vlaneseq
    %v1511 = vshrl.u32 %v1510, 7
    %v1512 = vsub.s32 0, %v1511
    %v1513 = vrot.slane %v1473, %v1512
    %v1515 = vadd.f32 %v1507, %v1513
    %v1516 = vadd.f32 %v1508, %v1513
    %v1517 = vld [vmem:[%s43] sm:$0xff]
    %v1518 = vld [vmem:[%s43 + $0x8] sm:$0xff]
    %v1519 = vld [vmem:[%s43 + $0x10] sm:$0xff]
    %v1520 = vld [vmem:[%s43 + $0x18] sm:$0xff]
    %v1521 = vld [vmem:[%s45] sm:$0x1]
    %v1523 = vlaneseq
    %v1524 = vshrl.u32 %v1523, 7
    %v1525 = vsub.s32 0, %v1524
    %v1526 = vrot.slane %v1521, %v1525
    %v1529 = vsel %vm454, %v1515, 0
    %v1532 = vsel %vm454, %v1516, 0
    %1534 = vmatprep.subr.mxu0 0.0
    %1535 = vmatpush1.msra.mxu0 %v1517
    %1536 = vmatprep.subr.mxu0 0.0
    %1537 = vmatpush1.msra.mxu0 %v1518
    %1538 = vmatprep.subr.mxu0 0.0
    %1539 = vmatpush1.msra.mxu0 %v1519
    %1540 = vmatprep.subr.mxu0 0.0
    %1541 = vmatpush1.msra.mxu0 %v1520
    %1542 = vmatprep.subr.mxu0 0.0
    %1543 = vmatpush1.msra.mxu0 0.0
    %1544 = vmatprep.subr.mxu0 0.0
    %1545 = vmatpush1.msra.mxu0 0.0
    %1546 = vmatprep.subr.mxu0 0.0
    %1547 = vmatpush1.msra.mxu0 0.0
    %1548 = vmatprep.subr.mxu0 0.0
    %1549 = vmatpush1.msra.mxu0 0.0
    %1550 = vmatprep.subr.mxu0 0.0
    %1551 = vmatpush1.msra.mxu0 0.0
    %1552 = vmatprep.subr.mxu0 0.0
    %1553 = vmatpush1.msra.mxu0 0.0
    %1554 = vmatprep.subr.mxu0 0.0
    %1555 = vmatpush1.msra.mxu0 0.0
    %1556 = vmatprep.subr.mxu0 0.0
    %1557 = vmatpush1.msra.mxu0 0.0
    %1558 = vmatprep.subr.mxu0 0.0
    %1559 = vmatpush1.msra.mxu0 0.0
    %1560 = vmatprep.subr.mxu0 0.0
    %1561 = vmatpush1.msra.mxu0 0.0
    %1562 = vmatprep.subr.mxu0 0.0
    %1563 = vmatpush1.msra.mxu0 0.0
    %1564 = vmatprep.subr.mxu0 0.0
    %1565 = vmatpush1.msra.mxu0 0.0
    %1566 = vmatprep.subr.mxu0 0.0
    %1567 = vmatpush1.msra.mxu0 0.0
    %1568 = vmatprep.subr.mxu0 0.0
    %1569 = vmatpush1.msra.mxu0 0.0
    %1570 = vmatprep.subr.mxu0 0.0
    %1571 = vmatpush1.msra.mxu0 0.0
    %1572 = vmatprep.subr.mxu0 0.0
    %1573 = vmatpush1.msra.mxu0 0.0
    %1574 = vmatprep.subr.mxu0 0.0
    %1575 = vmatpush1.msra.mxu0 0.0
    %1576 = vmatprep.subr.mxu0 0.0
    %1577 = vmatpush1.msra.mxu0 0.0
    %1578 = vmatprep.subr.mxu0 0.0
    %1579 = vmatpush1.msra.mxu0 0.0
    %1580 = vmatprep.subr.mxu0 0.0
    %1581 = vmatpush1.msra.mxu0 0.0
    %1582 = vmatprep.subr.mxu0 0.0
    %1583 = vmatpush1.msra.mxu0 0.0
    %1584 = vmatprep.subr.mxu0 0.0
    %1585 = vmatpush1.msra.mxu0 0.0
    %1586 = vmatprep.subr.mxu0 0.0
    %1587 = vmatpush1.msra.mxu0 0.0
    %1588 = vmatprep.subr.mxu0 0.0
    %1589 = vmatpush1.msra.mxu0 0.0
    %1590 = vmatprep.subr.mxu0 0.0
    %1591 = vmatpush1.msra.mxu0 0.0
    %1592 = vmatprep.subr.mxu0 0.0
    %1593 = vmatpush1.msra.mxu0 0.0
    %1594 = vmatprep.subr.mxu0 0.0
    %1595 = vmatpush1.msra.mxu0 0.0
    %1596 = vmatprep.subr.mxu0 0.0
    %1597 = vmatpush1.msra.mxu0 0.0
    %1598 = vmatprep.mubr.f32.mxu0 0.0
    %1599 = vmatmul.mubr.f32.gmra.mrb[0].mxu0 %v1529
    %v1600 = vpop.f32.mrb[0].mxu0
    %v1601 = vadd.f32 %v1526, %v1600
    %v1602 = vpop.f32.mrb[0].mxu0
    %1603 = vmatprep.mubr.f32.mxu0 0.0
    %1604 = vmatmul.mubr.f32.gmra.mrb[0].mxu0 %v1532
    %v1605 = vpop.f32.mrb[0].mxu0
    %v1606 = vadd.f32 %v1526, %v1605
    %v1607 = vpop.f32.mrb[0].mxu0
    %1608 = vdwg.mxu0
    %v1609 = vmul.f32 %v1601, 0.5
    %v1610 = vmul.f32 %v1606, 0.5
    %v1611 = vmul.f32 %v1601, 0.70710677
    %v1612 = vmul.f32 %v1606, 0.70710677
    %vm1613 = vcmp.ge.f32.partialorder %v1611, 0.0
    %vm1614 = vcmp.ge.f32.partialorder %v1612, 0.0
    %v1615 = vsel %vm1613, 1.0, -1.0
    %v1616 = vsel %vm1614, 1.0, -1.0
    %v1617 = vand.u32 2147483647, %v1611
    %v1618 = vand.u32 2147483647, %v1612
    %v1619 = vmul.f32 %v1617, 0.3275911
    %v1620 = vmul.f32 %v1618, 0.3275911
    %v1621 = vadd.f32 %v1619, 1.0
    %v1622 = vadd.f32 %v1620, 1.0
    %v1623 = vrcp.pop %v1621
    %v1624 = vmul.f32 1.0, %v1623
    %v1625 = vrcp.pop %v1622
    %v1626 = vmul.f32 1.0, %v1625
    %v1627 = vmul.f32 %v1624, 1.0614054
    %v1628 = vmul.f32 %v1626, 1.0614054
    %v1629 = vadd.f32 %v1627, -1.4531521
    %v1630 = vadd.f32 %v1628, -1.4531521
    %v1631 = vmul.f32 %v1629, %v1624
    %v1632 = vmul.f32 %v1630, %v1626
    %v1633 = vadd.f32 %v1631, 1.4214138
    %v1634 = vadd.f32 %v1632, 1.4214138
    %v1635 = vmul.f32 %v1633, %v1624
    %v1636 = vmul.f32 %v1634, %v1626
    %v1637 = vadd.f32 %v1635, -0.28449672
    %v1638 = vadd.f32 %v1636, -0.28449672
    %v1639 = vmul.f32 %v1637, %v1624
    %v1640 = vmul.f32 %v1638, %v1626
    %v1641 = vadd.f32 %v1639, 0.2548296
    %v1642 = vadd.f32 %v1640, 0.2548296
    %v1643 = vmul.f32 %v1641, %v1624
    %v1644 = vmul.f32 %v1642, %v1626
    %v1645 = vsub.f32 0.0, %v1617
    %v1646 = vsub.f32 0.0, %v1618
    %v1647 = vmul.f32 %v1645, %v1617
    %v1648 = vmul.f32 %v1646, %v1618
    %v1649 = vmul.f32 %v1647, 1.442695
    %v1650 = vpow.pop %v1649
    %v1651 = vmul.f32 %v1648, 1.442695
    %v1652 = vpow.pop %v1651
    %v1653 = vmul.f32 %v1643, %v1650
    %v1654 = vmul.f32 %v1644, %v1652
    %v1655 = vsub.f32 1.0, %v1653
    %v1656 = vsub.f32 1.0, %v1654
    %v1657 = vmul.f32 %v1615, %v1655
    %v1658 = vmul.f32 %v1616, %v1656
    %v1659 = vadd.f32 %v1657, 1.0
    %v1660 = vadd.f32 %v1658, 1.0
    %v1661 = vmul.f32 %v1609, %v1659
    %v1662 = vmul.f32 %v1610, %v1660
    %v1663 = vld [vmem:[%s47] sm:$0xff]
    %v1664 = vld [vmem:[%s47 + $0x8] sm:$0xff]
    %v1665 = vld [vmem:[%s47 + $0x10] sm:$0xff]
    %v1666 = vld [vmem:[%s47 + $0x18] sm:$0xff]
    %v1667 = vld [vmem:[%s49] sm:$0x1]
    %v1669 = vlaneseq
    %v1670 = vshrl.u32 %v1669, 7
    %v1671 = vsub.s32 0, %v1670
    %v1672 = vrot.slane %v1667, %v1671
    %v1675 = vsel %vm454, %v1661, 0
    %v1678 = vsel %vm454, %v1662, 0
    %1680 = vmatprep.subr.mxu0 0.0
    %1681 = vmatpush1.msra.mxu0 %v1663
    %1682 = vmatprep.subr.mxu0 0.0
    %1683 = vmatpush1.msra.mxu0 %v1664
    %1684 = vmatprep.subr.mxu0 0.0
    %1685 = vmatpush1.msra.mxu0 %v1665
    %1686 = vmatprep.subr.mxu0 0.0
    %1687 = vmatpush1.msra.mxu0 %v1666
    %1688 = vmatprep.subr.mxu0 0.0
    %1689 = vmatpush1.msra.mxu0 0.0
    %1690 = vmatprep.subr.mxu0 0.0
    %1691 = vmatpush1.msra.mxu0 0.0
    %1692 = vmatprep.subr.mxu0 0.0
    %1693 = vmatpush1.msra.mxu0 0.0
    %1694 = vmatprep.subr.mxu0 0.0
    %1695 = vmatpush1.msra.mxu0 0.0
    %1696 = vmatprep.subr.mxu0 0.0
    %1697 = vmatpush1.msra.mxu0 0.0
    %1698 = vmatprep.subr.mxu0 0.0
    %1699 = vmatpush1.msra.mxu0 0.0
    %1700 = vmatprep.subr.mxu0 0.0
    %1701 = vmatpush1.msra.mxu0 0.0
    %1702 = vmatprep.subr.mxu0 0.0
    %1703 = vmatpush1.msra.mxu0 0.0
    %1704 = vmatprep.subr.mxu0 0.0
    %1705 = vmatpush1.msra.mxu0 0.0
    %1706 = vmatprep.subr.mxu0 0.0
    %1707 = vmatpush1.msra.mxu0 0.0
    %1708 = vmatprep.subr.mxu0 0.0
    %1709 = vmatpush1.msra.mxu0 0.0
    %1710 = vmatprep.subr.mxu0 0.0
    %1711 = vmatpush1.msra.mxu0 0.0
    %1712 = vmatprep.subr.mxu0 0.0
    %1713 = vmatpush1.msra.mxu0 0.0
    %1714 = vmatprep.subr.mxu0 0.0
    %1715 = vmatpush1.msra.mxu0 0.0
    %1716 = vmatprep.subr.mxu0 0.0
    %1717 = vmatpush1.msra.mxu0 0.0
    %1718 = vmatprep.subr.mxu0 0.0
    %1719 = vmatpush1.msra.mxu0 0.0
    %1720 = vmatprep.subr.mxu0 0.0
    %1721 = vmatpush1.msra.mxu0 0.0
    %1722 = vmatprep.subr.mxu0 0.0
    %1723 = vmatpush1.msra.mxu0 0.0
    %1724 = vmatprep.subr.mxu0 0.0
    %1725 = vmatpush1.msra.mxu0 0.0
    %1726 = vmatprep.subr.mxu0 0.0
    %1727 = vmatpush1.msra.mxu0 0.0
    %1728 = vmatprep.subr.mxu0 0.0
    %1729 = vmatpush1.msra.mxu0 0.0
    %1730 = vmatprep.subr.mxu0 0.0
    %1731 = vmatpush1.msra.mxu0 0.0
    %1732 = vmatprep.subr.mxu0 0.0
    %1733 = vmatpush1.msra.mxu0 0.0
    %1734 = vmatprep.subr.mxu0 0.0
    %1735 = vmatpush1.msra.mxu0 0.0
    %1736 = vmatprep.subr.mxu0 0.0
    %1737 = vmatpush1.msra.mxu0 0.0
    %1738 = vmatprep.subr.mxu0 0.0
    %1739 = vmatpush1.msra.mxu0 0.0
    %1740 = vmatprep.subr.mxu0 0.0
    %1741 = vmatpush1.msra.mxu0 0.0
    %1742 = vmatprep.subr.mxu0 0.0
    %1743 = vmatpush1.msra.mxu0 0.0
    %1744 = vmatprep.mubr.f32.mxu0 0.0
    %1745 = vmatmul.mubr.f32.gmra.mrb[0].mxu0 %v1675
    %v1746 = vpop.f32.mrb[0].mxu0
    %v1747 = vadd.f32 %v1672, %v1746
    %v1748 = vpop.f32.mrb[0].mxu0
    %1749 = vmatprep.mubr.f32.mxu0 0.0
    %1750 = vmatmul.mubr.f32.gmra.mrb[0].mxu0 %v1678
    %v1751 = vpop.f32.mrb[0].mxu0
    %v1752 = vadd.f32 %v1672, %v1751
    %v1753 = vpop.f32.mrb[0].mxu0
    %1754 = vdwg.mxu0
    %v1755 = vadd.f32 %v1747, %v1515
    %v1756 = vadd.f32 %v1752, %v1516
    %v1757 = vld [vmem:[%s51] sm:$0x1]
    %v1758 = vld [vmem:[%s53] sm:$0x1]
    %v1759 = vsel %vm454, %v1755, 0.0
    %1760 = vadd.xlane.f32.xlu0 %v1759
    %v1761 = vpop.xlane.xlu0 %1760
    %v1762 = vsel %vm454, %v1756, 0.0
    %1763 = vadd.xlane.f32.xlu0 %v1762
    %v1764 = vpop.xlane.xlu0 %1763
    %v1765 = vmul.f32 %v1761, %v1480
    %v1766 = vmul.f32 %v1764, %v1480
    %v1767 = vsub.f32 %v1755, %v1765
    %v1768 = vsub.f32 %v1756, %v1766
    %v1769 = vmul.f32 %v1767, %v1767
    %v1770 = vmul.f32 %v1768, %v1768
    %v1771 = vsel %vm454, %v1769, 0.0
    %1772 = vadd.xlane.f32.xlu0 %v1771
    %v1773 = vpop.xlane.xlu0 %1772
    %v1774 = vsel %vm454, %v1770, 0.0
    %1775 = vadd.xlane.f32.xlu0 %v1774
    %v1776 = vpop.xlane.xlu0 %1775
    %v1777 = vmul.f32 %v1773, %v1480
    %v1778 = vmul.f32 %v1776, %v1480
    %v1779 = vadd.f32 %v1777, 1e-12
    %v1780 = vadd.f32 %v1778, 1e-12
    %v1781 = vrsqrt.pop %v1779
    %v1782 = vrsqrt.pop %v1780
    %v1783 = vmul.f32 %v1767, %v1781
    %v1784 = vmul.f32 %v1768, %v1782
    %v1786 = vlaneseq
    %v1787 = vshrl.u32 %v1786, 7
    %v1788 = vsub.s32 0, %v1787
    %v1789 = vrot.slane %v1757, %v1788
    %v1791 = vmul.f32 %v1783, %v1789
    %v1792 = vmul.f32 %v1784, %v1789
    %v1794 = vlaneseq
    %v1795 = vshrl.u32 %v1794, 7
    %v1796 = vsub.s32 0, %v1795
    %v1797 = vrot.slane %v1758, %v1796
    %v1799 = vadd.f32 %v1791, %v1797
    %v1800 = vadd.f32 %v1792, %v1797
    %s1801 = scalar_lea.vmem %s23, 32
    %v1802 = vld [vmem:[%s1801] sm:$0xff]
    %v1803 = vld [vmem:[%s1801 + $0x8] sm:$0xff]
    %v1804 = vld [vmem:[%s1801 + $0x10] sm:$0xff]
    %v1805 = vld [vmem:[%s1801 + $0x18] sm:$0xff]
    %s1806 = scalar_lea.vmem %s25, 1
    %v1807 = vld [vmem:[%s1806] sm:$0x1]
    %v1809 = vlaneseq
    %v1810 = vshrl.u32 %v1809, 7
    %v1811 = vsub.s32 0, %v1810
    %v1812 = vrot.slane %v1807, %v1811
    %v1815 = vsel %vm454, %v1799, 0
    %v1818 = vsel %vm454, %v1800, 0
    %1820 = vmatprep.subr.mxu0 0.0
    %1821 = vmatpush1.msra.mxu0 %v1802
    %1822 = vmatprep.subr.mxu0 0.0
    %1823 = vmatpush1.msra.mxu0 %v1803
    %1824 = vmatprep.subr.mxu0 0.0
    %1825 = vmatpush1.msra.mxu0 %v1804
    %1826 = vmatprep.subr.mxu0 0.0
    %1827 = vmatpush1.msra.mxu0 %v1805
    %1828 = vmatprep.subr.mxu0 0.0
    %1829 = vmatpush1.msra.mxu0 0.0
    %1830 = vmatprep.subr.mxu0 0.0
    %1831 = vmatpush1.msra.mxu0 0.0
    %1832 = vmatprep.subr.mxu0 0.0
    %1833 = vmatpush1.msra.mxu0 0.0
    %1834 = vmatprep.subr.mxu0 0.0
    %1835 = vmatpush1.msra.mxu0 0.0
    %1836 = vmatprep.subr.mxu0 0.0
    %1837 = vmatpush1.msra.mxu0 0.0
    %1838 = vmatprep.subr.mxu0 0.0
    %1839 = vmatpush1.msra.mxu0 0.0
    %1840 = vmatprep.subr.mxu0 0.0
    %1841 = vmatpush1.msra.mxu0 0.0
    %1842 = vmatprep.subr.mxu0 0.0
    %1843 = vmatpush1.msra.mxu0 0.0
    %1844 = vmatprep.subr.mxu0 0.0
    %1845 = vmatpush1.msra.mxu0 0.0
    %1846 = vmatprep.subr.mxu0 0.0
    %1847 = vmatpush1.msra.mxu0 0.0
    %1848 = vmatprep.subr.mxu0 0.0
    %1849 = vmatpush1.msra.mxu0 0.0
    %1850 = vmatprep.subr.mxu0 0.0
    %1851 = vmatpush1.msra.mxu0 0.0
    %1852 = vmatprep.subr.mxu0 0.0
    %1853 = vmatpush1.msra.mxu0 0.0
    %1854 = vmatprep.subr.mxu0 0.0
    %1855 = vmatpush1.msra.mxu0 0.0
    %1856 = vmatprep.subr.mxu0 0.0
    %1857 = vmatpush1.msra.mxu0 0.0
    %1858 = vmatprep.subr.mxu0 0.0
    %1859 = vmatpush1.msra.mxu0 0.0
    %1860 = vmatprep.subr.mxu0 0.0
    %1861 = vmatpush1.msra.mxu0 0.0
    %1862 = vmatprep.subr.mxu0 0.0
    %1863 = vmatpush1.msra.mxu0 0.0
    %1864 = vmatprep.subr.mxu0 0.0
    %1865 = vmatpush1.msra.mxu0 0.0
    %1866 = vmatprep.subr.mxu0 0.0
    %1867 = vmatpush1.msra.mxu0 0.0
    %1868 = vmatprep.subr.mxu0 0.0
    %1869 = vmatpush1.msra.mxu0 0.0
    %1870 = vmatprep.subr.mxu0 0.0
    %1871 = vmatpush1.msra.mxu0 0.0
    %1872 = vmatprep.subr.mxu0 0.0
    %1873 = vmatpush1.msra.mxu0 0.0
    %1874 = vmatprep.subr.mxu0 0.0
    %1875 = vmatpush1.msra.mxu0 0.0
    %1876 = vmatprep.subr.mxu0 0.0
    %1877 = vmatpush1.msra.mxu0 0.0
    %1878 = vmatprep.subr.mxu0 0.0
    %1879 = vmatpush1.msra.mxu0 0.0
    %1880 = vmatprep.subr.mxu0 0.0
    %1881 = vmatpush1.msra.mxu0 0.0
    %1882 = vmatprep.subr.mxu0 0.0
    %1883 = vmatpush1.msra.mxu0 0.0
    %1884 = vmatprep.mubr.f32.mxu0 0.0
    %1885 = vmatmul.mubr.f32.gmra.mrb[0].mxu0 %v1815
    %v1886 = vpop.f32.mrb[0].mxu0
    %v1887 = vadd.f32 %v1812, %v1886
    %v1888 = vpop.f32.mrb[0].mxu0
    %1889 = vmatprep.mubr.f32.mxu0 0.0
    %1890 = vmatmul.mubr.f32.gmra.mrb[0].mxu0 %v1818
    %v1891 = vpop.f32.mrb[0].mxu0
    %v1892 = vadd.f32 %v1812, %v1891
    %v1893 = vpop.f32.mrb[0].mxu0
    %1894 = vdwg.mxu0
    %s1895 = scalar_lea.vmem %s27, 32
    %v1896 = vld [vmem:[%s1895] sm:$0xff]
    %v1897 = vld [vmem:[%s1895 + $0x8] sm:$0xff]
    %v1898 = vld [vmem:[%s1895 + $0x10] sm:$0xff]
    %v1899 = vld [vmem:[%s1895 + $0x18] sm:$0xff]
    %s1900 = scalar_lea.vmem %s29, 1
    %v1901 = vld [vmem:[%s1900] sm:$0x1]
    %v1903 = vlaneseq
    %v1904 = vshrl.u32 %v1903, 7
    %v1905 = vsub.s32 0, %v1904
    %v1906 = vrot.slane %v1901, %v1905
    %1908 = vmatprep.subr.mxu0 0.0
    %1909 = vmatpush1.msra.mxu0 %v1896
    %1910 = vmatprep.subr.mxu0 0.0
    %1911 = vmatpush1.msra.mxu0 %v1897
    %1912 = vmatprep.subr.mxu0 0.0
    %1913 = vmatpush1.msra.mxu0 %v1898
    %1914 = vmatprep.subr.mxu0 0.0
    %1915 = vmatpush1.msra.mxu0 %v1899
    %1916 = vmatprep.subr.mxu0 0.0
    %1917 = vmatpush1.msra.mxu0 0.0
    %1918 = vmatprep.subr.mxu0 0.0
    %1919 = vmatpush1.msra.mxu0 0.0
    %1920 = vmatprep.subr.mxu0 0.0
    %1921 = vmatpush1.msra.mxu0 0.0
    %1922 = vmatprep.subr.mxu0 0.0
    %1923 = vmatpush1.msra.mxu0 0.0
    %1924 = vmatprep.subr.mxu0 0.0
    %1925 = vmatpush1.msra.mxu0 0.0
    %1926 = vmatprep.subr.mxu0 0.0
    %1927 = vmatpush1.msra.mxu0 0.0
    %1928 = vmatprep.subr.mxu0 0.0
    %1929 = vmatpush1.msra.mxu0 0.0
    %1930 = vmatprep.subr.mxu0 0.0
    %1931 = vmatpush1.msra.mxu0 0.0
    %1932 = vmatprep.subr.mxu0 0.0
    %1933 = vmatpush1.msra.mxu0 0.0
    %1934 = vmatprep.subr.mxu0 0.0
    %1935 = vmatpush1.msra.mxu0 0.0
    %1936 = vmatprep.subr.mxu0 0.0
    %1937 = vmatpush1.msra.mxu0 0.0
    %1938 = vmatprep.subr.mxu0 0.0
    %1939 = vmatpush1.msra.mxu0 0.0
    %1940 = vmatprep.subr.mxu0 0.0
    %1941 = vmatpush1.msra.mxu0 0.0
    %1942 = vmatprep.subr.mxu0 0.0
    %1943 = vmatpush1.msra.mxu0 0.0
    %1944 = vmatprep.subr.mxu0 0.0
    %1945 = vmatpush1.msra.mxu0 0.0
    %1946 = vmatprep.subr.mxu0 0.0
    %1947 = vmatpush1.msra.mxu0 0.0
    %1948 = vmatprep.subr.mxu0 0.0
    %1949 = vmatpush1.msra.mxu0 0.0
    %1950 = vmatprep.subr.mxu0 0.0
    %1951 = vmatpush1.msra.mxu0 0.0
    %1952 = vmatprep.subr.mxu0 0.0
    %1953 = vmatpush1.msra.mxu0 0.0
    %1954 = vmatprep.subr.mxu0 0.0
    %1955 = vmatpush1.msra.mxu0 0.0
    %1956 = vmatprep.subr.mxu0 0.0
    %1957 = vmatpush1.msra.mxu0 0.0
    %1958 = vmatprep.subr.mxu0 0.0
    %1959 = vmatpush1.msra.mxu0 0.0
    %1960 = vmatprep.subr.mxu0 0.0
    %1961 = vmatpush1.msra.mxu0 0.0
    %1962 = vmatprep.subr.mxu0 0.0
    %1963 = vmatpush1.msra.mxu0 0.0
    %1964 = vmatprep.subr.mxu0 0.0
    %1965 = vmatpush1.msra.mxu0 0.0
    %1966 = vmatprep.subr.mxu0 0.0
    %1967 = vmatpush1.msra.mxu0 0.0
    %1968 = vmatprep.subr.mxu0 0.0
    %1969 = vmatpush1.msra.mxu0 0.0
    %1970 = vmatprep.subr.mxu0 0.0
    %1971 = vmatpush1.msra.mxu0 0.0
    %1972 = vmatprep.mubr.f32.mxu0 0.0
    %1973 = vmatmul.mubr.f32.gmra.mrb[0].mxu0 %v1815
    %v1974 = vpop.f32.mrb[0].mxu0
    %v1975 = vadd.f32 %v1906, %v1974
    %v1976 = vpop.f32.mrb[0].mxu0
    %1977 = vmatprep.mubr.f32.mxu0 0.0
    %1978 = vmatmul.mubr.f32.gmra.mrb[0].mxu0 %v1818
    %v1979 = vpop.f32.mrb[0].mxu0
    %v1980 = vadd.f32 %v1906, %v1979
    %v1981 = vpop.f32.mrb[0].mxu0
    %1982 = vdwg.mxu0
    %s1983 = scalar_lea.vmem %s31, 32
    %v1984 = vld [vmem:[%s1983] sm:$0xff]
    %v1985 = vld [vmem:[%s1983 + $0x8] sm:$0xff]
    %v1986 = vld [vmem:[%s1983 + $0x10] sm:$0xff]
    %v1987 = vld [vmem:[%s1983 + $0x18] sm:$0xff]
    %s1988 = scalar_lea.vmem %s33, 1
    %v1989 = vld [vmem:[%s1988] sm:$0x1]
    %v1991 = vlaneseq
    %v1992 = vshrl.u32 %v1991, 7
    %v1993 = vsub.s32 0, %v1992
    %v1994 = vrot.slane %v1989, %v1993
    %1996 = vmatprep.subr.mxu0 0.0
    %1997 = vmatpush1.msra.mxu0 %v1984
    %1998 = vmatprep.subr.mxu0 0.0
    %1999 = vmatpush1.msra.mxu0 %v1985
    %2000 = vmatprep.subr.mxu0 0.0
    %2001 = vmatpush1.msra.mxu0 %v1986
    %2002 = vmatprep.subr.mxu0 0.0
    %2003 = vmatpush1.msra.mxu0 %v1987
    %2004 = vmatprep.subr.mxu0 0.0
    %2005 = vmatpush1.msra.mxu0 0.0
    %2006 = vmatprep.subr.mxu0 0.0
    %2007 = vmatpush1.msra.mxu0 0.0
    %2008 = vmatprep.subr.mxu0 0.0
    %2009 = vmatpush1.msra.mxu0 0.0
    %2010 = vmatprep.subr.mxu0 0.0
    %2011 = vmatpush1.msra.mxu0 0.0
    %2012 = vmatprep.subr.mxu0 0.0
    %2013 = vmatpush1.msra.mxu0 0.0
    %2014 = vmatprep.subr.mxu0 0.0
    %2015 = vmatpush1.msra.mxu0 0.0
    %2016 = vmatprep.subr.mxu0 0.0
    %2017 = vmatpush1.msra.mxu0 0.0
    %2018 = vmatprep.subr.mxu0 0.0
    %2019 = vmatpush1.msra.mxu0 0.0
    %2020 = vmatprep.subr.mxu0 0.0
    %2021 = vmatpush1.msra.mxu0 0.0
    %2022 = vmatprep.subr.mxu0 0.0
    %2023 = vmatpush1.msra.mxu0 0.0
    %2024 = vmatprep.subr.mxu0 0.0
    %2025 = vmatpush1.msra.mxu0 0.0
    %2026 = vmatprep.subr.mxu0 0.0
    %2027 = vmatpush1.msra.mxu0 0.0
    %2028 = vmatprep.subr.mxu0 0.0
    %2029 = vmatpush1.msra.mxu0 0.0
    %2030 = vmatprep.subr.mxu0 0.0
    %2031 = vmatpush1.msra.mxu0 0.0
    %2032 = vmatprep.subr.mxu0 0.0
    %2033 = vmatpush1.msra.mxu0 0.0
    %2034 = vmatprep.subr.mxu0 0.0
    %2035 = vmatpush1.msra.mxu0 0.0
    %2036 = vmatprep.subr.mxu0 0.0
    %2037 = vmatpush1.msra.mxu0 0.0
    %2038 = vmatprep.subr.mxu0 0.0
    %2039 = vmatpush1.msra.mxu0 0.0
    %2040 = vmatprep.subr.mxu0 0.0
    %2041 = vmatpush1.msra.mxu0 0.0
    %2042 = vmatprep.subr.mxu0 0.0
    %2043 = vmatpush1.msra.mxu0 0.0
    %2044 = vmatprep.subr.mxu0 0.0
    %2045 = vmatpush1.msra.mxu0 0.0
    %2046 = vmatprep.subr.mxu0 0.0
    %2047 = vmatpush1.msra.mxu0 0.0
    %2048 = vmatprep.subr.mxu0 0.0
    %2049 = vmatpush1.msra.mxu0 0.0
    %2050 = vmatprep.subr.mxu0 0.0
    %2051 = vmatpush1.msra.mxu0 0.0
    %2052 = vmatprep.subr.mxu0 0.0
    %2053 = vmatpush1.msra.mxu0 0.0
    %2054 = vmatprep.subr.mxu0 0.0
    %2055 = vmatpush1.msra.mxu0 0.0
    %2056 = vmatprep.subr.mxu0 0.0
    %2057 = vmatpush1.msra.mxu0 0.0
    %2058 = vmatprep.subr.mxu0 0.0
    %2059 = vmatpush1.msra.mxu0 0.0
    %2060 = vmatprep.mubr.f32.mxu0 0.0
    %2061 = vmatmul.mubr.f32.gmra.mrb[0].mxu0 %v1815
    %v2062 = vpop.f32.mrb[0].mxu0
    %v2063 = vadd.f32 %v1994, %v2062
    %v2064 = vpop.f32.mrb[0].mxu0
    %2065 = vmatprep.mubr.f32.mxu0 0.0
    %2066 = vmatmul.mubr.f32.gmra.mrb[0].mxu0 %v1818
    %v2067 = vpop.f32.mrb[0].mxu0
    %v2068 = vadd.f32 %v1994, %v2067
    %v2069 = vpop.f32.mrb[0].mxu0
    %2070 = vdwg.mxu0
    %2073 = vrot.lane.b32.xlu0 %v1887, 112
    %v2074 = vpop.permute.xlu0 %2073
    %2075 = vrot.lane.b32.xlu0 %v1892, 112
    %v2076 = vpop.permute.xlu0 %2075
    %2079 = vrot.lane.b32.xlu0 %v1975, 112
    %v2080 = vpop.permute.xlu0 %2079
    %2081 = vrot.lane.b32.xlu0 %v1980, 112
    %v2082 = vpop.permute.xlu0 %2081
    %2085 = vrot.lane.b32.xlu0 %v2063, 112
    %v2086 = vpop.permute.xlu0 %2085
    %2087 = vrot.lane.b32.xlu0 %v2068, 112
    %v2088 = vpop.permute.xlu0 %2087
    %v2091 = vsel %vm166, %v1887, 0
    %v2093 = vsel %vm166, %v1975, 0
    %2095 = vmatprep.subr.mxu0 0.0
    %2096 = vmatpush1.xpose.msra.mxu0 %v2093
    %2097 = vmatprep.subr.mxu0 0.0
    %2098 = vmatpush1.xpose.msra.mxu0 0.0
    %2099 = vmatprep.subr.mxu0 0.0
    %2100 = vmatpush1.xpose.msra.mxu0 0.0
    %2101 = vmatprep.subr.mxu0 0.0
    %2102 = vmatpush1.xpose.msra.mxu0 0.0
    %2103 = vmatprep.subr.mxu0 0.0
    %2104 = vmatpush1.xpose.msra.mxu0 0.0
    %2105 = vmatprep.subr.mxu0 0.0
    %2106 = vmatpush1.xpose.msra.mxu0 0.0
    %2107 = vmatprep.subr.mxu0 0.0
    %2108 = vmatpush1.xpose.msra.mxu0 0.0
    %2109 = vmatprep.subr.mxu0 0.0
    %2110 = vmatpush1.xpose.msra.mxu0 0.0
    %2111 = vmatprep.subr.mxu0 0.0
    %2112 = vmatpush1.xpose.msra.mxu0 0.0
    %2113 = vmatprep.subr.mxu0 0.0
    %2114 = vmatpush1.xpose.msra.mxu0 0.0
    %2115 = vmatprep.subr.mxu0 0.0
    %2116 = vmatpush1.xpose.msra.mxu0 0.0
    %2117 = vmatprep.subr.mxu0 0.0
    %2118 = vmatpush1.xpose.msra.mxu0 0.0
    %2119 = vmatprep.subr.mxu0 0.0
    %2120 = vmatpush1.xpose.msra.mxu0 0.0
    %2121 = vmatprep.subr.mxu0 0.0
    %2122 = vmatpush1.xpose.msra.mxu0 0.0
    %2123 = vmatprep.subr.mxu0 0.0
    %2124 = vmatpush1.xpose.msra.mxu0 0.0
    %2125 = vmatprep.subr.mxu0 0.0
    %2126 = vmatpush1.xpose.msra.mxu0 0.0
    %2127 = vmatprep.subr.mxu0 0.0
    %2128 = vmatpush1.xpose.msra.mxu0 0.0
    %2129 = vmatprep.subr.mxu0 0.0
    %2130 = vmatpush1.xpose.msra.mxu0 0.0
    %2131 = vmatprep.subr.mxu0 0.0
    %2132 = vmatpush1.xpose.msra.mxu0 0.0
    %2133 = vmatprep.subr.mxu0 0.0
    %2134 = vmatpush1.xpose.msra.mxu0 0.0
    %2135 = vmatprep.subr.mxu0 0.0
    %2136 = vmatpush1.xpose.msra.mxu0 0.0
    %2137 = vmatprep.subr.mxu0 0.0
    %2138 = vmatpush1.xpose.msra.mxu0 0.0
    %2139 = vmatprep.subr.mxu0 0.0
    %2140 = vmatpush1.xpose.msra.mxu0 0.0
    %2141 = vmatprep.subr.mxu0 0.0
    %2142 = vmatpush1.xpose.msra.mxu0 0.0
    %2143 = vmatprep.subr.mxu0 0.0
    %2144 = vmatpush1.xpose.msra.mxu0 0.0
    %2145 = vmatprep.subr.mxu0 0.0
    %2146 = vmatpush1.xpose.msra.mxu0 0.0
    %2147 = vmatprep.subr.mxu0 0.0
    %2148 = vmatpush1.xpose.msra.mxu0 0.0
    %2149 = vmatprep.subr.mxu0 0.0
    %2150 = vmatpush1.xpose.msra.mxu0 0.0
    %2151 = vmatprep.subr.mxu0 0.0
    %2152 = vmatpush1.xpose.msra.mxu0 0.0
    %2153 = vmatprep.subr.mxu0 0.0
    %2154 = vmatpush1.xpose.msra.mxu0 0.0
    %2155 = vmatprep.subr.mxu0 0.0
    %2156 = vmatpush1.xpose.msra.mxu0 0.0
    %2157 = vmatprep.subr.mxu0 0.0
    %2158 = vmatpush1.xpose.msra.mxu0 0.0
    %2159 = vmatprep.mubr.f32.mxu0 0.0
    %2160 = vmatmul.mubr.f32.gmra.mrb[0].mxu0 %v2091
    %v2161 = vpop.f32.mrb[0].mxu0
    %v2162 = vadd.f32 0.0, %v2161
    %v2163 = vpop.f32.mrb[0].mxu0
    %2164 = vdwg.mxu0
    %v2165 = vsel %vm166, %v1892, 0
    %v2167 = vsel %vm166, %v1980, 0
    %2169 = vmatprep.subr.mxu0 0.0
    %2170 = vmatpush1.xpose.msra.mxu0 %v2167
    %2171 = vmatprep.subr.mxu0 0.0
    %2172 = vmatpush1.xpose.msra.mxu0 0.0
    %2173 = vmatprep.subr.mxu0 0.0
    %2174 = vmatpush1.xpose.msra.mxu0 0.0
    %2175 = vmatprep.subr.mxu0 0.0
    %2176 = vmatpush1.xpose.msra.mxu0 0.0
    %2177 = vmatprep.subr.mxu0 0.0
    %2178 = vmatpush1.xpose.msra.mxu0 0.0
    %2179 = vmatprep.subr.mxu0 0.0
    %2180 = vmatpush1.xpose.msra.mxu0 0.0
    %2181 = vmatprep.subr.mxu0 0.0
    %2182 = vmatpush1.xpose.msra.mxu0 0.0
    %2183 = vmatprep.subr.mxu0 0.0
    %2184 = vmatpush1.xpose.msra.mxu0 0.0
    %2185 = vmatprep.subr.mxu0 0.0
    %2186 = vmatpush1.xpose.msra.mxu0 0.0
    %2187 = vmatprep.subr.mxu0 0.0
    %2188 = vmatpush1.xpose.msra.mxu0 0.0
    %2189 = vmatprep.subr.mxu0 0.0
    %2190 = vmatpush1.xpose.msra.mxu0 0.0
    %2191 = vmatprep.subr.mxu0 0.0
    %2192 = vmatpush1.xpose.msra.mxu0 0.0
    %2193 = vmatprep.subr.mxu0 0.0
    %2194 = vmatpush1.xpose.msra.mxu0 0.0
    %2195 = vmatprep.subr.mxu0 0.0
    %2196 = vmatpush1.xpose.msra.mxu0 0.0
    %2197 = vmatprep.subr.mxu0 0.0
    %2198 = vmatpush1.xpose.msra.mxu0 0.0
    %2199 = vmatprep.subr.mxu0 0.0
    %2200 = vmatpush1.xpose.msra.mxu0 0.0
    %2201 = vmatprep.subr.mxu0 0.0
    %2202 = vmatpush1.xpose.msra.mxu0 0.0
    %2203 = vmatprep.subr.mxu0 0.0
    %2204 = vmatpush1.xpose.msra.mxu0 0.0
    %2205 = vmatprep.subr.mxu0 0.0
    %2206 = vmatpush1.xpose.msra.mxu0 0.0
    %2207 = vmatprep.subr.mxu0 0.0
    %2208 = vmatpush1.xpose.msra.mxu0 0.0
    %2209 = vmatprep.subr.mxu0 0.0
    %2210 = vmatpush1.xpose.msra.mxu0 0.0
    %2211 = vmatprep.subr.mxu0 0.0
    %2212 = vmatpush1.xpose.msra.mxu0 0.0
    %2213 = vmatprep.subr.mxu0 0.0
    %2214 = vmatpush1.xpose.msra.mxu0 0.0
    %2215 = vmatprep.subr.mxu0 0.0
    %2216 = vmatpush1.xpose.msra.mxu0 0.0
    %2217 = vmatprep.subr.mxu0 0.0
    %2218 = vmatpush1.xpose.msra.mxu0 0.0
    %2219 = vmatprep.subr.mxu0 0.0
    %2220 = vmatpush1.xpose.msra.mxu0 0.0
    %2221 = vmatprep.subr.mxu0 0.0
    %2222 = vmatpush1.xpose.msra.mxu0 0.0
    %2223 = vmatprep.subr.mxu0 0.0
    %2224 = vmatpush1.xpose.msra.mxu0 0.0
    %2225 = vmatprep.subr.mxu0 0.0
    %2226 = vmatpush1.xpose.msra.mxu0 0.0
    %2227 = vmatprep.subr.mxu0 0.0
    %2228 = vmatpush1.xpose.msra.mxu0 0.0
    %2229 = vmatprep.subr.mxu0 0.0
    %2230 = vmatpush1.xpose.msra.mxu0 0.0
    %2231 = vmatprep.subr.mxu0 0.0
    %2232 = vmatpush1.xpose.msra.mxu0 0.0
    %2233 = vmatprep.mubr.f32.mxu0 0.0
    %2234 = vmatmul.mubr.f32.gmra.mrb[0].mxu0 %v2165
    %v2235 = vpop.f32.mrb[0].mxu0
    %v2236 = vadd.f32 0.0, %v2235
    %v2237 = vpop.f32.mrb[0].mxu0
    %2238 = vdwg.mxu0
    %v2239 = vsel %vm166, %v2074, 0
    %v2241 = vsel %vm166, %v2080, 0
    %2243 = vmatprep.subr.mxu0 0.0
    %2244 = vmatpush1.xpose.msra.mxu0 %v2241
    %2245 = vmatprep.subr.mxu0 0.0
    %2246 = vmatpush1.xpose.msra.mxu0 0.0
    %2247 = vmatprep.subr.mxu0 0.0
    %2248 = vmatpush1.xpose.msra.mxu0 0.0
    %2249 = vmatprep.subr.mxu0 0.0
    %2250 = vmatpush1.xpose.msra.mxu0 0.0
    %2251 = vmatprep.subr.mxu0 0.0
    %2252 = vmatpush1.xpose.msra.mxu0 0.0
    %2253 = vmatprep.subr.mxu0 0.0
    %2254 = vmatpush1.xpose.msra.mxu0 0.0
    %2255 = vmatprep.subr.mxu0 0.0
    %2256 = vmatpush1.xpose.msra.mxu0 0.0
    %2257 = vmatprep.subr.mxu0 0.0
    %2258 = vmatpush1.xpose.msra.mxu0 0.0
    %2259 = vmatprep.subr.mxu0 0.0
    %2260 = vmatpush1.xpose.msra.mxu0 0.0
    %2261 = vmatprep.subr.mxu0 0.0
    %2262 = vmatpush1.xpose.msra.mxu0 0.0
    %2263 = vmatprep.subr.mxu0 0.0
    %2264 = vmatpush1.xpose.msra.mxu0 0.0
    %2265 = vmatprep.subr.mxu0 0.0
    %2266 = vmatpush1.xpose.msra.mxu0 0.0
    %2267 = vmatprep.subr.mxu0 0.0
    %2268 = vmatpush1.xpose.msra.mxu0 0.0
    %2269 = vmatprep.subr.mxu0 0.0
    %2270 = vmatpush1.xpose.msra.mxu0 0.0
    %2271 = vmatprep.subr.mxu0 0.0
    %2272 = vmatpush1.xpose.msra.mxu0 0.0
    %2273 = vmatprep.subr.mxu0 0.0
    %2274 = vmatpush1.xpose.msra.mxu0 0.0
    %2275 = vmatprep.subr.mxu0 0.0
    %2276 = vmatpush1.xpose.msra.mxu0 0.0
    %2277 = vmatprep.subr.mxu0 0.0
    %2278 = vmatpush1.xpose.msra.mxu0 0.0
    %2279 = vmatprep.subr.mxu0 0.0
    %2280 = vmatpush1.xpose.msra.mxu0 0.0
    %2281 = vmatprep.subr.mxu0 0.0
    %2282 = vmatpush1.xpose.msra.mxu0 0.0
    %2283 = vmatprep.subr.mxu0 0.0
    %2284 = vmatpush1.xpose.msra.mxu0 0.0
    %2285 = vmatprep.subr.mxu0 0.0
    %2286 = vmatpush1.xpose.msra.mxu0 0.0
    %2287 = vmatprep.subr.mxu0 0.0
    %2288 = vmatpush1.xpose.msra.mxu0 0.0
    %2289 = vmatprep.subr.mxu0 0.0
    %2290 = vmatpush1.xpose.msra.mxu0 0.0
    %2291 = vmatprep.subr.mxu0 0.0
    %2292 = vmatpush1.xpose.msra.mxu0 0.0
    %2293 = vmatprep.subr.mxu0 0.0
    %2294 = vmatpush1.xpose.msra.mxu0 0.0
    %2295 = vmatprep.subr.mxu0 0.0
    %2296 = vmatpush1.xpose.msra.mxu0 0.0
    %2297 = vmatprep.subr.mxu0 0.0
    %2298 = vmatpush1.xpose.msra.mxu0 0.0
    %2299 = vmatprep.subr.mxu0 0.0
    %2300 = vmatpush1.xpose.msra.mxu0 0.0
    %2301 = vmatprep.subr.mxu0 0.0
    %2302 = vmatpush1.xpose.msra.mxu0 0.0
    %2303 = vmatprep.subr.mxu0 0.0
    %2304 = vmatpush1.xpose.msra.mxu0 0.0
    %2305 = vmatprep.subr.mxu0 0.0
    %2306 = vmatpush1.xpose.msra.mxu0 0.0
    %2307 = vmatprep.mubr.f32.mxu0 0.0
    %2308 = vmatmul.mubr.f32.gmra.mrb[0].mxu0 %v2239
    %v2309 = vpop.f32.mrb[0].mxu0
    %v2310 = vadd.f32 0.0, %v2309
    %v2311 = vpop.f32.mrb[0].mxu0
    %2312 = vdwg.mxu0
    %v2313 = vsel %vm166, %v2076, 0
    %v2315 = vsel %vm166, %v2082, 0
    %2317 = vmatprep.subr.mxu0 0.0
    %2318 = vmatpush1.xpose.msra.mxu0 %v2315
    %2319 = vmatprep.subr.mxu0 0.0
    %2320 = vmatpush1.xpose.msra.mxu0 0.0
    %2321 = vmatprep.subr.mxu0 0.0
    %2322 = vmatpush1.xpose.msra.mxu0 0.0
    %2323 = vmatprep.subr.mxu0 0.0
    %2324 = vmatpush1.xpose.msra.mxu0 0.0
    %2325 = vmatprep.subr.mxu0 0.0
    %2326 = vmatpush1.xpose.msra.mxu0 0.0
    %2327 = vmatprep.subr.mxu0 0.0
    %2328 = vmatpush1.xpose.msra.mxu0 0.0
    %2329 = vmatprep.subr.mxu0 0.0
    %2330 = vmatpush1.xpose.msra.mxu0 0.0
    %2331 = vmatprep.subr.mxu0 0.0
    %2332 = vmatpush1.xpose.msra.mxu0 0.0
    %2333 = vmatprep.subr.mxu0 0.0
    %2334 = vmatpush1.xpose.msra.mxu0 0.0
    %2335 = vmatprep.subr.mxu0 0.0
    %2336 = vmatpush1.xpose.msra.mxu0 0.0
    %2337 = vmatprep.subr.mxu0 0.0
    %2338 = vmatpush1.xpose.msra.mxu0 0.0
    %2339 = vmatprep.subr.mxu0 0.0
    %2340 = vmatpush1.xpose.msra.mxu0 0.0
    %2341 = vmatprep.subr.mxu0 0.0
    %2342 = vmatpush1.xpose.msra.mxu0 0.0
    %2343 = vmatprep.subr.mxu0 0.0
    %2344 = vmatpush1.xpose.msra.mxu0 0.0
    %2345 = vmatprep.subr.mxu0 0.0
    %2346 = vmatpush1.xpose.msra.mxu0 0.0
    %2347 = vmatprep.subr.mxu0 0.0
    %2348 = vmatpush1.xpose.msra.mxu0 0.0
    %2349 = vmatprep.subr.mxu0 0.0
    %2350 = vmatpush1.xpose.msra.mxu0 0.0
    %2351 = vmatprep.subr.mxu0 0.0
    %2352 = vmatpush1.xpose.msra.mxu0 0.0
    %2353 = vmatprep.subr.mxu0 0.0
    %2354 = vmatpush1.xpose.msra.mxu0 0.0
    %2355 = vmatprep.subr.mxu0 0.0
    %2356 = vmatpush1.xpose.msra.mxu0 0.0
    %2357 = vmatprep.subr.mxu0 0.0
    %2358 = vmatpush1.xpose.msra.mxu0 0.0
    %2359 = vmatprep.subr.mxu0 0.0
    %2360 = vmatpush1.xpose.msra.mxu0 0.0
    %2361 = vmatprep.subr.mxu0 0.0
    %2362 = vmatpush1.xpose.msra.mxu0 0.0
    %2363 = vmatprep.subr.mxu0 0.0
    %2364 = vmatpush1.xpose.msra.mxu0 0.0
    %2365 = vmatprep.subr.mxu0 0.0
    %2366 = vmatpush1.xpose.msra.mxu0 0.0
    %2367 = vmatprep.subr.mxu0 0.0
    %2368 = vmatpush1.xpose.msra.mxu0 0.0
    %2369 = vmatprep.subr.mxu0 0.0
    %2370 = vmatpush1.xpose.msra.mxu0 0.0
    %2371 = vmatprep.subr.mxu0 0.0
    %2372 = vmatpush1.xpose.msra.mxu0 0.0
    %2373 = vmatprep.subr.mxu0 0.0
    %2374 = vmatpush1.xpose.msra.mxu0 0.0
    %2375 = vmatprep.subr.mxu0 0.0
    %2376 = vmatpush1.xpose.msra.mxu0 0.0
    %2377 = vmatprep.subr.mxu0 0.0
    %2378 = vmatpush1.xpose.msra.mxu0 0.0
    %2379 = vmatprep.subr.mxu0 0.0
    %2380 = vmatpush1.xpose.msra.mxu0 0.0
    %2381 = vmatprep.mubr.f32.mxu0 0.0
    %2382 = vmatmul.mubr.f32.gmra.mrb[0].mxu0 %v2313
    %v2383 = vpop.f32.mrb[0].mxu0
    %v2384 = vadd.f32 0.0, %v2383
    %v2385 = vpop.f32.mrb[0].mxu0
    %2386 = vdwg.mxu0
    %v2387 = vmul.f32 %v2162, 0.25
    %v2388 = vmul.f32 %v2236, 0.25
    %v2389 = vmul.f32 %v2310, 0.25
    %v2390 = vmul.f32 %v2384, 0.25
    %v2391 = vadd.f32 %v2387, %v439
    %v2392 = vadd.f32 %v2388, %v440
    %v2393 = vadd.f32 %v2389, %v441
    %v2394 = vadd.f32 %v2390, %v442
    %v2395 = vsel %vm303, %v2391, -inf
    %2396 = vmax.xlane.f32.xlu0 %v2395
    %v2397 = vpop.xlane.xlu0 %2396
    %v2398 = vsel %vm303, %v2392, -inf
    %2399 = vmax.xlane.f32.xlu0 %v2398
    %v2400 = vpop.xlane.xlu0 %2399
    %v2401 = vsel %vm303, %v2393, -inf
    %2402 = vmax.xlane.f32.xlu0 %v2401
    %v2403 = vpop.xlane.xlu0 %2402
    %v2404 = vsel %vm303, %v2394, -inf
    %2405 = vmax.xlane.f32.xlu0 %v2404
    %v2406 = vpop.xlane.xlu0 %2405
    %v2407 = vsub.f32 %v2391, %v2397
    %v2408 = vsub.f32 %v2392, %v2400
    %v2409 = vsub.f32 %v2393, %v2403
    %v2410 = vsub.f32 %v2394, %v2406
    %v2411 = vmul.f32 %v2407, 1.442695
    %v2412 = vpow.pop %v2411
    %v2413 = vmul.f32 %v2408, 1.442695
    %v2414 = vpow.pop %v2413
    %v2415 = vmul.f32 %v2409, 1.442695
    %v2416 = vpow.pop %v2415
    %v2417 = vmul.f32 %v2410, 1.442695
    %v2418 = vpow.pop %v2417
    %v2419 = vsel %vm303, %v2412, 0.0
    %2420 = vadd.xlane.f32.xlu0 %v2419
    %v2421 = vpop.xlane.xlu0 %2420
    %v2422 = vsel %vm303, %v2414, 0.0
    %2423 = vadd.xlane.f32.xlu0 %v2422
    %v2424 = vpop.xlane.xlu0 %2423
    %v2425 = vsel %vm303, %v2416, 0.0
    %2426 = vadd.xlane.f32.xlu0 %v2425
    %v2427 = vpop.xlane.xlu0 %2426
    %v2428 = vsel %vm303, %v2418, 0.0
    %2429 = vadd.xlane.f32.xlu0 %v2428
    %v2430 = vpop.xlane.xlu0 %2429
    %v2431 = vrcp.pop %v2421
    %v2432 = vmul.f32 %v2412, %v2431
    %v2433 = vrcp.pop %v2424
    %v2434 = vmul.f32 %v2414, %v2433
    %v2435 = vrcp.pop %v2427
    %v2436 = vmul.f32 %v2416, %v2435
    %v2437 = vrcp.pop %v2430
    %v2438 = vmul.f32 %v2418, %v2437
    %v2440 = vsel %vm303, %v2432, 0
    %2442 = vmatprep.subr.mxu0 0.0
    %2443 = vmatpush1.msra.mxu0 %v2063
    %2444 = vmatprep.subr.mxu0 0.0
    %2445 = vmatpush1.msra.mxu0 0.0
    %2446 = vmatprep.subr.mxu0 0.0
    %2447 = vmatpush1.msra.mxu0 0.0
    %2448 = vmatprep.subr.mxu0 0.0
    %2449 = vmatpush1.msra.mxu0 0.0
    %2450 = vmatprep.subr.mxu0 0.0
    %2451 = vmatpush1.msra.mxu0 0.0
    %2452 = vmatprep.subr.mxu0 0.0
    %2453 = vmatpush1.msra.mxu0 0.0
    %2454 = vmatprep.subr.mxu0 0.0
    %2455 = vmatpush1.msra.mxu0 0.0
    %2456 = vmatprep.subr.mxu0 0.0
    %2457 = vmatpush1.msra.mxu0 0.0
    %2458 = vmatprep.subr.mxu0 0.0
    %2459 = vmatpush1.msra.mxu0 0.0
    %2460 = vmatprep.subr.mxu0 0.0
    %2461 = vmatpush1.msra.mxu0 0.0
    %2462 = vmatprep.subr.mxu0 0.0
    %2463 = vmatpush1.msra.mxu0 0.0
    %2464 = vmatprep.subr.mxu0 0.0
    %2465 = vmatpush1.msra.mxu0 0.0
    %2466 = vmatprep.subr.mxu0 0.0
    %2467 = vmatpush1.msra.mxu0 0.0
    %2468 = vmatprep.subr.mxu0 0.0
    %2469 = vmatpush1.msra.mxu0 0.0
    %2470 = vmatprep.subr.mxu0 0.0
    %2471 = vmatpush1.msra.mxu0 0.0
    %2472 = vmatprep.subr.mxu0 0.0
    %2473 = vmatpush1.msra.mxu0 0.0
    %2474 = vmatprep.subr.mxu0 0.0
    %2475 = vmatpush1.msra.mxu0 0.0
    %2476 = vmatprep.subr.mxu0 0.0
    %2477 = vmatpush1.msra.mxu0 0.0
    %2478 = vmatprep.subr.mxu0 0.0
    %2479 = vmatpush1.msra.mxu0 0.0
    %2480 = vmatprep.subr.mxu0 0.0
    %2481 = vmatpush1.msra.mxu0 0.0
    %2482 = vmatprep.subr.mxu0 0.0
    %2483 = vmatpush1.msra.mxu0 0.0
    %2484 = vmatprep.subr.mxu0 0.0
    %2485 = vmatpush1.msra.mxu0 0.0
    %2486 = vmatprep.subr.mxu0 0.0
    %2487 = vmatpush1.msra.mxu0 0.0
    %2488 = vmatprep.subr.mxu0 0.0
    %2489 = vmatpush1.msra.mxu0 0.0
    %2490 = vmatprep.subr.mxu0 0.0
    %2491 = vmatpush1.msra.mxu0 0.0
    %2492 = vmatprep.subr.mxu0 0.0
    %2493 = vmatpush1.msra.mxu0 0.0
    %2494 = vmatprep.subr.mxu0 0.0
    %2495 = vmatpush1.msra.mxu0 0.0
    %2496 = vmatprep.subr.mxu0 0.0
    %2497 = vmatpush1.msra.mxu0 0.0
    %2498 = vmatprep.subr.mxu0 0.0
    %2499 = vmatpush1.msra.mxu0 0.0
    %2500 = vmatprep.subr.mxu0 0.0
    %2501 = vmatpush1.msra.mxu0 0.0
    %2502 = vmatprep.subr.mxu0 0.0
    %2503 = vmatpush1.msra.mxu0 0.0
    %2504 = vmatprep.subr.mxu0 0.0
    %2505 = vmatpush1.msra.mxu0 0.0
    %2506 = vmatprep.mubr.f32.mxu0 0.0
    %2507 = vmatmul.mubr.f32.gmra.mrb[0].mxu0 %v2440
    %v2508 = vpop.f32.mrb[0].mxu0
    %v2509 = vadd.f32 0.0, %v2508
    %v2510 = vpop.f32.mrb[0].mxu0
    %2511 = vdwg.mxu0
    %v2513 = vsel %vm303, %v2434, 0
    %2515 = vmatprep.subr.mxu0 0.0
    %2516 = vmatpush1.msra.mxu0 %v2068
    %2517 = vmatprep.subr.mxu0 0.0
    %2518 = vmatpush1.msra.mxu0 0.0
    %2519 = vmatprep.subr.mxu0 0.0
    %2520 = vmatpush1.msra.mxu0 0.0
    %2521 = vmatprep.subr.mxu0 0.0
    %2522 = vmatpush1.msra.mxu0 0.0
    %2523 = vmatprep.subr.mxu0 0.0
    %2524 = vmatpush1.msra.mxu0 0.0
    %2525 = vmatprep.subr.mxu0 0.0
    %2526 = vmatpush1.msra.mxu0 0.0
    %2527 = vmatprep.subr.mxu0 0.0
    %2528 = vmatpush1.msra.mxu0 0.0
    %2529 = vmatprep.subr.mxu0 0.0
    %2530 = vmatpush1.msra.mxu0 0.0
    %2531 = vmatprep.subr.mxu0 0.0
    %2532 = vmatpush1.msra.mxu0 0.0
    %2533 = vmatprep.subr.mxu0 0.0
    %2534 = vmatpush1.msra.mxu0 0.0
    %2535 = vmatprep.subr.mxu0 0.0
    %2536 = vmatpush1.msra.mxu0 0.0
    %2537 = vmatprep.subr.mxu0 0.0
    %2538 = vmatpush1.msra.mxu0 0.0
    %2539 = vmatprep.subr.mxu0 0.0
    %2540 = vmatpush1.msra.mxu0 0.0
    %2541 = vmatprep.subr.mxu0 0.0
    %2542 = vmatpush1.msra.mxu0 0.0
    %2543 = vmatprep.subr.mxu0 0.0
    %2544 = vmatpush1.msra.mxu0 0.0
    %2545 = vmatprep.subr.mxu0 0.0
    %2546 = vmatpush1.msra.mxu0 0.0
    %2547 = vmatprep.subr.mxu0 0.0
    %2548 = vmatpush1.msra.mxu0 0.0
    %2549 = vmatprep.subr.mxu0 0.0
    %2550 = vmatpush1.msra.mxu0 0.0
    %2551 = vmatprep.subr.mxu0 0.0
    %2552 = vmatpush1.msra.mxu0 0.0
    %2553 = vmatprep.subr.mxu0 0.0
    %2554 = vmatpush1.msra.mxu0 0.0
    %2555 = vmatprep.subr.mxu0 0.0
    %2556 = vmatpush1.msra.mxu0 0.0
    %2557 = vmatprep.subr.mxu0 0.0
    %2558 = vmatpush1.msra.mxu0 0.0
    %2559 = vmatprep.subr.mxu0 0.0
    %2560 = vmatpush1.msra.mxu0 0.0
    %2561 = vmatprep.subr.mxu0 0.0
    %2562 = vmatpush1.msra.mxu0 0.0
    %2563 = vmatprep.subr.mxu0 0.0
    %2564 = vmatpush1.msra.mxu0 0.0
    %2565 = vmatprep.subr.mxu0 0.0
    %2566 = vmatpush1.msra.mxu0 0.0
    %2567 = vmatprep.subr.mxu0 0.0
    %2568 = vmatpush1.msra.mxu0 0.0
    %2569 = vmatprep.subr.mxu0 0.0
    %2570 = vmatpush1.msra.mxu0 0.0
    %2571 = vmatprep.subr.mxu0 0.0
    %2572 = vmatpush1.msra.mxu0 0.0
    %2573 = vmatprep.subr.mxu0 0.0
    %2574 = vmatpush1.msra.mxu0 0.0
    %2575 = vmatprep.subr.mxu0 0.0
    %2576 = vmatpush1.msra.mxu0 0.0
    %2577 = vmatprep.subr.mxu0 0.0
    %2578 = vmatpush1.msra.mxu0 0.0
    %2579 = vmatprep.mubr.f32.mxu0 0.0
    %2580 = vmatmul.mubr.f32.gmra.mrb[0].mxu0 %v2513
    %v2581 = vpop.f32.mrb[0].mxu0
    %v2582 = vadd.f32 0.0, %v2581
    %v2583 = vpop.f32.mrb[0].mxu0
    %2584 = vdwg.mxu0
    %v2586 = vsel %vm303, %v2436, 0
    %2588 = vmatprep.subr.mxu0 0.0
    %2589 = vmatpush1.msra.mxu0 %v2086
    %2590 = vmatprep.subr.mxu0 0.0
    %2591 = vmatpush1.msra.mxu0 0.0
    %2592 = vmatprep.subr.mxu0 0.0
    %2593 = vmatpush1.msra.mxu0 0.0
    %2594 = vmatprep.subr.mxu0 0.0
    %2595 = vmatpush1.msra.mxu0 0.0
    %2596 = vmatprep.subr.mxu0 0.0
    %2597 = vmatpush1.msra.mxu0 0.0
    %2598 = vmatprep.subr.mxu0 0.0
    %2599 = vmatpush1.msra.mxu0 0.0
    %2600 = vmatprep.subr.mxu0 0.0
    %2601 = vmatpush1.msra.mxu0 0.0
    %2602 = vmatprep.subr.mxu0 0.0
    %2603 = vmatpush1.msra.mxu0 0.0
    %2604 = vmatprep.subr.mxu0 0.0
    %2605 = vmatpush1.msra.mxu0 0.0
    %2606 = vmatprep.subr.mxu0 0.0
    %2607 = vmatpush1.msra.mxu0 0.0
    %2608 = vmatprep.subr.mxu0 0.0
    %2609 = vmatpush1.msra.mxu0 0.0
    %2610 = vmatprep.subr.mxu0 0.0
    %2611 = vmatpush1.msra.mxu0 0.0
    %2612 = vmatprep.subr.mxu0 0.0
    %2613 = vmatpush1.msra.mxu0 0.0
    %2614 = vmatprep.subr.mxu0 0.0
    %2615 = vmatpush1.msra.mxu0 0.0
    %2616 = vmatprep.subr.mxu0 0.0
    %2617 = vmatpush1.msra.mxu0 0.0
    %2618 = vmatprep.subr.mxu0 0.0
    %2619 = vmatpush1.msra.mxu0 0.0
    %2620 = vmatprep.subr.mxu0 0.0
    %2621 = vmatpush1.msra.mxu0 0.0
    %2622 = vmatprep.subr.mxu0 0.0
    %2623 = vmatpush1.msra.mxu0 0.0
    %2624 = vmatprep.subr.mxu0 0.0
    %2625 = vmatpush1.msra.mxu0 0.0
    %2626 = vmatprep.subr.mxu0 0.0
    %2627 = vmatpush1.msra.mxu0 0.0
    %2628 = vmatprep.subr.mxu0 0.0
    %2629 = vmatpush1.msra.mxu0 0.0
    %2630 = vmatprep.subr.mxu0 0.0
    %2631 = vmatpush1.msra.mxu0 0.0
    %2632 = vmatprep.subr.mxu0 0.0
    %2633 = vmatpush1.msra.mxu0 0.0
    %2634 = vmatprep.subr.mxu0 0.0
    %2635 = vmatpush1.msra.mxu0 0.0
    %2636 = vmatprep.subr.mxu0 0.0
    %2637 = vmatpush1.msra.mxu0 0.0
    %2638 = vmatprep.subr.mxu0 0.0
    %2639 = vmatpush1.msra.mxu0 0.0
    %2640 = vmatprep.subr.mxu0 0.0
    %2641 = vmatpush1.msra.mxu0 0.0
    %2642 = vmatprep.subr.mxu0 0.0
    %2643 = vmatpush1.msra.mxu0 0.0
    %2644 = vmatprep.subr.mxu0 0.0
    %2645 = vmatpush1.msra.mxu0 0.0
    %2646 = vmatprep.subr.mxu0 0.0
    %2647 = vmatpush1.msra.mxu0 0.0
    %2648 = vmatprep.subr.mxu0 0.0
    %2649 = vmatpush1.msra.mxu0 0.0
    %2650 = vmatprep.subr.mxu0 0.0
    %2651 = vmatpush1.msra.mxu0 0.0
    %2652 = vmatprep.mubr.f32.mxu0 0.0
    %2653 = vmatmul.mubr.f32.gmra.mrb[0].mxu0 %v2586
    %v2654 = vpop.f32.mrb[0].mxu0
    %v2655 = vadd.f32 0.0, %v2654
    %v2656 = vpop.f32.mrb[0].mxu0
    %2657 = vdwg.mxu0
    %v2659 = vsel %vm303, %v2438, 0
    %2661 = vmatprep.subr.mxu0 0.0
    %2662 = vmatpush1.msra.mxu0 %v2088
    %2663 = vmatprep.subr.mxu0 0.0
    %2664 = vmatpush1.msra.mxu0 0.0
    %2665 = vmatprep.subr.mxu0 0.0
    %2666 = vmatpush1.msra.mxu0 0.0
    %2667 = vmatprep.subr.mxu0 0.0
    %2668 = vmatpush1.msra.mxu0 0.0
    %2669 = vmatprep.subr.mxu0 0.0
    %2670 = vmatpush1.msra.mxu0 0.0
    %2671 = vmatprep.subr.mxu0 0.0
    %2672 = vmatpush1.msra.mxu0 0.0
    %2673 = vmatprep.subr.mxu0 0.0
    %2674 = vmatpush1.msra.mxu0 0.0
    %2675 = vmatprep.subr.mxu0 0.0
    %2676 = vmatpush1.msra.mxu0 0.0
    %2677 = vmatprep.subr.mxu0 0.0
    %2678 = vmatpush1.msra.mxu0 0.0
    %2679 = vmatprep.subr.mxu0 0.0
    %2680 = vmatpush1.msra.mxu0 0.0
    %2681 = vmatprep.subr.mxu0 0.0
    %2682 = vmatpush1.msra.mxu0 0.0
    %2683 = vmatprep.subr.mxu0 0.0
    %2684 = vmatpush1.msra.mxu0 0.0
    %2685 = vmatprep.subr.mxu0 0.0
    %2686 = vmatpush1.msra.mxu0 0.0
    %2687 = vmatprep.subr.mxu0 0.0
    %2688 = vmatpush1.msra.mxu0 0.0
    %2689 = vmatprep.subr.mxu0 0.0
    %2690 = vmatpush1.msra.mxu0 0.0
    %2691 = vmatprep.subr.mxu0 0.0
    %2692 = vmatpush1.msra.mxu0 0.0
    %2693 = vmatprep.subr.mxu0 0.0
    %2694 = vmatpush1.msra.mxu0 0.0
    %2695 = vmatprep.subr.mxu0 0.0
    %2696 = vmatpush1.msra.mxu0 0.0
    %2697 = vmatprep.subr.mxu0 0.0
    %2698 = vmatpush1.msra.mxu0 0.0
    %2699 = vmatprep.subr.mxu0 0.0
    %2700 = vmatpush1.msra.mxu0 0.0
    %2701 = vmatprep.subr.mxu0 0.0
    %2702 = vmatpush1.msra.mxu0 0.0
    %2703 = vmatprep.subr.mxu0 0.0
    %2704 = vmatpush1.msra.mxu0 0.0
    %2705 = vmatprep.subr.mxu0 0.0
    %2706 = vmatpush1.msra.mxu0 0.0
    %2707 = vmatprep.subr.mxu0 0.0
    %2708 = vmatpush1.msra.mxu0 0.0
    %2709 = vmatprep.subr.mxu0 0.0
    %2710 = vmatpush1.msra.mxu0 0.0
    %2711 = vmatprep.subr.mxu0 0.0
    %2712 = vmatpush1.msra.mxu0 0.0
    %2713 = vmatprep.subr.mxu0 0.0
    %2714 = vmatpush1.msra.mxu0 0.0
    %2715 = vmatprep.subr.mxu0 0.0
    %2716 = vmatpush1.msra.mxu0 0.0
    %2717 = vmatprep.subr.mxu0 0.0
    %2718 = vmatpush1.msra.mxu0 0.0
    %2719 = vmatprep.subr.mxu0 0.0
    %2720 = vmatpush1.msra.mxu0 0.0
    %2721 = vmatprep.subr.mxu0 0.0
    %2722 = vmatpush1.msra.mxu0 0.0
    %2723 = vmatprep.subr.mxu0 0.0
    %2724 = vmatpush1.msra.mxu0 0.0
    %2725 = vmatprep.mubr.f32.mxu0 0.0
    %2726 = vmatmul.mubr.f32.gmra.mrb[0].mxu0 %v2659
    %v2727 = vpop.f32.mrb[0].mxu0
    %v2728 = vadd.f32 0.0, %v2727
    %v2729 = vpop.f32.mrb[0].mxu0
    %2730 = vdwg.mxu0
    %2733 = vrot.lane.b32.xlu0 %v2655, 16
    %v2734 = vpop.permute.xlu0 %2733
    %2735 = vrot.lane.b32.xlu0 %v2728, 16
    %v2736 = vpop.permute.xlu0 %2735
    %v2739 = vsel %vm166, %v2509, %v2734
    %v2740 = vsel %vm166, %v2582, %v2736
    %s2741 = scalar_lea.vmem %s35, 32
    %v2742 = vld [vmem:[%s2741] sm:$0xff]
    %v2743 = vld [vmem:[%s2741 + $0x8] sm:$0xff]
    %v2744 = vld [vmem:[%s2741 + $0x10] sm:$0xff]
    %v2745 = vld [vmem:[%s2741 + $0x18] sm:$0xff]
    %s2746 = scalar_lea.vmem %s37, 1
    %v2747 = vld [vmem:[%s2746] sm:$0x1]
    %v2749 = vlaneseq
    %v2750 = vshrl.u32 %v2749, 7
    %v2751 = vsub.s32 0, %v2750
    %v2752 = vrot.slane %v2747, %v2751
    %v2755 = vsel %vm454, %v2739, 0
    %v2758 = vsel %vm454, %v2740, 0
    %2760 = vmatprep.subr.mxu0 0.0
    %2761 = vmatpush1.msra.mxu0 %v2742
    %2762 = vmatprep.subr.mxu0 0.0
    %2763 = vmatpush1.msra.mxu0 %v2743
    %2764 = vmatprep.subr.mxu0 0.0
    %2765 = vmatpush1.msra.mxu0 %v2744
    %2766 = vmatprep.subr.mxu0 0.0
    %2767 = vmatpush1.msra.mxu0 %v2745
    %2768 = vmatprep.subr.mxu0 0.0
    %2769 = vmatpush1.msra.mxu0 0.0
    %2770 = vmatprep.subr.mxu0 0.0
    %2771 = vmatpush1.msra.mxu0 0.0
    %2772 = vmatprep.subr.mxu0 0.0
    %2773 = vmatpush1.msra.mxu0 0.0
    %2774 = vmatprep.subr.mxu0 0.0
    %2775 = vmatpush1.msra.mxu0 0.0
    %2776 = vmatprep.subr.mxu0 0.0
    %2777 = vmatpush1.msra.mxu0 0.0
    %2778 = vmatprep.subr.mxu0 0.0
    %2779 = vmatpush1.msra.mxu0 0.0
    %2780 = vmatprep.subr.mxu0 0.0
    %2781 = vmatpush1.msra.mxu0 0.0
    %2782 = vmatprep.subr.mxu0 0.0
    %2783 = vmatpush1.msra.mxu0 0.0
    %2784 = vmatprep.subr.mxu0 0.0
    %2785 = vmatpush1.msra.mxu0 0.0
    %2786 = vmatprep.subr.mxu0 0.0
    %2787 = vmatpush1.msra.mxu0 0.0
    %2788 = vmatprep.subr.mxu0 0.0
    %2789 = vmatpush1.msra.mxu0 0.0
    %2790 = vmatprep.subr.mxu0 0.0
    %2791 = vmatpush1.msra.mxu0 0.0
    %2792 = vmatprep.subr.mxu0 0.0
    %2793 = vmatpush1.msra.mxu0 0.0
    %2794 = vmatprep.subr.mxu0 0.0
    %2795 = vmatpush1.msra.mxu0 0.0
    %2796 = vmatprep.subr.mxu0 0.0
    %2797 = vmatpush1.msra.mxu0 0.0
    %2798 = vmatprep.subr.mxu0 0.0
    %2799 = vmatpush1.msra.mxu0 0.0
    %2800 = vmatprep.subr.mxu0 0.0
    %2801 = vmatpush1.msra.mxu0 0.0
    %2802 = vmatprep.subr.mxu0 0.0
    %2803 = vmatpush1.msra.mxu0 0.0
    %2804 = vmatprep.subr.mxu0 0.0
    %2805 = vmatpush1.msra.mxu0 0.0
    %2806 = vmatprep.subr.mxu0 0.0
    %2807 = vmatpush1.msra.mxu0 0.0
    %2808 = vmatprep.subr.mxu0 0.0
    %2809 = vmatpush1.msra.mxu0 0.0
    %2810 = vmatprep.subr.mxu0 0.0
    %2811 = vmatpush1.msra.mxu0 0.0
    %2812 = vmatprep.subr.mxu0 0.0
    %2813 = vmatpush1.msra.mxu0 0.0
    %2814 = vmatprep.subr.mxu0 0.0
    %2815 = vmatpush1.msra.mxu0 0.0
    %2816 = vmatprep.subr.mxu0 0.0
    %2817 = vmatpush1.msra.mxu0 0.0
    %2818 = vmatprep.subr.mxu0 0.0
    %2819 = vmatpush1.msra.mxu0 0.0
    %2820 = vmatprep.subr.mxu0 0.0
    %2821 = vmatpush1.msra.mxu0 0.0
    %2822 = vmatprep.subr.mxu0 0.0
    %2823 = vmatpush1.msra.mxu0 0.0
    %2824 = vmatprep.mubr.f32.mxu0 0.0
    %2825 = vmatmul.mubr.f32.gmra.mrb[0].mxu0 %v2755
    %v2826 = vpop.f32.mrb[0].mxu0
    %v2827 = vadd.f32 %v2752, %v2826
    %v2828 = vpop.f32.mrb[0].mxu0
    %2829 = vmatprep.mubr.f32.mxu0 0.0
    %2830 = vmatmul.mubr.f32.gmra.mrb[0].mxu0 %v2758
    %v2831 = vpop.f32.mrb[0].mxu0
    %v2832 = vadd.f32 %v2752, %v2831
    %v2833 = vpop.f32.mrb[0].mxu0
    %2834 = vdwg.mxu0
    %v2835 = vadd.f32 %v2827, %v1799
    %v2836 = vadd.f32 %v2832, %v1800
    %s2837 = scalar_lea.vmem %s39, 1
    %v2838 = vld [vmem:[%s2837] sm:$0x1]
    %s2839 = scalar_lea.vmem %s41, 1
    %v2840 = vld [vmem:[%s2839] sm:$0x1]
    %v2841 = vsel %vm454, %v2835, 0.0
    %2842 = vadd.xlane.f32.xlu0 %v2841
    %v2843 = vpop.xlane.xlu0 %2842
    %v2844 = vsel %vm454, %v2836, 0.0
    %2845 = vadd.xlane.f32.xlu0 %v2844
    %v2846 = vpop.xlane.xlu0 %2845
    %v2847 = vmul.f32 %v2843, %v1480
    %v2848 = vmul.f32 %v2846, %v1480
    %v2849 = vsub.f32 %v2835, %v2847
    %v2850 = vsub.f32 %v2836, %v2848
    %v2851 = vmul.f32 %v2849, %v2849
    %v2852 = vmul.f32 %v2850, %v2850
    %v2853 = vsel %vm454, %v2851, 0.0
    %2854 = vadd.xlane.f32.xlu0 %v2853
    %v2855 = vpop.xlane.xlu0 %2854
    %v2856 = vsel %vm454, %v2852, 0.0
    %2857 = vadd.xlane.f32.xlu0 %v2856
    %v2858 = vpop.xlane.xlu0 %2857
    %v2859 = vmul.f32 %v2855, %v1480
    %v2860 = vmul.f32 %v2858, %v1480
    %v2861 = vadd.f32 %v2859, 1e-12
    %v2862 = vadd.f32 %v2860, 1e-12
    %v2863 = vrsqrt.pop %v2861
    %v2864 = vrsqrt.pop %v2862
    %v2865 = vmul.f32 %v2849, %v2863
    %v2866 = vmul.f32 %v2850, %v2864
    %v2868 = vlaneseq
    %v2869 = vshrl.u32 %v2868, 7
    %v2870 = vsub.s32 0, %v2869
    %v2871 = vrot.slane %v2838, %v2870
    %v2873 = vmul.f32 %v2865, %v2871
    %v2874 = vmul.f32 %v2866, %v2871
    %v2876 = vlaneseq
    %v2877 = vshrl.u32 %v2876, 7
    %v2878 = vsub.s32 0, %v2877
    %v2879 = vrot.slane %v2840, %v2878
    %v2881 = vadd.f32 %v2873, %v2879
    %v2882 = vadd.f32 %v2874, %v2879
    %s2883 = scalar_lea.vmem %s43, 32
    %v2884 = vld [vmem:[%s2883] sm:$0xff]
    %v2885 = vld [vmem:[%s2883 + $0x8] sm:$0xff]
    %v2886 = vld [vmem:[%s2883 + $0x10] sm:$0xff]
    %v2887 = vld [vmem:[%s2883 + $0x18] sm:$0xff]
    %s2888 = scalar_lea.vmem %s45, 1
    %v2889 = vld [vmem:[%s2888] sm:$0x1]
    %v2891 = vlaneseq
    %v2892 = vshrl.u32 %v2891, 7
    %v2893 = vsub.s32 0, %v2892
    %v2894 = vrot.slane %v2889, %v2893
    %v2897 = vsel %vm454, %v2881, 0
    %v2900 = vsel %vm454, %v2882, 0
    %2902 = vmatprep.subr.mxu0 0.0
    %2903 = vmatpush1.msra.mxu0 %v2884
    %2904 = vmatprep.subr.mxu0 0.0
    %2905 = vmatpush1.msra.mxu0 %v2885
    %2906 = vmatprep.subr.mxu0 0.0
    %2907 = vmatpush1.msra.mxu0 %v2886
    %2908 = vmatprep.subr.mxu0 0.0
    %2909 = vmatpush1.msra.mxu0 %v2887
    %2910 = vmatprep.subr.mxu0 0.0
    %2911 = vmatpush1.msra.mxu0 0.0
    %2912 = vmatprep.subr.mxu0 0.0
    %2913 = vmatpush1.msra.mxu0 0.0
    %2914 = vmatprep.subr.mxu0 0.0
    %2915 = vmatpush1.msra.mxu0 0.0
    %2916 = vmatprep.subr.mxu0 0.0
    %2917 = vmatpush1.msra.mxu0 0.0
    %2918 = vmatprep.subr.mxu0 0.0
    %2919 = vmatpush1.msra.mxu0 0.0
    %2920 = vmatprep.subr.mxu0 0.0
    %2921 = vmatpush1.msra.mxu0 0.0
    %2922 = vmatprep.subr.mxu0 0.0
    %2923 = vmatpush1.msra.mxu0 0.0
    %2924 = vmatprep.subr.mxu0 0.0
    %2925 = vmatpush1.msra.mxu0 0.0
    %2926 = vmatprep.subr.mxu0 0.0
    %2927 = vmatpush1.msra.mxu0 0.0
    %2928 = vmatprep.subr.mxu0 0.0
    %2929 = vmatpush1.msra.mxu0 0.0
    %2930 = vmatprep.subr.mxu0 0.0
    %2931 = vmatpush1.msra.mxu0 0.0
    %2932 = vmatprep.subr.mxu0 0.0
    %2933 = vmatpush1.msra.mxu0 0.0
    %2934 = vmatprep.subr.mxu0 0.0
    %2935 = vmatpush1.msra.mxu0 0.0
    %2936 = vmatprep.subr.mxu0 0.0
    %2937 = vmatpush1.msra.mxu0 0.0
    %2938 = vmatprep.subr.mxu0 0.0
    %2939 = vmatpush1.msra.mxu0 0.0
    %2940 = vmatprep.subr.mxu0 0.0
    %2941 = vmatpush1.msra.mxu0 0.0
    %2942 = vmatprep.subr.mxu0 0.0
    %2943 = vmatpush1.msra.mxu0 0.0
    %2944 = vmatprep.subr.mxu0 0.0
    %2945 = vmatpush1.msra.mxu0 0.0
    %2946 = vmatprep.subr.mxu0 0.0
    %2947 = vmatpush1.msra.mxu0 0.0
    %2948 = vmatprep.subr.mxu0 0.0
    %2949 = vmatpush1.msra.mxu0 0.0
    %2950 = vmatprep.subr.mxu0 0.0
    %2951 = vmatpush1.msra.mxu0 0.0
    %2952 = vmatprep.subr.mxu0 0.0
    %2953 = vmatpush1.msra.mxu0 0.0
    %2954 = vmatprep.subr.mxu0 0.0
    %2955 = vmatpush1.msra.mxu0 0.0
    %2956 = vmatprep.subr.mxu0 0.0
    %2957 = vmatpush1.msra.mxu0 0.0
    %2958 = vmatprep.subr.mxu0 0.0
    %2959 = vmatpush1.msra.mxu0 0.0
    %2960 = vmatprep.subr.mxu0 0.0
    %2961 = vmatpush1.msra.mxu0 0.0
    %2962 = vmatprep.subr.mxu0 0.0
    %2963 = vmatpush1.msra.mxu0 0.0
    %2964 = vmatprep.subr.mxu0 0.0
    %2965 = vmatpush1.msra.mxu0 0.0
    %2966 = vmatprep.mubr.f32.mxu0 0.0
    %2967 = vmatmul.mubr.f32.gmra.mrb[0].mxu0 %v2897
    %v2968 = vpop.f32.mrb[0].mxu0
    %v2969 = vadd.f32 %v2894, %v2968
    %v2970 = vpop.f32.mrb[0].mxu0
    %2971 = vmatprep.mubr.f32.mxu0 0.0
    %2972 = vmatmul.mubr.f32.gmra.mrb[0].mxu0 %v2900
    %v2973 = vpop.f32.mrb[0].mxu0
    %v2974 = vadd.f32 %v2894, %v2973
    %v2975 = vpop.f32.mrb[0].mxu0
    %2976 = vdwg.mxu0
    %v2977 = vmul.f32 %v2969, 0.5
    %v2978 = vmul.f32 %v2974, 0.5
    %v2979 = vmul.f32 %v2969, 0.70710677
    %v2980 = vmul.f32 %v2974, 0.70710677
    %vm2981 = vcmp.ge.f32.partialorder %v2979, 0.0
    %vm2982 = vcmp.ge.f32.partialorder %v2980, 0.0
    %v2983 = vsel %vm2981, 1.0, -1.0
    %v2984 = vsel %vm2982, 1.0, -1.0
    %v2985 = vand.u32 2147483647, %v2979
    %v2986 = vand.u32 2147483647, %v2980
    %v2987 = vmul.f32 %v2985, 0.3275911
    %v2988 = vmul.f32 %v2986, 0.3275911
    %v2989 = vadd.f32 %v2987, 1.0
    %v2990 = vadd.f32 %v2988, 1.0
    %v2991 = vrcp.pop %v2989
    %v2992 = vmul.f32 1.0, %v2991
    %v2993 = vrcp.pop %v2990
    %v2994 = vmul.f32 1.0, %v2993
    %v2995 = vmul.f32 %v2992, 1.0614054
    %v2996 = vmul.f32 %v2994, 1.0614054
    %v2997 = vadd.f32 %v2995, -1.4531521
    %v2998 = vadd.f32 %v2996, -1.4531521
    %v2999 = vmul.f32 %v2997, %v2992
    %v3000 = vmul.f32 %v2998, %v2994
    %v3001 = vadd.f32 %v2999, 1.4214138
    %v3002 = vadd.f32 %v3000, 1.4214138
    %v3003 = vmul.f32 %v3001, %v2992
    %v3004 = vmul.f32 %v3002, %v2994
    %v3005 = vadd.f32 %v3003, -0.28449672
    %v3006 = vadd.f32 %v3004, -0.28449672
    %v3007 = vmul.f32 %v3005, %v2992
    %v3008 = vmul.f32 %v3006, %v2994
    %v3009 = vadd.f32 %v3007, 0.2548296
    %v3010 = vadd.f32 %v3008, 0.2548296
    %v3011 = vmul.f32 %v3009, %v2992
    %v3012 = vmul.f32 %v3010, %v2994
    %v3013 = vsub.f32 0.0, %v2985
    %v3014 = vsub.f32 0.0, %v2986
    %v3015 = vmul.f32 %v3013, %v2985
    %v3016 = vmul.f32 %v3014, %v2986
    %v3017 = vmul.f32 %v3015, 1.442695
    %v3018 = vpow.pop %v3017
    %v3019 = vmul.f32 %v3016, 1.442695
    %v3020 = vpow.pop %v3019
    %v3021 = vmul.f32 %v3011, %v3018
    %v3022 = vmul.f32 %v3012, %v3020
    %v3023 = vsub.f32 1.0, %v3021
    %v3024 = vsub.f32 1.0, %v3022
    %v3025 = vmul.f32 %v2983, %v3023
    %v3026 = vmul.f32 %v2984, %v3024
    %v3027 = vadd.f32 %v3025, 1.0
    %v3028 = vadd.f32 %v3026, 1.0
    %v3029 = vmul.f32 %v2977, %v3027
    %v3030 = vmul.f32 %v2978, %v3028
    %s3031 = scalar_lea.vmem %s47, 32
    %v3032 = vld [vmem:[%s3031] sm:$0xff]
    %v3033 = vld [vmem:[%s3031 + $0x8] sm:$0xff]
    %v3034 = vld [vmem:[%s3031 + $0x10] sm:$0xff]
    %v3035 = vld [vmem:[%s3031 + $0x18] sm:$0xff]
    %s3036 = scalar_lea.vmem %s49, 1
    %v3037 = vld [vmem:[%s3036] sm:$0x1]
    %v3039 = vlaneseq
    %v3040 = vshrl.u32 %v3039, 7
    %v3041 = vsub.s32 0, %v3040
    %v3042 = vrot.slane %v3037, %v3041
    %v3045 = vsel %vm454, %v3029, 0
    %v3048 = vsel %vm454, %v3030, 0
    %3050 = vmatprep.subr.mxu0 0.0
    %3051 = vmatpush1.msra.mxu0 %v3032
    %3052 = vmatprep.subr.mxu0 0.0
    %3053 = vmatpush1.msra.mxu0 %v3033
    %3054 = vmatprep.subr.mxu0 0.0
    %3055 = vmatpush1.msra.mxu0 %v3034
    %3056 = vmatprep.subr.mxu0 0.0
    %3057 = vmatpush1.msra.mxu0 %v3035
    %3058 = vmatprep.subr.mxu0 0.0
    %3059 = vmatpush1.msra.mxu0 0.0
    %3060 = vmatprep.subr.mxu0 0.0
    %3061 = vmatpush1.msra.mxu0 0.0
    %3062 = vmatprep.subr.mxu0 0.0
    %3063 = vmatpush1.msra.mxu0 0.0
    %3064 = vmatprep.subr.mxu0 0.0
    %3065 = vmatpush1.msra.mxu0 0.0
    %3066 = vmatprep.subr.mxu0 0.0
    %3067 = vmatpush1.msra.mxu0 0.0
    %3068 = vmatprep.subr.mxu0 0.0
    %3069 = vmatpush1.msra.mxu0 0.0
    %3070 = vmatprep.subr.mxu0 0.0
    %3071 = vmatpush1.msra.mxu0 0.0
    %3072 = vmatprep.subr.mxu0 0.0
    %3073 = vmatpush1.msra.mxu0 0.0
    %3074 = vmatprep.subr.mxu0 0.0
    %3075 = vmatpush1.msra.mxu0 0.0
    %3076 = vmatprep.subr.mxu0 0.0
    %3077 = vmatpush1.msra.mxu0 0.0
    %3078 = vmatprep.subr.mxu0 0.0
    %3079 = vmatpush1.msra.mxu0 0.0
    %3080 = vmatprep.subr.mxu0 0.0
    %3081 = vmatpush1.msra.mxu0 0.0
    %3082 = vmatprep.subr.mxu0 0.0
    %3083 = vmatpush1.msra.mxu0 0.0
    %3084 = vmatprep.subr.mxu0 0.0
    %3085 = vmatpush1.msra.mxu0 0.0
    %3086 = vmatprep.subr.mxu0 0.0
    %3087 = vmatpush1.msra.mxu0 0.0
    %3088 = vmatprep.subr.mxu0 0.0
    %3089 = vmatpush1.msra.mxu0 0.0
    %3090 = vmatprep.subr.mxu0 0.0
    %3091 = vmatpush1.msra.mxu0 0.0
    %3092 = vmatprep.subr.mxu0 0.0
    %3093 = vmatpush1.msra.mxu0 0.0
    %3094 = vmatprep.subr.mxu0 0.0
    %3095 = vmatpush1.msra.mxu0 0.0
    %3096 = vmatprep.subr.mxu0 0.0
    %3097 = vmatpush1.msra.mxu0 0.0
    %3098 = vmatprep.subr.mxu0 0.0
    %3099 = vmatpush1.msra.mxu0 0.0
    %3100 = vmatprep.subr.mxu0 0.0
    %3101 = vmatpush1.msra.mxu0 0.0
    %3102 = vmatprep.subr.mxu0 0.0
    %3103 = vmatpush1.msra.mxu0 0.0
    %3104 = vmatprep.subr.mxu0 0.0
    %3105 = vmatpush1.msra.mxu0 0.0
    %3106 = vmatprep.subr.mxu0 0.0
    %3107 = vmatpush1.msra.mxu0 0.0
    %3108 = vmatprep.subr.mxu0 0.0
    %3109 = vmatpush1.msra.mxu0 0.0
    %3110 = vmatprep.subr.mxu0 0.0
    %3111 = vmatpush1.msra.mxu0 0.0
    %3112 = vmatprep.subr.mxu0 0.0
    %3113 = vmatpush1.msra.mxu0 0.0
    %3114 = vmatprep.mubr.f32.mxu0 0.0
    %3115 = vmatmul.mubr.f32.gmra.mrb[0].mxu0 %v3045
    %v3116 = vpop.f32.mrb[0].mxu0
    %v3117 = vadd.f32 %v3042, %v3116
    %v3118 = vpop.f32.mrb[0].mxu0
    %3119 = vmatprep.mubr.f32.mxu0 0.0
    %3120 = vmatmul.mubr.f32.gmra.mrb[0].mxu0 %v3048
    %v3121 = vpop.f32.mrb[0].mxu0
    %v3122 = vadd.f32 %v3042, %v3121
    %v3123 = vpop.f32.mrb[0].mxu0
    %3124 = vdwg.mxu0
    %v3125 = vadd.f32 %v3117, %v2881
    %v3126 = vadd.f32 %v3122, %v2882
    %s3127 = scalar_lea.vmem %s51, 1
    %v3128 = vld [vmem:[%s3127] sm:$0x1]
    %s3129 = scalar_lea.vmem %s53, 1
    %v3130 = vld [vmem:[%s3129] sm:$0x1]
    %v3131 = vsel %vm454, %v3125, 0.0
    %3132 = vadd.xlane.f32.xlu0 %v3131
    %v3133 = vpop.xlane.xlu0 %3132
    %v3134 = vsel %vm454, %v3126, 0.0
    %3135 = vadd.xlane.f32.xlu0 %v3134
    %v3136 = vpop.xlane.xlu0 %3135
    %v3137 = vmul.f32 %v3133, %v1480
    %v3138 = vmul.f32 %v3136, %v1480
    %v3139 = vsub.f32 %v3125, %v3137
    %v3140 = vsub.f32 %v3126, %v3138
    %v3141 = vmul.f32 %v3139, %v3139
    %v3142 = vmul.f32 %v3140, %v3140
    %v3143 = vsel %vm454, %v3141, 0.0
    %3144 = vadd.xlane.f32.xlu0 %v3143
    %v3145 = vpop.xlane.xlu0 %3144
    %v3146 = vsel %vm454, %v3142, 0.0
    %3147 = vadd.xlane.f32.xlu0 %v3146
    %v3148 = vpop.xlane.xlu0 %3147
    %v3149 = vmul.f32 %v3145, %v1480
    %v3150 = vmul.f32 %v3148, %v1480
    %v3151 = vadd.f32 %v3149, 1e-12
    %v3152 = vadd.f32 %v3150, 1e-12
    %v3153 = vrsqrt.pop %v3151
    %v3154 = vrsqrt.pop %v3152
    %v3155 = vmul.f32 %v3139, %v3153
    %v3156 = vmul.f32 %v3140, %v3154
    %v3158 = vlaneseq
    %v3159 = vshrl.u32 %v3158, 7
    %v3160 = vsub.s32 0, %v3159
    %v3161 = vrot.slane %v3128, %v3160
    %v3163 = vmul.f32 %v3155, %v3161
    %v3164 = vmul.f32 %v3156, %v3161
    %v3166 = vlaneseq
    %v3167 = vshrl.u32 %v3166, 7
    %v3168 = vsub.s32 0, %v3167
    %v3169 = vrot.slane %v3130, %v3168
    %v3171 = vadd.f32 %v3163, %v3169
    %v3172 = vadd.f32 %v3164, %v3169
    %v3174 = vrot.slane %v3171, 7
    %v3177 = vrot.slane %v3172, 6
    %vm3179 = vcmask 1040384
    %v3180 = vsel %vm3179, %v3174, %v3177
    %v3181 = vld [vmem:[%s55] sm:$0xff]
    %v3182 = vld [vmem:[%s55 + $0x8] sm:$0xff]
    %v3183 = vld [vmem:[%s55 + $0x10] sm:$0xff]
    %v3184 = vld [vmem:[%s55 + $0x18] sm:$0xff]
    %v3185 = vld [vmem:[%s57] sm:$0x1]
    %v3187 = vlaneseq
    %v3188 = vshrl.u32 %v3187, 7
    %v3189 = vsub.s32 0, %v3188
    %v3190 = vrot.slane %v3185, %v3189
    %v3193 = vsel %vm454, %v3180, 0
    %3195 = vmatprep.subr.mxu0 0.0
    %3196 = vmatpush1.msra.mxu0 %v3181
    %3197 = vmatprep.subr.mxu0 0.0
    %3198 = vmatpush1.msra.mxu0 %v3182
    %3199 = vmatprep.subr.mxu0 0.0
    %3200 = vmatpush1.msra.mxu0 %v3183
    %3201 = vmatprep.subr.mxu0 0.0
    %3202 = vmatpush1.msra.mxu0 %v3184
    %3203 = vmatprep.subr.mxu0 0.0
    %3204 = vmatpush1.msra.mxu0 0.0
    %3205 = vmatprep.subr.mxu0 0.0
    %3206 = vmatpush1.msra.mxu0 0.0
    %3207 = vmatprep.subr.mxu0 0.0
    %3208 = vmatpush1.msra.mxu0 0.0
    %3209 = vmatprep.subr.mxu0 0.0
    %3210 = vmatpush1.msra.mxu0 0.0
    %3211 = vmatprep.subr.mxu0 0.0
    %3212 = vmatpush1.msra.mxu0 0.0
    %3213 = vmatprep.subr.mxu0 0.0
    %3214 = vmatpush1.msra.mxu0 0.0
    %3215 = vmatprep.subr.mxu0 0.0
    %3216 = vmatpush1.msra.mxu0 0.0
    %3217 = vmatprep.subr.mxu0 0.0
    %3218 = vmatpush1.msra.mxu0 0.0
    %3219 = vmatprep.subr.mxu0 0.0
    %3220 = vmatpush1.msra.mxu0 0.0
    %3221 = vmatprep.subr.mxu0 0.0
    %3222 = vmatpush1.msra.mxu0 0.0
    %3223 = vmatprep.subr.mxu0 0.0
    %3224 = vmatpush1.msra.mxu0 0.0
    %3225 = vmatprep.subr.mxu0 0.0
    %3226 = vmatpush1.msra.mxu0 0.0
    %3227 = vmatprep.subr.mxu0 0.0
    %3228 = vmatpush1.msra.mxu0 0.0
    %3229 = vmatprep.subr.mxu0 0.0
    %3230 = vmatpush1.msra.mxu0 0.0
    %3231 = vmatprep.subr.mxu0 0.0
    %3232 = vmatpush1.msra.mxu0 0.0
    %3233 = vmatprep.subr.mxu0 0.0
    %3234 = vmatpush1.msra.mxu0 0.0
    %3235 = vmatprep.subr.mxu0 0.0
    %3236 = vmatpush1.msra.mxu0 0.0
    %3237 = vmatprep.subr.mxu0 0.0
    %3238 = vmatpush1.msra.mxu0 0.0
    %3239 = vmatprep.subr.mxu0 0.0
    %3240 = vmatpush1.msra.mxu0 0.0
    %3241 = vmatprep.subr.mxu0 0.0
    %3242 = vmatpush1.msra.mxu0 0.0
    %3243 = vmatprep.subr.mxu0 0.0
    %3244 = vmatpush1.msra.mxu0 0.0
    %3245 = vmatprep.subr.mxu0 0.0
    %3246 = vmatpush1.msra.mxu0 0.0
    %3247 = vmatprep.subr.mxu0 0.0
    %3248 = vmatpush1.msra.mxu0 0.0
    %3249 = vmatprep.subr.mxu0 0.0
    %3250 = vmatpush1.msra.mxu0 0.0
    %3251 = vmatprep.subr.mxu0 0.0
    %3252 = vmatpush1.msra.mxu0 0.0
    %3253 = vmatprep.subr.mxu0 0.0
    %3254 = vmatpush1.msra.mxu0 0.0
    %3255 = vmatprep.subr.mxu0 0.0
    %3256 = vmatpush1.msra.mxu0 0.0
    %3257 = vmatprep.subr.mxu0 0.0
    %3258 = vmatpush1.msra.mxu0 0.0
    %3259 = vmatprep.mubr.f32.mxu0 0.0
    %3260 = vmatmul.mubr.f32.gmra.mrb[0].mxu0 %v3193
    %v3261 = vpop.f32.mrb[0].mxu0
    %v3262 = vadd.f32 %v3190, %v3261
    %v3263 = vpop.f32.mrb[0].mxu0
    %3264 = vdwg.mxu0
    %v3265 = vld [vmem:[%s59] sm:$0x1]
    %v3266 = vld [vmem:[%s61] sm:$0x1]
    %vm3267 = vcmask 254976
    %v3268 = vsel %vm3267, %v3262, 0.0
    %3269 = vadd.xlane.f32.xlu0 %v3268
    %v3270 = vpop.xlane.xlu0 %3269
    %v3271 = vmul.f32 %v3270, %v1480
    %v3272 = vsub.f32 %v3262, %v3271
    %v3273 = vmul.f32 %v3272, %v3272
    %v3274 = vsel %vm3267, %v3273, 0.0
    %3275 = vadd.xlane.f32.xlu0 %v3274
    %v3276 = vpop.xlane.xlu0 %3275
    %v3277 = vmul.f32 %v3276, %v1480
    %v3278 = vadd.f32 %v3277, 1e-05
    %v3279 = vrsqrt.pop %v3278
    %v3280 = vmul.f32 %v3272, %v3279
    %v3282 = vlaneseq
    %v3283 = vshrl.u32 %v3282, 7
    %v3284 = vsub.s32 0, %v3283
    %v3285 = vrot.slane %v3265, %v3284
    %v3287 = vmul.f32 %v3280, %v3285
    %v3289 = vlaneseq
    %v3290 = vshrl.u32 %v3289, 7
    %v3291 = vsub.s32 0, %v3290
    %v3292 = vrot.slane %v3266, %v3291
    %v3294 = vadd.f32 %v3287, %v3292
    %v3295 = vmax.f32 %v3294, 0.0
    %v3296 = vld [vmem:[%s63] sm:$0xff]
    %v3297 = vld [vmem:[%s63 + $0x8] sm:$0xff]
    %v3298 = vld [vmem:[%s63 + $0x10] sm:$0xff]
    %v3299 = vld [vmem:[%s63 + $0x18] sm:$0xff]
    %v3300 = vld [vmem:[%s65] sm:$0x1]
    %v3302 = vlaneseq
    %v3303 = vshrl.u32 %v3302, 7
    %v3304 = vsub.s32 0, %v3303
    %v3305 = vrot.slane %v3300, %v3304
    %v3308 = vsel %vm454, %v3295, 0
    %3310 = vmatprep.subr.mxu0 0.0
    %3311 = vmatpush1.msra.mxu0 %v3296
    %3312 = vmatprep.subr.mxu0 0.0
    %3313 = vmatpush1.msra.mxu0 %v3297
    %3314 = vmatprep.subr.mxu0 0.0
    %3315 = vmatpush1.msra.mxu0 %v3298
    %3316 = vmatprep.subr.mxu0 0.0
    %3317 = vmatpush1.msra.mxu0 %v3299
    %3318 = vmatprep.subr.mxu0 0.0
    %3319 = vmatpush1.msra.mxu0 0.0
    %3320 = vmatprep.subr.mxu0 0.0
    %3321 = vmatpush1.msra.mxu0 0.0
    %3322 = vmatprep.subr.mxu0 0.0
    %3323 = vmatpush1.msra.mxu0 0.0
    %3324 = vmatprep.subr.mxu0 0.0
    %3325 = vmatpush1.msra.mxu0 0.0
    %3326 = vmatprep.subr.mxu0 0.0
    %3327 = vmatpush1.msra.mxu0 0.0
    %3328 = vmatprep.subr.mxu0 0.0
    %3329 = vmatpush1.msra.mxu0 0.0
    %3330 = vmatprep.subr.mxu0 0.0
    %3331 = vmatpush1.msra.mxu0 0.0
    %3332 = vmatprep.subr.mxu0 0.0
    %3333 = vmatpush1.msra.mxu0 0.0
    %3334 = vmatprep.subr.mxu0 0.0
    %3335 = vmatpush1.msra.mxu0 0.0
    %3336 = vmatprep.subr.mxu0 0.0
    %3337 = vmatpush1.msra.mxu0 0.0
    %3338 = vmatprep.subr.mxu0 0.0
    %3339 = vmatpush1.msra.mxu0 0.0
    %3340 = vmatprep.subr.mxu0 0.0
    %3341 = vmatpush1.msra.mxu0 0.0
    %3342 = vmatprep.subr.mxu0 0.0
    %3343 = vmatpush1.msra.mxu0 0.0
    %3344 = vmatprep.subr.mxu0 0.0
    %3345 = vmatpush1.msra.mxu0 0.0
    %3346 = vmatprep.subr.mxu0 0.0
    %3347 = vmatpush1.msra.mxu0 0.0
    %3348 = vmatprep.subr.mxu0 0.0
    %3349 = vmatpush1.msra.mxu0 0.0
    %3350 = vmatprep.subr.mxu0 0.0
    %3351 = vmatpush1.msra.mxu0 0.0
    %3352 = vmatprep.subr.mxu0 0.0
    %3353 = vmatpush1.msra.mxu0 0.0
    %3354 = vmatprep.subr.mxu0 0.0
    %3355 = vmatpush1.msra.mxu0 0.0
    %3356 = vmatprep.subr.mxu0 0.0
    %3357 = vmatpush1.msra.mxu0 0.0
    %3358 = vmatprep.subr.mxu0 0.0
    %3359 = vmatpush1.msra.mxu0 0.0
    %3360 = vmatprep.subr.mxu0 0.0
    %3361 = vmatpush1.msra.mxu0 0.0
    %3362 = vmatprep.subr.mxu0 0.0
    %3363 = vmatpush1.msra.mxu0 0.0
    %3364 = vmatprep.subr.mxu0 0.0
    %3365 = vmatpush1.msra.mxu0 0.0
    %3366 = vmatprep.subr.mxu0 0.0
    %3367 = vmatpush1.msra.mxu0 0.0
    %3368 = vmatprep.subr.mxu0 0.0
    %3369 = vmatpush1.msra.mxu0 0.0
    %3370 = vmatprep.subr.mxu0 0.0
    %3371 = vmatpush1.msra.mxu0 0.0
    %3372 = vmatprep.subr.mxu0 0.0
    %3373 = vmatpush1.msra.mxu0 0.0
    %3374 = vmatprep.mubr.f32.mxu0 0.0
    %3375 = vmatmul.mubr.f32.gmra.mrb[0].mxu0 %v3308
    %v3376 = vpop.f32.mrb[0].mxu0
    %v3377 = vadd.f32 %v3305, %v3376
    %v3378 = vpop.f32.mrb[0].mxu0
    %3379 = vdwg.mxu0
    %v3380 = vld [vmem:[%s67] sm:$0x1]
    %v3381 = vld [vmem:[%s69] sm:$0x1]
    %v3382 = vsel %vm3267, %v3377, 0.0
    %3383 = vadd.xlane.f32.xlu0 %v3382
    %v3384 = vpop.xlane.xlu0 %3383
    %v3385 = vmul.f32 %v3384, %v1480
    %v3386 = vsub.f32 %v3377, %v3385
    %v3387 = vmul.f32 %v3386, %v3386
    %v3388 = vsel %vm3267, %v3387, 0.0
    %3389 = vadd.xlane.f32.xlu0 %v3388
    %v3390 = vpop.xlane.xlu0 %3389
    %v3391 = vmul.f32 %v3390, %v1480
    %v3392 = vadd.f32 %v3391, 1e-05
    %v3393 = vrsqrt.pop %v3392
    %v3394 = vmul.f32 %v3386, %v3393
    %v3396 = vlaneseq
    %v3397 = vshrl.u32 %v3396, 7
    %v3398 = vsub.s32 0, %v3397
    %v3399 = vrot.slane %v3380, %v3398
    %v3401 = vmul.f32 %v3394, %v3399
    %v3403 = vlaneseq
    %v3404 = vshrl.u32 %v3403, 7
    %v3405 = vsub.s32 0, %v3404
    %v3406 = vrot.slane %v3381, %v3405
    %v3408 = vadd.f32 %v3401, %v3406
    %v3409 = vmax.f32 %v3408, 0.0
    %v3410 = vld [vmem:[%s71] sm:$0xff]
    %v3411 = vld [vmem:[%s71 + $0x8] sm:$0xff]
    %v3412 = vld [vmem:[%s71 + $0x10] sm:$0xff]
    %v3413 = vld [vmem:[%s71 + $0x18] sm:$0xff]
    %v3414 = vld [vmem:[%s73] sm:$0x1]
    %v3416 = vlaneseq
    %v3417 = vshrl.u32 %v3416, 7
    %v3418 = vsub.s32 0, %v3417
    %v3419 = vrot.slane %v3414, %v3418
    %v3422 = vsel %vm454, %v3409, 0
    %3424 = vmatprep.subr.mxu0 0.0
    %3425 = vmatpush1.msra.mxu0 %v3410
    %3426 = vmatprep.subr.mxu0 0.0
    %3427 = vmatpush1.msra.mxu0 %v3411
    %3428 = vmatprep.subr.mxu0 0.0
    %3429 = vmatpush1.msra.mxu0 %v3412
    %3430 = vmatprep.subr.mxu0 0.0
    %3431 = vmatpush1.msra.mxu0 %v3413
    %3432 = vmatprep.subr.mxu0 0.0
    %3433 = vmatpush1.msra.mxu0 0.0
    %3434 = vmatprep.subr.mxu0 0.0
    %3435 = vmatpush1.msra.mxu0 0.0
    %3436 = vmatprep.subr.mxu0 0.0
    %3437 = vmatpush1.msra.mxu0 0.0
    %3438 = vmatprep.subr.mxu0 0.0
    %3439 = vmatpush1.msra.mxu0 0.0
    %3440 = vmatprep.subr.mxu0 0.0
    %3441 = vmatpush1.msra.mxu0 0.0
    %3442 = vmatprep.subr.mxu0 0.0
    %3443 = vmatpush1.msra.mxu0 0.0
    %3444 = vmatprep.subr.mxu0 0.0
    %3445 = vmatpush1.msra.mxu0 0.0
    %3446 = vmatprep.subr.mxu0 0.0
    %3447 = vmatpush1.msra.mxu0 0.0
    %3448 = vmatprep.subr.mxu0 0.0
    %3449 = vmatpush1.msra.mxu0 0.0
    %3450 = vmatprep.subr.mxu0 0.0
    %3451 = vmatpush1.msra.mxu0 0.0
    %3452 = vmatprep.subr.mxu0 0.0
    %3453 = vmatpush1.msra.mxu0 0.0
    %3454 = vmatprep.subr.mxu0 0.0
    %3455 = vmatpush1.msra.mxu0 0.0
    %3456 = vmatprep.subr.mxu0 0.0
    %3457 = vmatpush1.msra.mxu0 0.0
    %3458 = vmatprep.subr.mxu0 0.0
    %3459 = vmatpush1.msra.mxu0 0.0
    %3460 = vmatprep.subr.mxu0 0.0
    %3461 = vmatpush1.msra.mxu0 0.0
    %3462 = vmatprep.subr.mxu0 0.0
    %3463 = vmatpush1.msra.mxu0 0.0
    %3464 = vmatprep.subr.mxu0 0.0
    %3465 = vmatpush1.msra.mxu0 0.0
    %3466 = vmatprep.subr.mxu0 0.0
    %3467 = vmatpush1.msra.mxu0 0.0
    %3468 = vmatprep.subr.mxu0 0.0
    %3469 = vmatpush1.msra.mxu0 0.0
    %3470 = vmatprep.subr.mxu0 0.0
    %3471 = vmatpush1.msra.mxu0 0.0
    %3472 = vmatprep.subr.mxu0 0.0
    %3473 = vmatpush1.msra.mxu0 0.0
    %3474 = vmatprep.subr.mxu0 0.0
    %3475 = vmatpush1.msra.mxu0 0.0
    %3476 = vmatprep.subr.mxu0 0.0
    %3477 = vmatpush1.msra.mxu0 0.0
    %3478 = vmatprep.subr.mxu0 0.0
    %3479 = vmatpush1.msra.mxu0 0.0
    %3480 = vmatprep.subr.mxu0 0.0
    %3481 = vmatpush1.msra.mxu0 0.0
    %3482 = vmatprep.subr.mxu0 0.0
    %3483 = vmatpush1.msra.mxu0 0.0
    %3484 = vmatprep.subr.mxu0 0.0
    %3485 = vmatpush1.msra.mxu0 0.0
    %3486 = vmatprep.subr.mxu0 0.0
    %3487 = vmatpush1.msra.mxu0 0.0
    %3488 = vmatprep.mubr.f32.mxu0 0.0
    %3489 = vmatmul.mubr.f32.gmra.mrb[0].mxu0 %v3422
    %v3490 = vpop.f32.mrb[0].mxu0
    %v3491 = vadd.f32 %v3419, %v3490
    %v3492 = vpop.f32.mrb[0].mxu0
    %3493 = vdwg.mxu0
    %vm3494 = vcmask 58368
    %3495 = vst.msk [vmem:[#allocation2] sm:$0x3] %vm3494, %v3491
    // Predicated region
    $region150: #{transformer_forward.1} parent=1 // pred_check
      _
    $region151: #{transformer_forward.1} parent=1 // pred_check_branch
      %3497 = sbr.rel (0) target = $region153
    $region152: #{transformer_forward.1} parent=1 // pred_region
      %s3499 = ssub.s32 32, 32
      %3500 = vsyncadd [#allocation3], %s3499
      %s3502 = sshll.u32 [#allocation2], 4
      %s3503 = int_to_ptr.vmem [resolvable:$true] %s3502
      %3505 = dma.vmem_to_hbm [thread:$0]  %s3503, 32, %s75, [#allocation3]
    $region153: #{transformer_forward.1} parent=1 // pred_fallthru
      _
    // Predicated region
    $region154: #{transformer_forward.1} parent=1 // pred_check
      _
    $region155: #{transformer_forward.1} parent=1 // pred_check_branch
      %3507 = sbr.rel (0) target = $region157
    $region156: #{transformer_forward.1} parent=1 // pred_region
      %3508 = dma.done [#allocation3], 32
    $region157: #{transformer_forward.1} parent=1 // pred_fallthru
      _
    %3509 = vsyncpa [#allocation3], 1

</llo_original>
